<compile_context>
chip_gen: v7x
topology: tpu7x:2x2x1
jax: 0.10.0
libtpu: 0.0.40
codegen_flags: <defaults>
</compile_context>

<pallas_src>
import functools
import math

import jax
import jax.numpy as jnp
from jax.experimental import pallas as pl
from jax.experimental.pallas import tpu as pltpu

LEAKY_SLOPE = 0.1
BN_EPS = 1e-5


def fold_bn(gamma, beta, mean, var):
    scale = gamma / jnp.sqrt(var + BN_EPS)
    bias = beta - mean * scale
    return scale, bias


def _leaky(y):
    return jnp.where(y > 0, y, LEAKY_SLOPE * y)


# ---------------------------------------------------------------------------
# Fused NetworkBlock Pallas kernel
# ---------------------------------------------------------------------------

def _make_network_block_kernel(meta, Bt):
    """Kernel processing Bt images per grid step through ALL BasicBlocks."""

    def _write_padded(pad_ref, act, Hb, Wb, C):
        # Interior (fully overwritten every conv) + 1-pixel zero halo (edges only).
        pad_ref[:, 1:Hb + 1, 1:Wb + 1, 0:C] = act
        zr = jnp.zeros((Bt, 1, Wb + 2, C), jnp.float32)
        pad_ref[:, 0:1, 0:Wb + 2, 0:C] = zr
        pad_ref[:, Hb + 1:Hb + 2, 0:Wb + 2, 0:C] = zr
        zc = jnp.zeros((Bt, Hb + 2, 1, C), jnp.float32)
        pad_ref[:, 0:Hb + 2, 0:1, 0:C] = zc
        pad_ref[:, 0:Hb + 2, Wb + 1:Wb + 2, 0:C] = zc

    def _conv3x3(pad_ref, col_ref, w_ref, Hb, Wb, C, stride):
        """3x3 'same' conv as ONE im2col matmul; strided taps for stride > 1."""
        Ho, Wo = Hb // stride, Wb // stride
        M = Bt * Ho * Wo
        for kh in range(3):
            for kw in range(3):
                t = kh * 3 + kw
                if stride == 1:
                    v = pad_ref[:, kh:kh + Hb, kw:kw + Wb, 0:C]
                else:
                    v = pad_ref[:, pl.ds(kh, Ho, stride),
                                pl.ds(kw, Wo, stride), 0:C]
                col_ref[0:M, t * C:(t + 1) * C] = v.reshape(M, C)
        patch = col_ref[0:M, 0:9 * C].astype(jnp.bfloat16)          # (M, 9C)
        return jnp.dot(patch, w_ref[...],
                       preferred_element_type=jnp.float32)          # (M, Cout) f32

    def kernel(*refs):
        it = iter(refs)
        x_ref = next(it)
        blk_refs = []
        for m in meta:
            r = dict(s1=next(it), b1=next(it), w1=next(it),
                     s2=next(it), b2=next(it), w2=next(it))
            if not m["equal"]:
                r["ws"] = next(it)
            blk_refs.append(r)
        o_ref = next(it)
        pad0_ref = next(it)   # padded input of the very first conv (Cin0 channels)
        pad_ref = next(it)    # padded input of every other conv (Cout channels)
        col_ref = next(it)    # im2col staging buffer (f32)

        act = x_ref[...].astype(jnp.float32)                 # (Bt, H, W, Cin0)

        for i, (m, r) in enumerate(zip(meta, blk_refs)):
            H, W, Cin, Cout, s, equal = (m["H"], m["W"], m["Cin"], m["Cout"],
                                         m["stride"], m["equal"])
            Ho, Wo = H // s, W // s
            Mo = Bt * Ho * Wo
            p1_ref = pad0_ref if i == 0 else pad_ref

            # ---- BN1 + LeakyReLU (fused prologue, VPU, f32) ----
            # conv1 input == shortcut input whenever the block changes channels.
            if equal or m["abr"]:
                conv_in = _leaky(act * r["s1"][...].reshape(1, 1, 1, Cin)
                                 + r["b1"][...].reshape(1, 1, 1, Cin))
            else:
                conv_in = act

            # ---- conv1: 3x3, stride s, 'same' (evaluated only at strided outputs) ----
            _write_padded(p1_ref, conv_in, H, W, Cin)
            h = _conv3x3(p1_ref, col_ref, r["w1"], H, W, Cin, s)    # (Mo, Cout)

            # ---- shortcut (read before pad_ref is reused by conv2; f32 exact) ----
            if equal:
                shortcut = act.reshape(Mo, Cin)                     # identity
            else:
                if s > 1:
                    xr = p1_ref[:, pl.ds(1, Ho, s), pl.ds(1, Wo, s), 0:Cin]
                else:
                    xr = p1_ref[:, 1:H + 1, 1:W + 1, 0:Cin]
                shortcut = jnp.dot(xr.reshape(Mo, Cin), r["ws"][...],
                                   preferred_element_type=jnp.float32)

            # ---- BN2 + LeakyReLU ----
            h = _leaky(h * r["s2"][...] + r["b2"][...])             # (Mo, Cout)
            # TODO(synk): F.dropout for dropRate > 0 not implemented (default 0.0).

            # ---- conv2: 3x3, stride 1, 'same' ----
            _write_padded(pad_ref, h.reshape(Bt, Ho, Wo, Cout), Ho, Wo, Cout)
            out = _conv3x3(pad_ref, col_ref, r["w2"], Ho, Wo, Cout, 1)

            # ---- residual add (f32) ----
            act = (out + shortcut).reshape(Bt, Ho, Wo, Cout)

        o_ref[...] = act.astype(o_ref.dtype)

    return kernel


# ---------------------------------------------------------------------------
# Wrapper: parameter folding + single pallas_call for the whole NetworkBlock
# ---------------------------------------------------------------------------

def network_block_forward(x, params_list, stride, activate_before_residual):
    N, H, W, C0 = x.shape
    nb = len(params_list)
    assert nb >= 1

    # Per-step batch Bt: divide N, keep the grid length >= 2 when possible so both
    # v7x TensorCores get work, while amortizing per-step overhead for larger N.
    Bt = 1
    for cand in (8, 4, 2, 1):
        if N % cand == 0 and N // cand >= 2:
            Bt = cand
            break

    meta = []
    operands = [x]
    in_specs = [pl.BlockSpec((Bt, H, W, C0), lambda n: (n, 0, 0, 0))]

    cur_H, cur_W, cur_C = H, W, C0
    for i, p in enumerate(params_list):
        s = stride if i == 0 else 1
        cin = cur_C
        cout = p["conv1_w"].shape[3]
        equal = (cin == cout)
        assert cur_H % s == 0 and cur_W % s == 0
        if equal:
            assert s == 1, "identity shortcut requires stride 1"
        if i > 0:
            assert equal, "only the first BasicBlock may change channel count"

        s1, b1 = fold_bn(p["bn1_gamma"], p["bn1_beta"], p["bn1_mean"], p["bn1_var"])
        s2, b2 = fold_bn(p["bn2_gamma"], p["bn2_beta"], p["bn2_mean"], p["bn2_var"])
        w1 = p["conv1_w"].reshape(9 * cin, cout).astype(jnp.bfloat16)   # tap-major
        w2 = p["conv2_w"].reshape(9 * cout, cout).astype(jnp.bfloat16)

        operands += [
            s1.reshape(1, cin).astype(jnp.float32),
            b1.reshape(1, cin).astype(jnp.float32),
            w1,
            s2.reshape(1, cout).astype(jnp.float32),
            b2.reshape(1, cout).astype(jnp.float32),
            w2,
        ]
        in_specs += [
            pl.BlockSpec((1, cin), lambda n: (0, 0)),
            pl.BlockSpec((1, cin), lambda n: (0, 0)),
            pl.BlockSpec((9 * cin, cout), lambda n: (0, 0)),
            pl.BlockSpec((1, cout), lambda n: (0, 0)),
            pl.BlockSpec((1, cout), lambda n: (0, 0)),
            pl.BlockSpec((9 * cout, cout), lambda n: (0, 0)),
        ]
        if not equal:
            operands.append(p["short_w"].reshape(cin, cout).astype(jnp.float32))
            in_specs.append(pl.BlockSpec((cin, cout), lambda n: (0, 0)))

        meta.append(dict(H=cur_H, W=cur_W, Cin=cin, Cout=cout, stride=s,
                         equal=equal, abr=activate_before_residual))
        cur_H, cur_W, cur_C = cur_H // s, cur_W // s, cout

    Hf, Wf, Cf = cur_H, cur_W, cur_C
    pad_H = max(m["H"] // m["stride"] for m in meta)
    pad_W = max(m["W"] // m["stride"] for m in meta)
    pad_C = max(m["Cout"] for m in meta)
    col_M = Bt * max((m["H"] // m["stride"]) * (m["W"] // m["stride"]) for m in meta)
    col_K = 9 * max(max(m["Cin"], m["Cout"]) for m in meta)

    kernel = _make_network_block_kernel(meta, Bt)

    return pl.pallas_call(
        kernel,
        out_shape=jax.ShapeDtypeStruct((N, Hf, Wf, Cf), x.dtype),
        grid=(N // Bt,),
        in_specs=in_specs,
        out_specs=pl.BlockSpec((Bt, Hf, Wf, Cf), lambda n: (n, 0, 0, 0)),
        scratch_shapes=[
            pltpu.VMEM((Bt, H + 2, W + 2, C0), jnp.float32),        # first conv pad
            pltpu.VMEM((Bt, pad_H + 2, pad_W + 2, pad_C), jnp.float32),  # other pads
            pltpu.VMEM((col_M, col_K), jnp.float32),                # im2col staging
        ],
        compiler_params=pltpu.CompilerParams(
            dimension_semantics=("parallel",),      # v7x: batch split across 2 TCs
            vmem_limit_bytes=32 * 1024 * 1024,      # plenty at these sizes; re-derive for big C
        ),
    )(*operands)


# ---------------------------------------------------------------------------
# Parameter init (matches the PyTorch module's structure)
# ---------------------------------------------------------------------------

def init_basic_block(key, c_in, c_out):
    ks = jax.random.split(key, 12)
    he1 = math.sqrt(2.0 / (9 * c_out))
    p = {
        "bn1_gamma": 1.0 + 0.1 * jax.random.normal(ks[0], (c_in,), jnp.float32),
        "bn1_beta": 0.1 * jax.random.normal(ks[1], (c_in,), jnp.float32),
        "bn1_mean": 0.1 * jax.random.normal(ks[2], (c_in,), jnp.float32),
        "bn1_var": jax.random.uniform(ks[3], (c_in,), jnp.float32, 0.5, 1.5),
        "conv1_w": he1 * jax.random.normal(ks[4], (3, 3, c_in, c_out), jnp.float32),
        "bn2_gamma": 1.0 + 0.1 * jax.random.normal(ks[5], (c_out,), jnp.float32),
        "bn2_beta": 0.1 * jax.random.normal(ks[6], (c_out,), jnp.float32),
        "bn2_mean": 0.1 * jax.random.normal(ks[7], (c_out,), jnp.float32),
        "bn2_var": jax.random.uniform(ks[8], (c_out,), jnp.float32, 0.5, 1.5),
        "conv2_w": he1 * jax.random.normal(ks[9], (3, 3, c_out, c_out), jnp.float32),
    }
    if c_in != c_out:
        he_s = math.sqrt(2.0 / c_out)
        p["short_w"] = he_s * jax.random.normal(ks[10], (1, 1, c_in, c_out), jnp.float32)
    return p


# ---------------------------------------------------------------------------
# Pure-JAX reference (correctness check only)
# ---------------------------------------------------------------------------

def _ref_conv(x, w, stride, pad):
    return jax.lax.conv_general_dilated(
        x, w, (stride, stride), ((pad, pad), (pad, pad)),
        dimension_numbers=("NHWC", "HWIO", "NHWC"))


def _ref_bn_act(x, scale, bias):
    y = x * scale.reshape(1, 1, 1, -1) + bias.reshape(1, 1, 1, -1)
    return jnp.where(y > 0, y, LEAKY_SLOPE * y)


def _ref_basic_block(x, p, stride, activate_before_residual):
    c_in = x.shape[3]
    c_out = p["conv1_w"].shape[3]
    equal = (c_in == c_out)
    s1, b1 = fold_bn(p["bn1_gamma"], p["bn1_beta"], p["bn1_mean"], p["bn1_var"])
    act1 = _ref_bn_act(x, s1, b1)
    if (not equal) and activate_before_residual:
        x = act1
    conv1_in = act1 if equal else x
    h = _ref_conv(conv1_in, p["conv1_w"], stride, 1)
    s2, b2 = fold_bn(p["bn2_gamma"], p["bn2_beta"], p["bn2_mean"], p["bn2_var"])
    h = _ref_bn_act(h, s2, b2)
    h = _ref_conv(h, p["conv2_w"], 1, 1)
    shortcut = x if equal else _ref_conv(x, p["short_w"], stride, 0)
    return shortcut + h


def _ref_network_block(x, params_list, stride, activate_before_residual):
    for i, p in enumerate(params_list):
        s = stride if i == 0 else 1
        x = _ref_basic_block(x, p, s, activate_before_residual)
    return x


# ---------------------------------------------------------------------------

if __name__ == "__main__":
    # NetworkBlock(nb_layers=2, in_planes=4, out_planes=8, block=BasicBlock,
    #              stride=2, dropRate=0.0, activate_before_residual=True)
    nb_layers, in_planes, out_planes, stride = 2, 4, 8, 2
    activate_before_residual = True
    N, H, W = 2, 16, 16

    key = jax.random.PRNGKey(0)
    kx, kp = jax.random.split(key)
    x_nchw = jax.random.normal(kx, (N, in_planes, H, W), jnp.float32)
    x = jnp.transpose(x_nchw, (0, 2, 3, 1))  # NCHW -> NHWC

    params = []
    pkeys = jax.random.split(kp, nb_layers)
    for i in range(nb_layers):
        c_in = in_planes if i == 0 else out_planes
        params.append(init_basic_block(pkeys[i], c_in, out_planes))

    fwd = jax.jit(functools.partial(
        network_block_forward, stride=stride,
        activate_before_residual=activate_before_residual))

    out = jax.block_until_ready(fwd(x, params))
    ref = jax.block_until_ready(
        _ref_network_block(x, params, stride, activate_before_residual))

    assert out.shape == (N, H // stride, W // stride, out_planes), out.shape
    max_err = float(jnp.max(jnp.abs(out - ref)))
    # bf16 MXU operands in the two chained 3x3 convs per block -> ~1% relative error.
    assert jnp.allclose(out, ref, rtol=5e-2, atol=5e-2), max_err

    print("KERNEL_OK")
</pallas_src>

<mosaic_0001>
module attributes {stable_mosaic.version = 11 : i64} {
  func.func @kernel(%arg0: i32, %arg1: memref<1x16x16x4xf32, #tpu.memory_space<vmem>>, %arg2: memref<1x4xf32, #tpu.memory_space<vmem>>, %arg3: memref<1x4xf32, #tpu.memory_space<vmem>>, %arg4: memref<36x8xbf16, #tpu.memory_space<vmem>>, %arg5: memref<1x8xf32, #tpu.memory_space<vmem>>, %arg6: memref<1x8xf32, #tpu.memory_space<vmem>>, %arg7: memref<72x8xbf16, #tpu.memory_space<vmem>>, %arg8: memref<4x8xf32, #tpu.memory_space<vmem>>, %arg9: memref<1x8xf32, #tpu.memory_space<vmem>>, %arg10: memref<1x8xf32, #tpu.memory_space<vmem>>, %arg11: memref<72x8xbf16, #tpu.memory_space<vmem>>, %arg12: memref<1x8xf32, #tpu.memory_space<vmem>>, %arg13: memref<1x8xf32, #tpu.memory_space<vmem>>, %arg14: memref<72x8xbf16, #tpu.memory_space<vmem>>, %arg15: memref<1x8x8x8xf32, #tpu.memory_space<vmem>>, %arg16: memref<1x18x18x4xf32, #tpu.memory_space<vmem>>, %arg17: memref<1x10x10x8xf32, #tpu.memory_space<vmem>>, %arg18: memref<64x72xf32, #tpu.memory_space<vmem>>) attributes {dimension_semantics = [#tpu.dimension_semantics<parallel>], iteration_bounds = array<i64: 2>, scalar_prefetch = 0 : i64, scratch_operands = 3 : i64, tpu.core_type = #tpu.core_type<tc>, window_params = [{transform_indices = @transform_0, window_bounds = array<i64: 1, 16, 16, 4>}, {pipeline_mode = #tpu.pipeline_mode<synchronous>, transform_indices = @transform_1, window_bounds = array<i64: 1, 4>}, {pipeline_mode = #tpu.pipeline_mode<synchronous>, transform_indices = @transform_2, window_bounds = array<i64: 1, 4>}, {pipeline_mode = #tpu.pipeline_mode<synchronous>, transform_indices = @transform_3, window_bounds = array<i64: 36, 8>}, {pipeline_mode = #tpu.pipeline_mode<synchronous>, transform_indices = @transform_4, window_bounds = array<i64: 1, 8>}, {pipeline_mode = #tpu.pipeline_mode<synchronous>, transform_indices = @transform_5, window_bounds = array<i64: 1, 8>}, {pipeline_mode = #tpu.pipeline_mode<synchronous>, transform_indices = @transform_6, window_bounds = array<i64: 72, 8>}, {pipeline_mode = #tpu.pipeline_mode<synchronous>, transform_indices = @transform_7, window_bounds = array<i64: 4, 8>}, {pipeline_mode = #tpu.pipeline_mode<synchronous>, transform_indices = @transform_8, window_bounds = array<i64: 1, 8>}, {pipeline_mode = #tpu.pipeline_mode<synchronous>, transform_indices = @transform_9, window_bounds = array<i64: 1, 8>}, {pipeline_mode = #tpu.pipeline_mode<synchronous>, transform_indices = @transform_10, window_bounds = array<i64: 72, 8>}, {pipeline_mode = #tpu.pipeline_mode<synchronous>, transform_indices = @transform_11, window_bounds = array<i64: 1, 8>}, {pipeline_mode = #tpu.pipeline_mode<synchronous>, transform_indices = @transform_12, window_bounds = array<i64: 1, 8>}, {pipeline_mode = #tpu.pipeline_mode<synchronous>, transform_indices = @transform_13, window_bounds = array<i64: 72, 8>}, {transform_indices = @transform_14, window_bounds = array<i64: 1, 8, 8, 8>}]} {
    %c0 = arith.constant 0 : index
    %c0_0 = arith.constant 0 : index
    %c0_1 = arith.constant 0 : index
    %c0_2 = arith.constant 0 : index
    %0 = vector.load %arg1[%c0, %c0_0, %c0_1, %c0_2] : memref<1x16x16x4xf32, #tpu.memory_space<vmem>>, vector<1x16x16x4xf32>
    %c0_3 = arith.constant 0 : index
    %c0_4 = arith.constant 0 : index
    %1 = vector.load %arg2[%c0_3, %c0_4] : memref<1x4xf32, #tpu.memory_space<vmem>>, vector<1x4xf32>
    %2 = vector.shape_cast %1 : vector<1x4xf32> to vector<1x1x1x4xf32>
    %3 = vector.broadcast %2 : vector<1x1x1x4xf32> to vector<1x16x16x4xf32>
    %4 = arith.mulf %0, %3 : vector<1x16x16x4xf32>
    %c0_5 = arith.constant 0 : index
    %c0_6 = arith.constant 0 : index
    %5 = vector.load %arg3[%c0_5, %c0_6] : memref<1x4xf32, #tpu.memory_space<vmem>>, vector<1x4xf32>
    %6 = vector.shape_cast %5 : vector<1x4xf32> to vector<1x1x1x4xf32>
    %7 = vector.broadcast %6 : vector<1x1x1x4xf32> to vector<1x16x16x4xf32>
    %8 = arith.addf %4, %7 : vector<1x16x16x4xf32>
    %cst = arith.constant 0.000000e+00 : f32
    %9 = vector.broadcast %cst : f32 to vector<1x16x16x4xf32>
    %10 = arith.cmpf ogt, %8, %9 : vector<1x16x16x4xf32>
    %cst_7 = arith.constant 1.000000e-01 : f32
    %11 = vector.broadcast %cst_7 : f32 to vector<1x16x16x4xf32>
    %12 = arith.mulf %11, %8 : vector<1x16x16x4xf32>
    %13 = arith.select %10, %8, %12 : vector<1x16x16x4xi1>, vector<1x16x16x4xf32>
    %c0_8 = arith.constant 0 : index
    %c1 = arith.constant 1 : index
    %c1_9 = arith.constant 1 : index
    %c0_10 = arith.constant 0 : index
    %14 = vector.load %arg16[%c0_8, %c1, %c1_9, %c0_10] : memref<1x18x18x4xf32, #tpu.memory_space<vmem>>, vector<1x16x16x4xf32>
    tpu.vector_store %arg16[%c0_8, %c1, %c1_9, %c0_10], %13 {strides = array<i32>} : memref<1x18x18x4xf32, #tpu.memory_space<vmem>>, vector<1x16x16x4xf32>,
    %cst_11 = arith.constant 0.000000e+00 : f32
    %15 = vector.broadcast %cst_11 : f32 to vector<1x1x18x4xf32>
    %c0_12 = arith.constant 0 : index
    %c0_13 = arith.constant 0 : index
    %c0_14 = arith.constant 0 : index
    %c0_15 = arith.constant 0 : index
    %16 = vector.load %arg16[%c0_12, %c0_13, %c0_14, %c0_15] : memref<1x18x18x4xf32, #tpu.memory_space<vmem>>, vector<1x1x18x4xf32>
    tpu.vector_store %arg16[%c0_12, %c0_13, %c0_14, %c0_15], %15 {strides = array<i32>} : memref<1x18x18x4xf32, #tpu.memory_space<vmem>>, vector<1x1x18x4xf32>,
    %c0_16 = arith.constant 0 : index
    %c17 = arith.constant 17 : index
    %c0_17 = arith.constant 0 : index
    %c0_18 = arith.constant 0 : index
    %17 = vector.load %arg16[%c0_16, %c17, %c0_17, %c0_18] : memref<1x18x18x4xf32, #tpu.memory_space<vmem>>, vector<1x1x18x4xf32>
    tpu.vector_store %arg16[%c0_16, %c17, %c0_17, %c0_18], %15 {strides = array<i32>} : memref<1x18x18x4xf32, #tpu.memory_space<vmem>>, vector<1x1x18x4xf32>,
    %cst_19 = arith.constant 0.000000e+00 : f32
    %18 = vector.broadcast %cst_19 : f32 to vector<1x18x1x4xf32>
    %c0_20 = arith.constant 0 : index
    %c0_21 = arith.constant 0 : index
    %c0_22 = arith.constant 0 : index
    %c0_23 = arith.constant 0 : index
    %19 = vector.load %arg16[%c0_20, %c0_21, %c0_22, %c0_23] : memref<1x18x18x4xf32, #tpu.memory_space<vmem>>, vector<1x18x1x4xf32>
    tpu.vector_store %arg16[%c0_20, %c0_21, %c0_22, %c0_23], %18 {strides = array<i32>} : memref<1x18x18x4xf32, #tpu.memory_space<vmem>>, vector<1x18x1x4xf32>,
    %c0_24 = arith.constant 0 : index
    %c0_25 = arith.constant 0 : index
    %c17_26 = arith.constant 17 : index
    %c0_27 = arith.constant 0 : index
    %20 = vector.load %arg16[%c0_24, %c0_25, %c17_26, %c0_27] : memref<1x18x18x4xf32, #tpu.memory_space<vmem>>, vector<1x18x1x4xf32>
    tpu.vector_store %arg16[%c0_24, %c0_25, %c17_26, %c0_27], %18 {strides = array<i32>} : memref<1x18x18x4xf32, #tpu.memory_space<vmem>>, vector<1x18x1x4xf32>,
    %c0_28 = arith.constant 0 : index
    %c0_29 = arith.constant 0 : index
    %c0_30 = arith.constant 0 : index
    %c0_31 = arith.constant 0 : index
    %21 = tpu.strided_load %arg16[%c0_28, %c0_29, %c0_30, %c0_31] {strides = array<i32: 1, 2, 2, 1>} : memref<1x18x18x4xf32, #tpu.memory_space<vmem>>, vector<1x8x8x4xf32>
    %22 = vector.shape_cast %21 : vector<1x8x8x4xf32> to vector<64x4xf32>
    %c0_32 = arith.constant 0 : index
    %c0_33 = arith.constant 0 : index
    %23 = vector.load %arg18[%c0_32, %c0_33] : memref<64x72xf32, #tpu.memory_space<vmem>>, vector<64x4xf32>
    tpu.vector_store %arg18[%c0_32, %c0_33], %22 {strides = array<i32>} : memref<64x72xf32, #tpu.memory_space<vmem>>, vector<64x4xf32>,
    %c0_34 = arith.constant 0 : index
    %c0_35 = arith.constant 0 : index
    %c1_36 = arith.constant 1 : index
    %c0_37 = arith.constant 0 : index
    %24 = tpu.strided_load %arg16[%c0_34, %c0_35, %c1_36, %c0_37] {strides = array<i32: 1, 2, 2, 1>} : memref<1x18x18x4xf32, #tpu.memory_space<vmem>>, vector<1x8x8x4xf32>
    %25 = vector.shape_cast %24 : vector<1x8x8x4xf32> to vector<64x4xf32>
    %c0_38 = arith.constant 0 : index
    %c4 = arith.constant 4 : index
    %26 = vector.load %arg18[%c0_38, %c4] : memref<64x72xf32, #tpu.memory_space<vmem>>, vector<64x4xf32>
    tpu.vector_store %arg18[%c0_38, %c4], %25 {strides = array<i32>} : memref<64x72xf32, #tpu.memory_space<vmem>>, vector<64x4xf32>,
    %c0_39 = arith.constant 0 : index
    %c0_40 = arith.constant 0 : index
    %c2 = arith.constant 2 : index
    %c0_41 = arith.constant 0 : index
    %27 = tpu.strided_load %arg16[%c0_39, %c0_40, %c2, %c0_41] {strides = array<i32: 1, 2, 2, 1>} : memref<1x18x18x4xf32, #tpu.memory_space<vmem>>, vector<1x8x8x4xf32>
    %28 = vector.shape_cast %27 : vector<1x8x8x4xf32> to vector<64x4xf32>
    %c0_42 = arith.constant 0 : index
    %c8 = arith.constant 8 : index
    %29 = vector.load %arg18[%c0_42, %c8] : memref<64x72xf32, #tpu.memory_space<vmem>>, vector<64x4xf32>
    tpu.vector_store %arg18[%c0_42, %c8], %28 {strides = array<i32>} : memref<64x72xf32, #tpu.memory_space<vmem>>, vector<64x4xf32>,
    %c0_43 = arith.constant 0 : index
    %c1_44 = arith.constant 1 : index
    %c0_45 = arith.constant 0 : index
    %c0_46 = arith.constant 0 : index
    %30 = tpu.strided_load %arg16[%c0_43, %c1_44, %c0_45, %c0_46] {strides = array<i32: 1, 2, 2, 1>} : memref<1x18x18x4xf32, #tpu.memory_space<vmem>>, vector<1x8x8x4xf32>
    %31 = vector.shape_cast %30 : vector<1x8x8x4xf32> to vector<64x4xf32>
    %c0_47 = arith.constant 0 : index
    %c12 = arith.constant 12 : index
    %32 = vector.load %arg18[%c0_47, %c12] : memref<64x72xf32, #tpu.memory_space<vmem>>, vector<64x4xf32>
    tpu.vector_store %arg18[%c0_47, %c12], %31 {strides = array<i32>} : memref<64x72xf32, #tpu.memory_space<vmem>>, vector<64x4xf32>,
    %c0_48 = arith.constant 0 : index
    %c1_49 = arith.constant 1 : index
    %c1_50 = arith.constant 1 : index
    %c0_51 = arith.constant 0 : index
    %33 = tpu.strided_load %arg16[%c0_48, %c1_49, %c1_50, %c0_51] {strides = array<i32: 1, 2, 2, 1>} : memref<1x18x18x4xf32, #tpu.memory_space<vmem>>, vector<1x8x8x4xf32>
    %34 = vector.shape_cast %33 : vector<1x8x8x4xf32> to vector<64x4xf32>
    %c0_52 = arith.constant 0 : index
    %c16 = arith.constant 16 : index
    %35 = vector.load %arg18[%c0_52, %c16] : memref<64x72xf32, #tpu.memory_space<vmem>>, vector<64x4xf32>
    tpu.vector_store %arg18[%c0_52, %c16], %34 {strides = array<i32>} : memref<64x72xf32, #tpu.memory_space<vmem>>, vector<64x4xf32>,
    %c0_53 = arith.constant 0 : index
    %c1_54 = arith.constant 1 : index
    %c2_55 = arith.constant 2 : index
    %c0_56 = arith.constant 0 : index
    %36 = tpu.strided_load %arg16[%c0_53, %c1_54, %c2_55, %c0_56] {strides = array<i32: 1, 2, 2, 1>} : memref<1x18x18x4xf32, #tpu.memory_space<vmem>>, vector<1x8x8x4xf32>
    %37 = vector.shape_cast %36 : vector<1x8x8x4xf32> to vector<64x4xf32>
    %c0_57 = arith.constant 0 : index
    %c20 = arith.constant 20 : index
    %38 = vector.load %arg18[%c0_57, %c20] : memref<64x72xf32, #tpu.memory_space<vmem>>, vector<64x4xf32>
    tpu.vector_store %arg18[%c0_57, %c20], %37 {strides = array<i32>} : memref<64x72xf32, #tpu.memory_space<vmem>>, vector<64x4xf32>,
    %c0_58 = arith.constant 0 : index
    %c2_59 = arith.constant 2 : index
    %c0_60 = arith.constant 0 : index
    %c0_61 = arith.constant 0 : index
    %39 = tpu.strided_load %arg16[%c0_58, %c2_59, %c0_60, %c0_61] {strides = array<i32: 1, 2, 2, 1>} : memref<1x18x18x4xf32, #tpu.memory_space<vmem>>, vector<1x8x8x4xf32>
    %40 = vector.shape_cast %39 : vector<1x8x8x4xf32> to vector<64x4xf32>
    %c0_62 = arith.constant 0 : index
    %c24 = arith.constant 24 : index
    %41 = vector.load %arg18[%c0_62, %c24] : memref<64x72xf32, #tpu.memory_space<vmem>>, vector<64x4xf32>
    tpu.vector_store %arg18[%c0_62, %c24], %40 {strides = array<i32>} : memref<64x72xf32, #tpu.memory_space<vmem>>, vector<64x4xf32>,
    %c0_63 = arith.constant 0 : index
    %c2_64 = arith.constant 2 : index
    %c1_65 = arith.constant 1 : index
    %c0_66 = arith.constant 0 : index
    %42 = tpu.strided_load %arg16[%c0_63, %c2_64, %c1_65, %c0_66] {strides = array<i32: 1, 2, 2, 1>} : memref<1x18x18x4xf32, #tpu.memory_space<vmem>>, vector<1x8x8x4xf32>
    %43 = vector.shape_cast %42 : vector<1x8x8x4xf32> to vector<64x4xf32>
    %c0_67 = arith.constant 0 : index
    %c28 = arith.constant 28 : index
    %44 = vector.load %arg18[%c0_67, %c28] : memref<64x72xf32, #tpu.memory_space<vmem>>, vector<64x4xf32>
    tpu.vector_store %arg18[%c0_67, %c28], %43 {strides = array<i32>} : memref<64x72xf32, #tpu.memory_space<vmem>>, vector<64x4xf32>,
    %c0_68 = arith.constant 0 : index
    %c2_69 = arith.constant 2 : index
    %c2_70 = arith.constant 2 : index
    %c0_71 = arith.constant 0 : index
    %45 = tpu.strided_load %arg16[%c0_68, %c2_69, %c2_70, %c0_71] {strides = array<i32: 1, 2, 2, 1>} : memref<1x18x18x4xf32, #tpu.memory_space<vmem>>, vector<1x8x8x4xf32>
    %46 = vector.shape_cast %45 : vector<1x8x8x4xf32> to vector<64x4xf32>
    %c0_72 = arith.constant 0 : index
    %c32 = arith.constant 32 : index
    %47 = vector.load %arg18[%c0_72, %c32] : memref<64x72xf32, #tpu.memory_space<vmem>>, vector<64x4xf32>
    tpu.vector_store %arg18[%c0_72, %c32], %46 {strides = array<i32>} : memref<64x72xf32, #tpu.memory_space<vmem>>, vector<64x4xf32>,
    %c0_73 = arith.constant 0 : index
    %c0_74 = arith.constant 0 : index
    %48 = vector.load %arg18[%c0_73, %c0_74] : memref<64x72xf32, #tpu.memory_space<vmem>>, vector<64x36xf32>
    %49 = arith.truncf %48 : vector<64x36xf32> to vector<64x36xbf16>
    %c0_75 = arith.constant 0 : index
    %c0_76 = arith.constant 0 : index
    %50 = vector.load %arg4[%c0_75, %c0_76] : memref<36x8xbf16, #tpu.memory_space<vmem>>, vector<36x8xbf16>
    %cst_77 = arith.constant dense<0.000000e+00> : vector<64x8xf32>
    %51 = tpu.matmul %49, %50, %cst_77 {dimension_numbers = #tpu.dot_dimension_numbers<[1], [0], [0], [1], [0, 0, 1, 1], [], []>} : vector<64x36xbf16>, vector<36x8xbf16>, vector<64x8xf32> -> vector<64x8xf32>
    %c0_78 = arith.constant 0 : index
    %c1_79 = arith.constant 1 : index
    %c1_80 = arith.constant 1 : index
    %c0_81 = arith.constant 0 : index
    %52 = tpu.strided_load %arg16[%c0_78, %c1_79, %c1_80, %c0_81] {strides = array<i32: 1, 2, 2, 1>} : memref<1x18x18x4xf32, #tpu.memory_space<vmem>>, vector<1x8x8x4xf32>
    %53 = vector.shape_cast %52 : vector<1x8x8x4xf32> to vector<64x4xf32>
    %c0_82 = arith.constant 0 : index
    %c0_83 = arith.constant 0 : index
    %54 = vector.load %arg8[%c0_82, %c0_83] : memref<4x8xf32, #tpu.memory_space<vmem>>, vector<4x8xf32>
    %cst_84 = arith.constant dense<0.000000e+00> : vector<64x8xf32>
    %55 = tpu.matmul %53, %54, %cst_84 {dimension_numbers = #tpu.dot_dimension_numbers<[1], [0], [0], [1], [0, 0, 1, 1], [], []>} : vector<64x4xf32>, vector<4x8xf32>, vector<64x8xf32> -> vector<64x8xf32>
    %c0_85 = arith.constant 0 : index
    %c0_86 = arith.constant 0 : index
    %56 = vector.load %arg5[%c0_85, %c0_86] : memref<1x8xf32, #tpu.memory_space<vmem>>, vector<1x8xf32>
    %57 = vector.broadcast %56 : vector<1x8xf32> to vector<64x8xf32>
    %58 = arith.mulf %51, %57 : vector<64x8xf32>
    %c0_87 = arith.constant 0 : index
    %c0_88 = arith.constant 0 : index
    %59 = vector.load %arg6[%c0_87, %c0_88] : memref<1x8xf32, #tpu.memory_space<vmem>>, vector<1x8xf32>
    %60 = vector.broadcast %59 : vector<1x8xf32> to vector<64x8xf32>
    %61 = arith.addf %58, %60 : vector<64x8xf32>
    %cst_89 = arith.constant 0.000000e+00 : f32
    %62 = vector.broadcast %cst_89 : f32 to vector<64x8xf32>
    %63 = arith.cmpf ogt, %61, %62 : vector<64x8xf32>
    %cst_90 = arith.constant 1.000000e-01 : f32
    %64 = vector.broadcast %cst_90 : f32 to vector<64x8xf32>
    %65 = arith.mulf %64, %61 : vector<64x8xf32>
    %66 = arith.select %63, %61, %65 : vector<64x8xi1>, vector<64x8xf32>
    %67 = vector.shape_cast %66 : vector<64x8xf32> to vector<1x8x8x8xf32>
    %c0_91 = arith.constant 0 : index
    %c1_92 = arith.constant 1 : index
    %c1_93 = arith.constant 1 : index
    %c0_94 = arith.constant 0 : index
    %68 = vector.load %arg17[%c0_91, %c1_92, %c1_93, %c0_94] : memref<1x10x10x8xf32, #tpu.memory_space<vmem>>, vector<1x8x8x8xf32>
    tpu.vector_store %arg17[%c0_91, %c1_92, %c1_93, %c0_94], %67 {strides = array<i32>} : memref<1x10x10x8xf32, #tpu.memory_space<vmem>>, vector<1x8x8x8xf32>,
    %cst_95 = arith.constant 0.000000e+00 : f32
    %69 = vector.broadcast %cst_95 : f32 to vector<1x1x10x8xf32>
    %c0_96 = arith.constant 0 : index
    %c0_97 = arith.constant 0 : index
    %c0_98 = arith.constant 0 : index
    %c0_99 = arith.constant 0 : index
    %70 = vector.load %arg17[%c0_96, %c0_97, %c0_98, %c0_99] : memref<1x10x10x8xf32, #tpu.memory_space<vmem>>, vector<1x1x10x8xf32>
    tpu.vector_store %arg17[%c0_96, %c0_97, %c0_98, %c0_99], %69 {strides = array<i32>} : memref<1x10x10x8xf32, #tpu.memory_space<vmem>>, vector<1x1x10x8xf32>,
    %c0_100 = arith.constant 0 : index
    %c9 = arith.constant 9 : index
    %c0_101 = arith.constant 0 : index
    %c0_102 = arith.constant 0 : index
    %71 = vector.load %arg17[%c0_100, %c9, %c0_101, %c0_102] : memref<1x10x10x8xf32, #tpu.memory_space<vmem>>, vector<1x1x10x8xf32>
    tpu.vector_store %arg17[%c0_100, %c9, %c0_101, %c0_102], %69 {strides = array<i32>} : memref<1x10x10x8xf32, #tpu.memory_space<vmem>>, vector<1x1x10x8xf32>,
    %cst_103 = arith.constant 0.000000e+00 : f32
    %72 = vector.broadcast %cst_103 : f32 to vector<1x10x1x8xf32>
    %c0_104 = arith.constant 0 : index
    %c0_105 = arith.constant 0 : index
    %c0_106 = arith.constant 0 : index
    %c0_107 = arith.constant 0 : index
    %73 = vector.load %arg17[%c0_104, %c0_105, %c0_106, %c0_107] : memref<1x10x10x8xf32, #tpu.memory_space<vmem>>, vector<1x10x1x8xf32>
    tpu.vector_store %arg17[%c0_104, %c0_105, %c0_106, %c0_107], %72 {strides = array<i32>} : memref<1x10x10x8xf32, #tpu.memory_space<vmem>>, vector<1x10x1x8xf32>,
    %c0_108 = arith.constant 0 : index
    %c0_109 = arith.constant 0 : index
    %c9_110 = arith.constant 9 : index
    %c0_111 = arith.constant 0 : index
    %74 = vector.load %arg17[%c0_108, %c0_109, %c9_110, %c0_111] : memref<1x10x10x8xf32, #tpu.memory_space<vmem>>, vector<1x10x1x8xf32>
    tpu.vector_store %arg17[%c0_108, %c0_109, %c9_110, %c0_111], %72 {strides = array<i32>} : memref<1x10x10x8xf32, #tpu.memory_space<vmem>>, vector<1x10x1x8xf32>,
    %c0_112 = arith.constant 0 : index
    %c0_113 = arith.constant 0 : index
    %c0_114 = arith.constant 0 : index
    %c0_115 = arith.constant 0 : index
    %75 = vector.load %arg17[%c0_112, %c0_113, %c0_114, %c0_115] : memref<1x10x10x8xf32, #tpu.memory_space<vmem>>, vector<1x8x8x8xf32>
    %76 = vector.shape_cast %75 : vector<1x8x8x8xf32> to vector<64x8xf32>
    %c0_116 = arith.constant 0 : index
    %c0_117 = arith.constant 0 : index
    %77 = vector.load %arg18[%c0_116, %c0_117] : memref<64x72xf32, #tpu.memory_space<vmem>>, vector<64x8xf32>
    tpu.vector_store %arg18[%c0_116, %c0_117], %76 {strides = array<i32>} : memref<64x72xf32, #tpu.memory_space<vmem>>, vector<64x8xf32>,
    %c0_118 = arith.constant 0 : index
    %c0_119 = arith.constant 0 : index
    %c1_120 = arith.constant 1 : index
    %c0_121 = arith.constant 0 : index
    %78 = vector.load %arg17[%c0_118, %c0_119, %c1_120, %c0_121] : memref<1x10x10x8xf32, #tpu.memory_space<vmem>>, vector<1x8x8x8xf32>
    %79 = vector.shape_cast %78 : vector<1x8x8x8xf32> to vector<64x8xf32>
    %c0_122 = arith.constant 0 : index
    %c8_123 = arith.constant 8 : index
    %80 = vector.load %arg18[%c0_122, %c8_123] : memref<64x72xf32, #tpu.memory_space<vmem>>, vector<64x8xf32>
    tpu.vector_store %arg18[%c0_122, %c8_123], %79 {strides = array<i32>} : memref<64x72xf32, #tpu.memory_space<vmem>>, vector<64x8xf32>,
    %c0_124 = arith.constant 0 : index
    %c0_125 = arith.constant 0 : index
    %c2_126 = arith.constant 2 : index
    %c0_127 = arith.constant 0 : index
    %81 = vector.load %arg17[%c0_124, %c0_125, %c2_126, %c0_127] : memref<1x10x10x8xf32, #tpu.memory_space<vmem>>, vector<1x8x8x8xf32>
    %82 = vector.shape_cast %81 : vector<1x8x8x8xf32> to vector<64x8xf32>
    %c0_128 = arith.constant 0 : index
    %c16_129 = arith.constant 16 : index
    %83 = vector.load %arg18[%c0_128, %c16_129] : memref<64x72xf32, #tpu.memory_space<vmem>>, vector<64x8xf32>
    tpu.vector_store %arg18[%c0_128, %c16_129], %82 {strides = array<i32>} : memref<64x72xf32, #tpu.memory_space<vmem>>, vector<64x8xf32>,
    %c0_130 = arith.constant 0 : index
    %c1_131 = arith.constant 1 : index
    %c0_132 = arith.constant 0 : index
    %c0_133 = arith.constant 0 : index
    %84 = vector.load %arg17[%c0_130, %c1_131, %c0_132, %c0_133] : memref<1x10x10x8xf32, #tpu.memory_space<vmem>>, vector<1x8x8x8xf32>
    %85 = vector.shape_cast %84 : vector<1x8x8x8xf32> to vector<64x8xf32>
    %c0_134 = arith.constant 0 : index
    %c24_135 = arith.constant 24 : index
    %86 = vector.load %arg18[%c0_134, %c24_135] : memref<64x72xf32, #tpu.memory_space<vmem>>, vector<64x8xf32>
    tpu.vector_store %arg18[%c0_134, %c24_135], %85 {strides = array<i32>} : memref<64x72xf32, #tpu.memory_space<vmem>>, vector<64x8xf32>,
    %c0_136 = arith.constant 0 : index
    %c1_137 = arith.constant 1 : index
    %c1_138 = arith.constant 1 : index
    %c0_139 = arith.constant 0 : index
    %87 = vector.load %arg17[%c0_136, %c1_137, %c1_138, %c0_139] : memref<1x10x10x8xf32, #tpu.memory_space<vmem>>, vector<1x8x8x8xf32>
    %88 = vector.shape_cast %87 : vector<1x8x8x8xf32> to vector<64x8xf32>
    %c0_140 = arith.constant 0 : index
    %c32_141 = arith.constant 32 : index
    %89 = vector.load %arg18[%c0_140, %c32_141] : memref<64x72xf32, #tpu.memory_space<vmem>>, vector<64x8xf32>
    tpu.vector_store %arg18[%c0_140, %c32_141], %88 {strides = array<i32>} : memref<64x72xf32, #tpu.memory_space<vmem>>, vector<64x8xf32>,
    %c0_142 = arith.constant 0 : index
    %c1_143 = arith.constant 1 : index
    %c2_144 = arith.constant 2 : index
    %c0_145 = arith.constant 0 : index
    %90 = vector.load %arg17[%c0_142, %c1_143, %c2_144, %c0_145] : memref<1x10x10x8xf32, #tpu.memory_space<vmem>>, vector<1x8x8x8xf32>
    %91 = vector.shape_cast %90 : vector<1x8x8x8xf32> to vector<64x8xf32>
    %c0_146 = arith.constant 0 : index
    %c40 = arith.constant 40 : index
    %92 = vector.load %arg18[%c0_146, %c40] : memref<64x72xf32, #tpu.memory_space<vmem>>, vector<64x8xf32>
    tpu.vector_store %arg18[%c0_146, %c40], %91 {strides = array<i32>} : memref<64x72xf32, #tpu.memory_space<vmem>>, vector<64x8xf32>,
    %c0_147 = arith.constant 0 : index
    %c2_148 = arith.constant 2 : index
    %c0_149 = arith.constant 0 : index
    %c0_150 = arith.constant 0 : index
    %93 = vector.load %arg17[%c0_147, %c2_148, %c0_149, %c0_150] : memref<1x10x10x8xf32, #tpu.memory_space<vmem>>, vector<1x8x8x8xf32>
    %94 = vector.shape_cast %93 : vector<1x8x8x8xf32> to vector<64x8xf32>
    %c0_151 = arith.constant 0 : index
    %c48 = arith.constant 48 : index
    %95 = vector.load %arg18[%c0_151, %c48] : memref<64x72xf32, #tpu.memory_space<vmem>>, vector<64x8xf32>
    tpu.vector_store %arg18[%c0_151, %c48], %94 {strides = array<i32>} : memref<64x72xf32, #tpu.memory_space<vmem>>, vector<64x8xf32>,
    %c0_152 = arith.constant 0 : index
    %c2_153 = arith.constant 2 : index
    %c1_154 = arith.constant 1 : index
    %c0_155 = arith.constant 0 : index
    %96 = vector.load %arg17[%c0_152, %c2_153, %c1_154, %c0_155] : memref<1x10x10x8xf32, #tpu.memory_space<vmem>>, vector<1x8x8x8xf32>
    %97 = vector.shape_cast %96 : vector<1x8x8x8xf32> to vector<64x8xf32>
    %c0_156 = arith.constant 0 : index
    %c56 = arith.constant 56 : index
    %98 = vector.load %arg18[%c0_156, %c56] : memref<64x72xf32, #tpu.memory_space<vmem>>, vector<64x8xf32>
    tpu.vector_store %arg18[%c0_156, %c56], %97 {strides = array<i32>} : memref<64x72xf32, #tpu.memory_space<vmem>>, vector<64x8xf32>,
    %c0_157 = arith.constant 0 : index
    %c2_158 = arith.constant 2 : index
    %c2_159 = arith.constant 2 : index
    %c0_160 = arith.constant 0 : index
    %99 = vector.load %arg17[%c0_157, %c2_158, %c2_159, %c0_160] : memref<1x10x10x8xf32, #tpu.memory_space<vmem>>, vector<1x8x8x8xf32>
    %100 = vector.shape_cast %99 : vector<1x8x8x8xf32> to vector<64x8xf32>
    %c0_161 = arith.constant 0 : index
    %c64 = arith.constant 64 : index
    %101 = vector.load %arg18[%c0_161, %c64] : memref<64x72xf32, #tpu.memory_space<vmem>>, vector<64x8xf32>
    tpu.vector_store %arg18[%c0_161, %c64], %100 {strides = array<i32>} : memref<64x72xf32, #tpu.memory_space<vmem>>, vector<64x8xf32>,
    %c0_162 = arith.constant 0 : index
    %c0_163 = arith.constant 0 : index
    %102 = vector.load %arg18[%c0_162, %c0_163] : memref<64x72xf32, #tpu.memory_space<vmem>>, vector<64x72xf32>
    %103 = arith.truncf %102 : vector<64x72xf32> to vector<64x72xbf16>
    %c0_164 = arith.constant 0 : index
    %c0_165 = arith.constant 0 : index
    %104 = vector.load %arg7[%c0_164, %c0_165] : memref<72x8xbf16, #tpu.memory_space<vmem>>, vector<72x8xbf16>
    %cst_166 = arith.constant dense<0.000000e+00> : vector<64x8xf32>
    %105 = tpu.matmul %103, %104, %cst_166 {dimension_numbers = #tpu.dot_dimension_numbers<[1], [0], [0], [1], [0, 0, 1, 1], [], []>} : vector<64x72xbf16>, vector<72x8xbf16>, vector<64x8xf32> -> vector<64x8xf32>
    %106 = arith.addf %105, %55 : vector<64x8xf32>
    %107 = vector.shape_cast %106 : vector<64x8xf32> to vector<1x8x8x8xf32>
    %c0_167 = arith.constant 0 : index
    %c0_168 = arith.constant 0 : index
    %108 = vector.load %arg9[%c0_167, %c0_168] : memref<1x8xf32, #tpu.memory_space<vmem>>, vector<1x8xf32>
    %109 = vector.shape_cast %108 : vector<1x8xf32> to vector<1x1x1x8xf32>
    %110 = vector.broadcast %109 : vector<1x1x1x8xf32> to vector<1x8x8x8xf32>
    %111 = arith.mulf %107, %110 : vector<1x8x8x8xf32>
    %c0_169 = arith.constant 0 : index
    %c0_170 = arith.constant 0 : index
    %112 = vector.load %arg10[%c0_169, %c0_170] : memref<1x8xf32, #tpu.memory_space<vmem>>, vector<1x8xf32>
    %113 = vector.shape_cast %112 : vector<1x8xf32> to vector<1x1x1x8xf32>
    %114 = vector.broadcast %113 : vector<1x1x1x8xf32> to vector<1x8x8x8xf32>
    %115 = arith.addf %111, %114 : vector<1x8x8x8xf32>
    %cst_171 = arith.constant 0.000000e+00 : f32
    %116 = vector.broadcast %cst_171 : f32 to vector<1x8x8x8xf32>
    %117 = arith.cmpf ogt, %115, %116 : vector<1x8x8x8xf32>
    %cst_172 = arith.constant 1.000000e-01 : f32
    %118 = vector.broadcast %cst_172 : f32 to vector<1x8x8x8xf32>
    %119 = arith.mulf %118, %115 : vector<1x8x8x8xf32>
    %120 = arith.select %117, %115, %119 : vector<1x8x8x8xi1>, vector<1x8x8x8xf32>
    %c0_173 = arith.constant 0 : index
    %c1_174 = arith.constant 1 : index
    %c1_175 = arith.constant 1 : index
    %c0_176 = arith.constant 0 : index
    %121 = vector.load %arg17[%c0_173, %c1_174, %c1_175, %c0_176] : memref<1x10x10x8xf32, #tpu.memory_space<vmem>>, vector<1x8x8x8xf32>
    tpu.vector_store %arg17[%c0_173, %c1_174, %c1_175, %c0_176], %120 {strides = array<i32>} : memref<1x10x10x8xf32, #tpu.memory_space<vmem>>, vector<1x8x8x8xf32>,
    %cst_177 = arith.constant 0.000000e+00 : f32
    %122 = vector.broadcast %cst_177 : f32 to vector<1x1x10x8xf32>
    %c0_178 = arith.constant 0 : index
    %c0_179 = arith.constant 0 : index
    %c0_180 = arith.constant 0 : index
    %c0_181 = arith.constant 0 : index
    %123 = vector.load %arg17[%c0_178, %c0_179, %c0_180, %c0_181] : memref<1x10x10x8xf32, #tpu.memory_space<vmem>>, vector<1x1x10x8xf32>
    tpu.vector_store %arg17[%c0_178, %c0_179, %c0_180, %c0_181], %122 {strides = array<i32>} : memref<1x10x10x8xf32, #tpu.memory_space<vmem>>, vector<1x1x10x8xf32>,
    %c0_182 = arith.constant 0 : index
    %c9_183 = arith.constant 9 : index
    %c0_184 = arith.constant 0 : index
    %c0_185 = arith.constant 0 : index
    %124 = vector.load %arg17[%c0_182, %c9_183, %c0_184, %c0_185] : memref<1x10x10x8xf32, #tpu.memory_space<vmem>>, vector<1x1x10x8xf32>
    tpu.vector_store %arg17[%c0_182, %c9_183, %c0_184, %c0_185], %122 {strides = array<i32>} : memref<1x10x10x8xf32, #tpu.memory_space<vmem>>, vector<1x1x10x8xf32>,
    %cst_186 = arith.constant 0.000000e+00 : f32
    %125 = vector.broadcast %cst_186 : f32 to vector<1x10x1x8xf32>
    %c0_187 = arith.constant 0 : index
    %c0_188 = arith.constant 0 : index
    %c0_189 = arith.constant 0 : index
    %c0_190 = arith.constant 0 : index
    %126 = vector.load %arg17[%c0_187, %c0_188, %c0_189, %c0_190] : memref<1x10x10x8xf32, #tpu.memory_space<vmem>>, vector<1x10x1x8xf32>
    tpu.vector_store %arg17[%c0_187, %c0_188, %c0_189, %c0_190], %125 {strides = array<i32>} : memref<1x10x10x8xf32, #tpu.memory_space<vmem>>, vector<1x10x1x8xf32>,
    %c0_191 = arith.constant 0 : index
    %c0_192 = arith.constant 0 : index
    %c9_193 = arith.constant 9 : index
    %c0_194 = arith.constant 0 : index
    %127 = vector.load %arg17[%c0_191, %c0_192, %c9_193, %c0_194] : memref<1x10x10x8xf32, #tpu.memory_space<vmem>>, vector<1x10x1x8xf32>
    tpu.vector_store %arg17[%c0_191, %c0_192, %c9_193, %c0_194], %125 {strides = array<i32>} : memref<1x10x10x8xf32, #tpu.memory_space<vmem>>, vector<1x10x1x8xf32>,
    %c0_195 = arith.constant 0 : index
    %c0_196 = arith.constant 0 : index
    %c0_197 = arith.constant 0 : index
    %c0_198 = arith.constant 0 : index
    %128 = vector.load %arg17[%c0_195, %c0_196, %c0_197, %c0_198] : memref<1x10x10x8xf32, #tpu.memory_space<vmem>>, vector<1x8x8x8xf32>
    %129 = vector.shape_cast %128 : vector<1x8x8x8xf32> to vector<64x8xf32>
    %c0_199 = arith.constant 0 : index
    %c0_200 = arith.constant 0 : index
    %130 = vector.load %arg18[%c0_199, %c0_200] : memref<64x72xf32, #tpu.memory_space<vmem>>, vector<64x8xf32>
    tpu.vector_store %arg18[%c0_199, %c0_200], %129 {strides = array<i32>} : memref<64x72xf32, #tpu.memory_space<vmem>>, vector<64x8xf32>,
    %c0_201 = arith.constant 0 : index
    %c0_202 = arith.constant 0 : index
    %c1_203 = arith.constant 1 : index
    %c0_204 = arith.constant 0 : index
    %131 = vector.load %arg17[%c0_201, %c0_202, %c1_203, %c0_204] : memref<1x10x10x8xf32, #tpu.memory_space<vmem>>, vector<1x8x8x8xf32>
    %132 = vector.shape_cast %131 : vector<1x8x8x8xf32> to vector<64x8xf32>
    %c0_205 = arith.constant 0 : index
    %c8_206 = arith.constant 8 : index
    %133 = vector.load %arg18[%c0_205, %c8_206] : memref<64x72xf32, #tpu.memory_space<vmem>>, vector<64x8xf32>
    tpu.vector_store %arg18[%c0_205, %c8_206], %132 {strides = array<i32>} : memref<64x72xf32, #tpu.memory_space<vmem>>, vector<64x8xf32>,
    %c0_207 = arith.constant 0 : index
    %c0_208 = arith.constant 0 : index
    %c2_209 = arith.constant 2 : index
    %c0_210 = arith.constant 0 : index
    %134 = vector.load %arg17[%c0_207, %c0_208, %c2_209, %c0_210] : memref<1x10x10x8xf32, #tpu.memory_space<vmem>>, vector<1x8x8x8xf32>
    %135 = vector.shape_cast %134 : vector<1x8x8x8xf32> to vector<64x8xf32>
    %c0_211 = arith.constant 0 : index
    %c16_212 = arith.constant 16 : index
    %136 = vector.load %arg18[%c0_211, %c16_212] : memref<64x72xf32, #tpu.memory_space<vmem>>, vector<64x8xf32>
    tpu.vector_store %arg18[%c0_211, %c16_212], %135 {strides = array<i32>} : memref<64x72xf32, #tpu.memory_space<vmem>>, vector<64x8xf32>,
    %c0_213 = arith.constant 0 : index
    %c1_214 = arith.constant 1 : index
    %c0_215 = arith.constant 0 : index
    %c0_216 = arith.constant 0 : index
    %137 = vector.load %arg17[%c0_213, %c1_214, %c0_215, %c0_216] : memref<1x10x10x8xf32, #tpu.memory_space<vmem>>, vector<1x8x8x8xf32>
    %138 = vector.shape_cast %137 : vector<1x8x8x8xf32> to vector<64x8xf32>
    %c0_217 = arith.constant 0 : index
    %c24_218 = arith.constant 24 : index
    %139 = vector.load %arg18[%c0_217, %c24_218] : memref<64x72xf32, #tpu.memory_space<vmem>>, vector<64x8xf32>
    tpu.vector_store %arg18[%c0_217, %c24_218], %138 {strides = array<i32>} : memref<64x72xf32, #tpu.memory_space<vmem>>, vector<64x8xf32>,
    %c0_219 = arith.constant 0 : index
    %c1_220 = arith.constant 1 : index
    %c1_221 = arith.constant 1 : index
    %c0_222 = arith.constant 0 : index
    %140 = vector.load %arg17[%c0_219, %c1_220, %c1_221, %c0_222] : memref<1x10x10x8xf32, #tpu.memory_space<vmem>>, vector<1x8x8x8xf32>
    %141 = vector.shape_cast %140 : vector<1x8x8x8xf32> to vector<64x8xf32>
    %c0_223 = arith.constant 0 : index
    %c32_224 = arith.constant 32 : index
    %142 = vector.load %arg18[%c0_223, %c32_224] : memref<64x72xf32, #tpu.memory_space<vmem>>, vector<64x8xf32>
    tpu.vector_store %arg18[%c0_223, %c32_224], %141 {strides = array<i32>} : memref<64x72xf32, #tpu.memory_space<vmem>>, vector<64x8xf32>,
    %c0_225 = arith.constant 0 : index
    %c1_226 = arith.constant 1 : index
    %c2_227 = arith.constant 2 : index
    %c0_228 = arith.constant 0 : index
    %143 = vector.load %arg17[%c0_225, %c1_226, %c2_227, %c0_228] : memref<1x10x10x8xf32, #tpu.memory_space<vmem>>, vector<1x8x8x8xf32>
    %144 = vector.shape_cast %143 : vector<1x8x8x8xf32> to vector<64x8xf32>
    %c0_229 = arith.constant 0 : index
    %c40_230 = arith.constant 40 : index
    %145 = vector.load %arg18[%c0_229, %c40_230] : memref<64x72xf32, #tpu.memory_space<vmem>>, vector<64x8xf32>
    tpu.vector_store %arg18[%c0_229, %c40_230], %144 {strides = array<i32>} : memref<64x72xf32, #tpu.memory_space<vmem>>, vector<64x8xf32>,
    %c0_231 = arith.constant 0 : index
    %c2_232 = arith.constant 2 : index
    %c0_233 = arith.constant 0 : index
    %c0_234 = arith.constant 0 : index
    %146 = vector.load %arg17[%c0_231, %c2_232, %c0_233, %c0_234] : memref<1x10x10x8xf32, #tpu.memory_space<vmem>>, vector<1x8x8x8xf32>
    %147 = vector.shape_cast %146 : vector<1x8x8x8xf32> to vector<64x8xf32>
    %c0_235 = arith.constant 0 : index
    %c48_236 = arith.constant 48 : index
    %148 = vector.load %arg18[%c0_235, %c48_236] : memref<64x72xf32, #tpu.memory_space<vmem>>, vector<64x8xf32>
    tpu.vector_store %arg18[%c0_235, %c48_236], %147 {strides = array<i32>} : memref<64x72xf32, #tpu.memory_space<vmem>>, vector<64x8xf32>,
    %c0_237 = arith.constant 0 : index
    %c2_238 = arith.constant 2 : index
    %c1_239 = arith.constant 1 : index
    %c0_240 = arith.constant 0 : index
    %149 = vector.load %arg17[%c0_237, %c2_238, %c1_239, %c0_240] : memref<1x10x10x8xf32, #tpu.memory_space<vmem>>, vector<1x8x8x8xf32>
    %150 = vector.shape_cast %149 : vector<1x8x8x8xf32> to vector<64x8xf32>
    %c0_241 = arith.constant 0 : index
    %c56_242 = arith.constant 56 : index
    %151 = vector.load %arg18[%c0_241, %c56_242] : memref<64x72xf32, #tpu.memory_space<vmem>>, vector<64x8xf32>
    tpu.vector_store %arg18[%c0_241, %c56_242], %150 {strides = array<i32>} : memref<64x72xf32, #tpu.memory_space<vmem>>, vector<64x8xf32>,
    %c0_243 = arith.constant 0 : index
    %c2_244 = arith.constant 2 : index
    %c2_245 = arith.constant 2 : index
    %c0_246 = arith.constant 0 : index
    %152 = vector.load %arg17[%c0_243, %c2_244, %c2_245, %c0_246] : memref<1x10x10x8xf32, #tpu.memory_space<vmem>>, vector<1x8x8x8xf32>
    %153 = vector.shape_cast %152 : vector<1x8x8x8xf32> to vector<64x8xf32>
    %c0_247 = arith.constant 0 : index
    %c64_248 = arith.constant 64 : index
    %154 = vector.load %arg18[%c0_247, %c64_248] : memref<64x72xf32, #tpu.memory_space<vmem>>, vector<64x8xf32>
    tpu.vector_store %arg18[%c0_247, %c64_248], %153 {strides = array<i32>} : memref<64x72xf32, #tpu.memory_space<vmem>>, vector<64x8xf32>,
    %c0_249 = arith.constant 0 : index
    %c0_250 = arith.constant 0 : index
    %155 = vector.load %arg18[%c0_249, %c0_250] : memref<64x72xf32, #tpu.memory_space<vmem>>, vector<64x72xf32>
    %156 = arith.truncf %155 : vector<64x72xf32> to vector<64x72xbf16>
    %c0_251 = arith.constant 0 : index
    %c0_252 = arith.constant 0 : index
    %157 = vector.load %arg11[%c0_251, %c0_252] : memref<72x8xbf16, #tpu.memory_space<vmem>>, vector<72x8xbf16>
    %cst_253 = arith.constant dense<0.000000e+00> : vector<64x8xf32>
    %158 = tpu.matmul %156, %157, %cst_253 {dimension_numbers = #tpu.dot_dimension_numbers<[1], [0], [0], [1], [0, 0, 1, 1], [], []>} : vector<64x72xbf16>, vector<72x8xbf16>, vector<64x8xf32> -> vector<64x8xf32>
    %159 = vector.shape_cast %107 : vector<1x8x8x8xf32> to vector<64x8xf32>
    %c0_254 = arith.constant 0 : index
    %c0_255 = arith.constant 0 : index
    %160 = vector.load %arg12[%c0_254, %c0_255] : memref<1x8xf32, #tpu.memory_space<vmem>>, vector<1x8xf32>
    %161 = vector.broadcast %160 : vector<1x8xf32> to vector<64x8xf32>
    %162 = arith.mulf %158, %161 : vector<64x8xf32>
    %c0_256 = arith.constant 0 : index
    %c0_257 = arith.constant 0 : index
    %163 = vector.load %arg13[%c0_256, %c0_257] : memref<1x8xf32, #tpu.memory_space<vmem>>, vector<1x8xf32>
    %164 = vector.broadcast %163 : vector<1x8xf32> to vector<64x8xf32>
    %165 = arith.addf %162, %164 : vector<64x8xf32>
    %cst_258 = arith.constant 0.000000e+00 : f32
    %166 = vector.broadcast %cst_258 : f32 to vector<64x8xf32>
    %167 = arith.cmpf ogt, %165, %166 : vector<64x8xf32>
    %cst_259 = arith.constant 1.000000e-01 : f32
    %168 = vector.broadcast %cst_259 : f32 to vector<64x8xf32>
    %169 = arith.mulf %168, %165 : vector<64x8xf32>
    %170 = arith.select %167, %165, %169 : vector<64x8xi1>, vector<64x8xf32>
    %171 = vector.shape_cast %170 : vector<64x8xf32> to vector<1x8x8x8xf32>
    %c0_260 = arith.constant 0 : index
    %c1_261 = arith.constant 1 : index
    %c1_262 = arith.constant 1 : index
    %c0_263 = arith.constant 0 : index
    %172 = vector.load %arg17[%c0_260, %c1_261, %c1_262, %c0_263] : memref<1x10x10x8xf32, #tpu.memory_space<vmem>>, vector<1x8x8x8xf32>
    tpu.vector_store %arg17[%c0_260, %c1_261, %c1_262, %c0_263], %171 {strides = array<i32>} : memref<1x10x10x8xf32, #tpu.memory_space<vmem>>, vector<1x8x8x8xf32>,
    %cst_264 = arith.constant 0.000000e+00 : f32
    %173 = vector.broadcast %cst_264 : f32 to vector<1x1x10x8xf32>
    %c0_265 = arith.constant 0 : index
    %c0_266 = arith.constant 0 : index
    %c0_267 = arith.constant 0 : index
    %c0_268 = arith.constant 0 : index
    %174 = vector.load %arg17[%c0_265, %c0_266, %c0_267, %c0_268] : memref<1x10x10x8xf32, #tpu.memory_space<vmem>>, vector<1x1x10x8xf32>
    tpu.vector_store %arg17[%c0_265, %c0_266, %c0_267, %c0_268], %173 {strides = array<i32>} : memref<1x10x10x8xf32, #tpu.memory_space<vmem>>, vector<1x1x10x8xf32>,
    %c0_269 = arith.constant 0 : index
    %c9_270 = arith.constant 9 : index
    %c0_271 = arith.constant 0 : index
    %c0_272 = arith.constant 0 : index
    %175 = vector.load %arg17[%c0_269, %c9_270, %c0_271, %c0_272] : memref<1x10x10x8xf32, #tpu.memory_space<vmem>>, vector<1x1x10x8xf32>
    tpu.vector_store %arg17[%c0_269, %c9_270, %c0_271, %c0_272], %173 {strides = array<i32>} : memref<1x10x10x8xf32, #tpu.memory_space<vmem>>, vector<1x1x10x8xf32>,
    %cst_273 = arith.constant 0.000000e+00 : f32
    %176 = vector.broadcast %cst_273 : f32 to vector<1x10x1x8xf32>
    %c0_274 = arith.constant 0 : index
    %c0_275 = arith.constant 0 : index
    %c0_276 = arith.constant 0 : index
    %c0_277 = arith.constant 0 : index
    %177 = vector.load %arg17[%c0_274, %c0_275, %c0_276, %c0_277] : memref<1x10x10x8xf32, #tpu.memory_space<vmem>>, vector<1x10x1x8xf32>
    tpu.vector_store %arg17[%c0_274, %c0_275, %c0_276, %c0_277], %176 {strides = array<i32>} : memref<1x10x10x8xf32, #tpu.memory_space<vmem>>, vector<1x10x1x8xf32>,
    %c0_278 = arith.constant 0 : index
    %c0_279 = arith.constant 0 : index
    %c9_280 = arith.constant 9 : index
    %c0_281 = arith.constant 0 : index
    %178 = vector.load %arg17[%c0_278, %c0_279, %c9_280, %c0_281] : memref<1x10x10x8xf32, #tpu.memory_space<vmem>>, vector<1x10x1x8xf32>
    tpu.vector_store %arg17[%c0_278, %c0_279, %c9_280, %c0_281], %176 {strides = array<i32>} : memref<1x10x10x8xf32, #tpu.memory_space<vmem>>, vector<1x10x1x8xf32>,
    %c0_282 = arith.constant 0 : index
    %c0_283 = arith.constant 0 : index
    %c0_284 = arith.constant 0 : index
    %c0_285 = arith.constant 0 : index
    %179 = vector.load %arg17[%c0_282, %c0_283, %c0_284, %c0_285] : memref<1x10x10x8xf32, #tpu.memory_space<vmem>>, vector<1x8x8x8xf32>
    %180 = vector.shape_cast %179 : vector<1x8x8x8xf32> to vector<64x8xf32>
    %c0_286 = arith.constant 0 : index
    %c0_287 = arith.constant 0 : index
    %181 = vector.load %arg18[%c0_286, %c0_287] : memref<64x72xf32, #tpu.memory_space<vmem>>, vector<64x8xf32>
    tpu.vector_store %arg18[%c0_286, %c0_287], %180 {strides = array<i32>} : memref<64x72xf32, #tpu.memory_space<vmem>>, vector<64x8xf32>,
    %c0_288 = arith.constant 0 : index
    %c0_289 = arith.constant 0 : index
    %c1_290 = arith.constant 1 : index
    %c0_291 = arith.constant 0 : index
    %182 = vector.load %arg17[%c0_288, %c0_289, %c1_290, %c0_291] : memref<1x10x10x8xf32, #tpu.memory_space<vmem>>, vector<1x8x8x8xf32>
    %183 = vector.shape_cast %182 : vector<1x8x8x8xf32> to vector<64x8xf32>
    %c0_292 = arith.constant 0 : index
    %c8_293 = arith.constant 8 : index
    %184 = vector.load %arg18[%c0_292, %c8_293] : memref<64x72xf32, #tpu.memory_space<vmem>>, vector<64x8xf32>
    tpu.vector_store %arg18[%c0_292, %c8_293], %183 {strides = array<i32>} : memref<64x72xf32, #tpu.memory_space<vmem>>, vector<64x8xf32>,
    %c0_294 = arith.constant 0 : index
    %c0_295 = arith.constant 0 : index
    %c2_296 = arith.constant 2 : index
    %c0_297 = arith.constant 0 : index
    %185 = vector.load %arg17[%c0_294, %c0_295, %c2_296, %c0_297] : memref<1x10x10x8xf32, #tpu.memory_space<vmem>>, vector<1x8x8x8xf32>
    %186 = vector.shape_cast %185 : vector<1x8x8x8xf32> to vector<64x8xf32>
    %c0_298 = arith.constant 0 : index
    %c16_299 = arith.constant 16 : index
    %187 = vector.load %arg18[%c0_298, %c16_299] : memref<64x72xf32, #tpu.memory_space<vmem>>, vector<64x8xf32>
    tpu.vector_store %arg18[%c0_298, %c16_299], %186 {strides = array<i32>} : memref<64x72xf32, #tpu.memory_space<vmem>>, vector<64x8xf32>,
    %c0_300 = arith.constant 0 : index
    %c1_301 = arith.constant 1 : index
    %c0_302 = arith.constant 0 : index
    %c0_303 = arith.constant 0 : index
    %188 = vector.load %arg17[%c0_300, %c1_301, %c0_302, %c0_303] : memref<1x10x10x8xf32, #tpu.memory_space<vmem>>, vector<1x8x8x8xf32>
    %189 = vector.shape_cast %188 : vector<1x8x8x8xf32> to vector<64x8xf32>
    %c0_304 = arith.constant 0 : index
    %c24_305 = arith.constant 24 : index
    %190 = vector.load %arg18[%c0_304, %c24_305] : memref<64x72xf32, #tpu.memory_space<vmem>>, vector<64x8xf32>
    tpu.vector_store %arg18[%c0_304, %c24_305], %189 {strides = array<i32>} : memref<64x72xf32, #tpu.memory_space<vmem>>, vector<64x8xf32>,
    %c0_306 = arith.constant 0 : index
    %c1_307 = arith.constant 1 : index
    %c1_308 = arith.constant 1 : index
    %c0_309 = arith.constant 0 : index
    %191 = vector.load %arg17[%c0_306, %c1_307, %c1_308, %c0_309] : memref<1x10x10x8xf32, #tpu.memory_space<vmem>>, vector<1x8x8x8xf32>
    %192 = vector.shape_cast %191 : vector<1x8x8x8xf32> to vector<64x8xf32>
    %c0_310 = arith.constant 0 : index
    %c32_311 = arith.constant 32 : index
    %193 = vector.load %arg18[%c0_310, %c32_311] : memref<64x72xf32, #tpu.memory_space<vmem>>, vector<64x8xf32>
    tpu.vector_store %arg18[%c0_310, %c32_311], %192 {strides = array<i32>} : memref<64x72xf32, #tpu.memory_space<vmem>>, vector<64x8xf32>,
    %c0_312 = arith.constant 0 : index
    %c1_313 = arith.constant 1 : index
    %c2_314 = arith.constant 2 : index
    %c0_315 = arith.constant 0 : index
    %194 = vector.load %arg17[%c0_312, %c1_313, %c2_314, %c0_315] : memref<1x10x10x8xf32, #tpu.memory_space<vmem>>, vector<1x8x8x8xf32>
    %195 = vector.shape_cast %194 : vector<1x8x8x8xf32> to vector<64x8xf32>
    %c0_316 = arith.constant 0 : index
    %c40_317 = arith.constant 40 : index
    %196 = vector.load %arg18[%c0_316, %c40_317] : memref<64x72xf32, #tpu.memory_space<vmem>>, vector<64x8xf32>
    tpu.vector_store %arg18[%c0_316, %c40_317], %195 {strides = array<i32>} : memref<64x72xf32, #tpu.memory_space<vmem>>, vector<64x8xf32>,
    %c0_318 = arith.constant 0 : index
    %c2_319 = arith.constant 2 : index
    %c0_320 = arith.constant 0 : index
    %c0_321 = arith.constant 0 : index
    %197 = vector.load %arg17[%c0_318, %c2_319, %c0_320, %c0_321] : memref<1x10x10x8xf32, #tpu.memory_space<vmem>>, vector<1x8x8x8xf32>
    %198 = vector.shape_cast %197 : vector<1x8x8x8xf32> to vector<64x8xf32>
    %c0_322 = arith.constant 0 : index
    %c48_323 = arith.constant 48 : index
    %199 = vector.load %arg18[%c0_322, %c48_323] : memref<64x72xf32, #tpu.memory_space<vmem>>, vector<64x8xf32>
    tpu.vector_store %arg18[%c0_322, %c48_323], %198 {strides = array<i32>} : memref<64x72xf32, #tpu.memory_space<vmem>>, vector<64x8xf32>,
    %c0_324 = arith.constant 0 : index
    %c2_325 = arith.constant 2 : index
    %c1_326 = arith.constant 1 : index
    %c0_327 = arith.constant 0 : index
    %200 = vector.load %arg17[%c0_324, %c2_325, %c1_326, %c0_327] : memref<1x10x10x8xf32, #tpu.memory_space<vmem>>, vector<1x8x8x8xf32>
    %201 = vector.shape_cast %200 : vector<1x8x8x8xf32> to vector<64x8xf32>
    %c0_328 = arith.constant 0 : index
    %c56_329 = arith.constant 56 : index
    %202 = vector.load %arg18[%c0_328, %c56_329] : memref<64x72xf32, #tpu.memory_space<vmem>>, vector<64x8xf32>
    tpu.vector_store %arg18[%c0_328, %c56_329], %201 {strides = array<i32>} : memref<64x72xf32, #tpu.memory_space<vmem>>, vector<64x8xf32>,
    %c0_330 = arith.constant 0 : index
    %c2_331 = arith.constant 2 : index
    %c2_332 = arith.constant 2 : index
    %c0_333 = arith.constant 0 : index
    %203 = vector.load %arg17[%c0_330, %c2_331, %c2_332, %c0_333] : memref<1x10x10x8xf32, #tpu.memory_space<vmem>>, vector<1x8x8x8xf32>
    %204 = vector.shape_cast %203 : vector<1x8x8x8xf32> to vector<64x8xf32>
    %c0_334 = arith.constant 0 : index
    %c64_335 = arith.constant 64 : index
    %205 = vector.load %arg18[%c0_334, %c64_335] : memref<64x72xf32, #tpu.memory_space<vmem>>, vector<64x8xf32>
    tpu.vector_store %arg18[%c0_334, %c64_335], %204 {strides = array<i32>} : memref<64x72xf32, #tpu.memory_space<vmem>>, vector<64x8xf32>,
    %c0_336 = arith.constant 0 : index
    %c0_337 = arith.constant 0 : index
    %206 = vector.load %arg18[%c0_336, %c0_337] : memref<64x72xf32, #tpu.memory_space<vmem>>, vector<64x72xf32>
    %207 = arith.truncf %206 : vector<64x72xf32> to vector<64x72xbf16>
    %c0_338 = arith.constant 0 : index
    %c0_339 = arith.constant 0 : index
    %208 = vector.load %arg14[%c0_338, %c0_339] : memref<72x8xbf16, #tpu.memory_space<vmem>>, vector<72x8xbf16>
    %cst_340 = arith.constant dense<0.000000e+00> : vector<64x8xf32>
    %209 = tpu.matmul %207, %208, %cst_340 {dimension_numbers = #tpu.dot_dimension_numbers<[1], [0], [0], [1], [0, 0, 1, 1], [], []>} : vector<64x72xbf16>, vector<72x8xbf16>, vector<64x8xf32> -> vector<64x8xf32>
    %210 = arith.addf %209, %159 : vector<64x8xf32>
    %211 = vector.shape_cast %210 : vector<64x8xf32> to vector<1x8x8x8xf32>
    %c0_341 = arith.constant 0 : index
    %c0_342 = arith.constant 0 : index
    %c0_343 = arith.constant 0 : index
    %c0_344 = arith.constant 0 : index
    %212 = vector.load %arg15[%c0_341, %c0_342, %c0_343, %c0_344] : memref<1x8x8x8xf32, #tpu.memory_space<vmem>>, vector<1x8x8x8xf32>
    tpu.vector_store %arg15[%c0_341, %c0_342, %c0_343, %c0_344], %211 {strides = array<i32>} : memref<1x8x8x8xf32, #tpu.memory_space<vmem>>, vector<1x8x8x8xf32>,
    return
  }
  func.func @transform_0(%arg0: i32) -> (i32, i32, i32, i32) {
    %c0_i32 = arith.constant 0 : i32
    %c0_i32_0 = arith.constant 0 : i32
    %c0_i32_1 = arith.constant 0 : i32
    %c0_i32_2 = arith.constant 0 : i32
    return %arg0, %c0_i32, %c0_i32_0, %c0_i32_1 : i32, i32, i32, i32
  }
  func.func @transform_1(%arg0: i32) -> (i32, i32) {
    %c0_i32 = arith.constant 0 : i32
    %c0_i32_0 = arith.constant 0 : i32
    %c0_i32_1 = arith.constant 0 : i32
    return %c0_i32, %c0_i32_0 : i32, i32
  }
  func.func @transform_2(%arg0: i32) -> (i32, i32) {
    %c0_i32 = arith.constant 0 : i32
    %c0_i32_0 = arith.constant 0 : i32
    %c0_i32_1 = arith.constant 0 : i32
    return %c0_i32, %c0_i32_0 : i32, i32
  }
  func.func @transform_3(%arg0: i32) -> (i32, i32) {
    %c0_i32 = arith.constant 0 : i32
    %c0_i32_0 = arith.constant 0 : i32
    %c0_i32_1 = arith.constant 0 : i32
    return %c0_i32, %c0_i32_0 : i32, i32
  }
  func.func @transform_4(%arg0: i32) -> (i32, i32) {
    %c0_i32 = arith.constant 0 : i32
    %c0_i32_0 = arith.constant 0 : i32
    %c0_i32_1 = arith.constant 0 : i32
    return %c0_i32, %c0_i32_0 : i32, i32
  }
  func.func @transform_5(%arg0: i32) -> (i32, i32) {
    %c0_i32 = arith.constant 0 : i32
    %c0_i32_0 = arith.constant 0 : i32
    %c0_i32_1 = arith.constant 0 : i32
    return %c0_i32, %c0_i32_0 : i32, i32
  }
  func.func @transform_6(%arg0: i32) -> (i32, i32) {
    %c0_i32 = arith.constant 0 : i32
    %c0_i32_0 = arith.constant 0 : i32
    %c0_i32_1 = arith.constant 0 : i32
    return %c0_i32, %c0_i32_0 : i32, i32
  }
  func.func @transform_7(%arg0: i32) -> (i32, i32) {
    %c0_i32 = arith.constant 0 : i32
    %c0_i32_0 = arith.constant 0 : i32
    %c0_i32_1 = arith.constant 0 : i32
    return %c0_i32, %c0_i32_0 : i32, i32
  }
  func.func @transform_8(%arg0: i32) -> (i32, i32) {
    %c0_i32 = arith.constant 0 : i32
    %c0_i32_0 = arith.constant 0 : i32
    %c0_i32_1 = arith.constant 0 : i32
    return %c0_i32, %c0_i32_0 : i32, i32
  }
  func.func @transform_9(%arg0: i32) -> (i32, i32) {
    %c0_i32 = arith.constant 0 : i32
    %c0_i32_0 = arith.constant 0 : i32
    %c0_i32_1 = arith.constant 0 : i32
    return %c0_i32, %c0_i32_0 : i32, i32
  }
  func.func @transform_10(%arg0: i32) -> (i32, i32) {
    %c0_i32 = arith.constant 0 : i32
    %c0_i32_0 = arith.constant 0 : i32
    %c0_i32_1 = arith.constant 0 : i32
    return %c0_i32, %c0_i32_0 : i32, i32
  }
  func.func @transform_11(%arg0: i32) -> (i32, i32) {
    %c0_i32 = arith.constant 0 : i32
    %c0_i32_0 = arith.constant 0 : i32
    %c0_i32_1 = arith.constant 0 : i32
    return %c0_i32, %c0_i32_0 : i32, i32
  }
  func.func @transform_12(%arg0: i32) -> (i32, i32) {
    %c0_i32 = arith.constant 0 : i32
    %c0_i32_0 = arith.constant 0 : i32
    %c0_i32_1 = arith.constant 0 : i32
    return %c0_i32, %c0_i32_0 : i32, i32
  }
  func.func @transform_13(%arg0: i32) -> (i32, i32) {
    %c0_i32 = arith.constant 0 : i32
    %c0_i32_0 = arith.constant 0 : i32
    %c0_i32_1 = arith.constant 0 : i32
    return %c0_i32, %c0_i32_0 : i32, i32
  }
  func.func @transform_14(%arg0: i32) -> (i32, i32, i32, i32) {
    %c0_i32 = arith.constant 0 : i32
    %c0_i32_0 = arith.constant 0 : i32
    %c0_i32_1 = arith.constant 0 : i32
    %c0_i32_2 = arith.constant 0 : i32
    return %arg0, %c0_i32, %c0_i32_0, %c0_i32_1 : i32, i32, i32, i32
  }
}

</mosaic_0001>

<llo_original>
// kernel: network_block_forward.1
$region0: #{network_block_forward.1}
  #allocation0 [shape = 'u32[]', space=smem, size = 0x4, offset = 0x4, fixed_abs, tag = 'smem constant byte address 0x4 - core index']
  #allocation1 [shape = 'u32[144,128]{1,0:T(1,128)}', space=vmem, size = 0x12000, scoped, tag = 'internal scratch']
  #allocation2 [shape = 'f32[1,18,18,4]{3,2,1,0:T(8,128)}', space=vmem, size = 0x36000, scoped, tag = 'scratch operand']
  #allocation3 [shape = 'f32[1,10,10,8]{3,2,1,0:T(8,128)}', space=vmem, size = 0x14000, scoped, tag = 'scratch operand']
  #allocation4 [shape = 'f32[64,72]{1,0:T(8,128)}', space=vmem, size = 0x8000, scoped, tag = 'scratch operand']
  %s0 = inlined_call_operand.vmem [shape: f32[2,16,16,4], index: 0, kind: input, shape index: {}]
  %s1 = inlined_call_operand.vmem [shape: f32[1,4], index: 1, kind: input, shape index: {}]
  %s2 = inlined_call_operand.vmem [shape: f32[1,4], index: 2, kind: input, shape index: {}]
  %s3 = inlined_call_operand.vmem [shape: bf16[36,8], index: 3, kind: input, shape index: {}]
  %s4 = inlined_call_operand.vmem [shape: f32[1,8], index: 4, kind: input, shape index: {}]
  %s5 = inlined_call_operand.vmem [shape: f32[1,8], index: 5, kind: input, shape index: {}]
  %s6 = inlined_call_operand.vmem [shape: bf16[72,8], index: 6, kind: input, shape index: {}]
  %s7 = inlined_call_operand.vmem [shape: f32[4,8], index: 7, kind: input, shape index: {}]
  %s8 = inlined_call_operand.vmem [shape: f32[1,8], index: 8, kind: input, shape index: {}]
  %s9 = inlined_call_operand.vmem [shape: f32[1,8], index: 9, kind: input, shape index: {}]
  %s10 = inlined_call_operand.vmem [shape: bf16[72,8], index: 10, kind: input, shape index: {}]
  %s11 = inlined_call_operand.vmem [shape: f32[1,8], index: 11, kind: input, shape index: {}]
  %s12 = inlined_call_operand.vmem [shape: f32[1,8], index: 12, kind: input, shape index: {}]
  %s13 = inlined_call_operand.vmem [shape: bf16[72,8], index: 13, kind: input, shape index: {}]
  %s14 = inlined_call_operand.hbm [shape: f32[2,8,8,8], index: 14, kind: output, shape index: {}]
  %s15 = sld [smem:[#allocation0]]
  $region89: #{network_block_forward.1} parent=0
    _
  %s17 = ssub.s32 1, %s15
  %s18 = scalar_select 0, %s17, %s15
  $region1: #{network_block_forward.1} parent=0
    #allocation5 [shape = 'u8[65536]{0}', space=vmem, size = 0x10000, scoped, tag = 'output window, operand 0']
    #allocation6 [shape = 's32[2]{0}', space=sflag, size = 0x8, scoped, tag = 'scoped memory for network_block_forward.1']
    %19 = vsyncpa [#allocation6], 0
    %s20 = scalar_lea.sflag [#allocation6], 1
    %21 = vsyncpa %s20, 0
    loop: start=0, step=1, limit=4
    $region2: #{network_block_forward.1} parent=1 // loop_pre_header
      _
    $region3: #{network_block_forward.1} parent=1 // loop_header
      %s23 = sphi 0, %s27
      %p24 = scmp.ge.s32.totalorder %s23, 4
      %s33 = sphi 0, %s35
      %s36 = sphi 0, %s33
      %s37 = sphi 0, %s36
      %s53 = sphi 0, %s37
      %s57 = sphi 0, %s57
      %s59 = sphi 0, %s57
      %s60 = sphi 0, %s59
      %s74 = sphi 0, %s60
      %s78 = sphi 0, %s78
      %s80 = sphi 0, %s78
      %s81 = sphi 0, %s80
      %s95 = sphi 0, %s81
      %s99 = sphi 0, %s99
      %s101 = sphi 0, %s99
      %s102 = sphi 0, %s101
      %s116 = sphi 0, %s102
      %s120 = sphi 0, %s120
      %s122 = sphi 0, %s120
      %s123 = sphi 0, %s122
      %s137 = sphi 0, %s123
      %s141 = sphi 0, %s141
      %s143 = sphi 0, %s141
      %s144 = sphi 0, %s143
      %s158 = sphi 0, %s144
      %s162 = sphi 0, %s162
      %s164 = sphi 0, %s162
      %s165 = sphi 0, %s164
      %s179 = sphi 0, %s165
      %s183 = sphi 0, %s183
      %s185 = sphi 0, %s183
      %s186 = sphi 0, %s185
      %s200 = sphi 0, %s186
      %s204 = sphi 0, %s204
      %s206 = sphi 0, %s204
      %s207 = sphi 0, %s206
      %s221 = sphi 0, %s207
      %s225 = sphi 0, %s225
      %s227 = sphi 0, %s225
      %s228 = sphi 0, %s227
      %s242 = sphi 0, %s228
      %s246 = sphi 0, %s246
      %s248 = sphi 0, %s246
      %s249 = sphi 0, %s248
      %s263 = sphi 0, %s249
      %s267 = sphi 0, %s267
      %s269 = sphi 0, %s267
      %s270 = sphi 0, %s269
      %s284 = sphi 0, %s270
      %s288 = sphi 0, %s288
      %s290 = sphi 0, %s288
      %s291 = sphi 0, %s290
      %s305 = sphi 0, %s291
      %s309 = sphi 0, %s309
      %s311 = sphi 0, %s309
      %s312 = sphi 0, %s311
      %s326 = sphi 0, %s312
      %s332 = sphi 0, %s334
      %s335 = sphi 0, %s332
      %s336 = sphi 0, %s335
      %s352 = sphi 0, %s336
    $region4: #{network_block_forward.1} parent=1 // loop_header_branch
      %26 = sbr.rel (%p24) target = $region8
    $region5: #{network_block_forward.1} parent=1 // loop_body
      %s28 = ssub.s32 %s23, 1
      %s29 = ssub.s32 %s23, 2
      %s30 = sadd.s32 %s23, 1
      %s31 = ssub.s32 %s23, %s30
      %p32 = scmp.eq.s32.totalorder %s31, 0
      %s34 = sadd.s32 %s33, 1
      %s35 = scalar_select %p32, %s33, %s34
      %p38 = pneg %p32
      %p39 = scmp.eq.s32.totalorder %s23, 1
      %p40 = por %p38, %p39
      %p41 = scmp.ne.s32.totalorder %s33, %s36
      %p42 = scmp.eq.s32.totalorder %s23, 0
      %p43 = por %p41, %p42
      %p44 = scmp.ne.s32.totalorder %s33, %s36
      %p45 = scmp.eq.s32.totalorder %s28, 1
      %p46 = por %p44, %p45
      %p47 = scmp.ne.s32.totalorder %s36, %s37
      %p48 = scmp.eq.s32.totalorder %s28, 0
      %p49 = por %p47, %p48
      %p50 = scmp.ne.s32.totalorder %s36, %s37
      %p51 = scmp.eq.s32.totalorder %s29, 1
      %p52 = por %p50, %p51
      %p54 = scmp.ne.s32.totalorder %s37, %s53
      %p55 = scmp.eq.s32.totalorder %s29, 0
      %p56 = por %p54, %p55
      %s58 = sadd.s32 %s57, 1
      %p61 = scmp.eq.s32.totalorder %s23, 1
      %p62 = scmp.ne.s32.totalorder %s57, %s59
      %p63 = scmp.eq.s32.totalorder %s23, 0
      %p64 = por %p62, %p63
      %p65 = scmp.ne.s32.totalorder %s57, %s59
      %p66 = scmp.eq.s32.totalorder %s28, 1
      %p67 = por %p65, %p66
      %p68 = scmp.ne.s32.totalorder %s59, %s60
      %p69 = scmp.eq.s32.totalorder %s28, 0
      %p70 = por %p68, %p69
      %p71 = scmp.ne.s32.totalorder %s59, %s60
      %p72 = scmp.eq.s32.totalorder %s29, 1
      %p73 = por %p71, %p72
      %p75 = scmp.ne.s32.totalorder %s60, %s74
      %p76 = scmp.eq.s32.totalorder %s29, 0
      %p77 = por %p75, %p76
      %s79 = sadd.s32 %s78, 1
      %p82 = scmp.eq.s32.totalorder %s23, 1
      %p83 = scmp.ne.s32.totalorder %s78, %s80
      %p84 = scmp.eq.s32.totalorder %s23, 0
      %p85 = por %p83, %p84
      %p86 = scmp.ne.s32.totalorder %s78, %s80
      %p87 = scmp.eq.s32.totalorder %s28, 1
      %p88 = por %p86, %p87
      %p89 = scmp.ne.s32.totalorder %s80, %s81
      %p90 = scmp.eq.s32.totalorder %s28, 0
      %p91 = por %p89, %p90
      %p92 = scmp.ne.s32.totalorder %s80, %s81
      %p93 = scmp.eq.s32.totalorder %s29, 1
      %p94 = por %p92, %p93
      %p96 = scmp.ne.s32.totalorder %s81, %s95
      %p97 = scmp.eq.s32.totalorder %s29, 0
      %p98 = por %p96, %p97
      %s100 = sadd.s32 %s99, 1
      %p103 = scmp.eq.s32.totalorder %s23, 1
      %p104 = scmp.ne.s32.totalorder %s99, %s101
      %p105 = scmp.eq.s32.totalorder %s23, 0
      %p106 = por %p104, %p105
      %p107 = scmp.ne.s32.totalorder %s99, %s101
      %p108 = scmp.eq.s32.totalorder %s28, 1
      %p109 = por %p107, %p108
      %p110 = scmp.ne.s32.totalorder %s101, %s102
      %p111 = scmp.eq.s32.totalorder %s28, 0
      %p112 = por %p110, %p111
      %p113 = scmp.ne.s32.totalorder %s101, %s102
      %p114 = scmp.eq.s32.totalorder %s29, 1
      %p115 = por %p113, %p114
      %p117 = scmp.ne.s32.totalorder %s102, %s116
      %p118 = scmp.eq.s32.totalorder %s29, 0
      %p119 = por %p117, %p118
      %s121 = sadd.s32 %s120, 1
      %p124 = scmp.eq.s32.totalorder %s23, 1
      %p125 = scmp.ne.s32.totalorder %s120, %s122
      %p126 = scmp.eq.s32.totalorder %s23, 0
      %p127 = por %p125, %p126
      %p128 = scmp.ne.s32.totalorder %s120, %s122
      %p129 = scmp.eq.s32.totalorder %s28, 1
      %p130 = por %p128, %p129
      %p131 = scmp.ne.s32.totalorder %s122, %s123
      %p132 = scmp.eq.s32.totalorder %s28, 0
      %p133 = por %p131, %p132
      %p134 = scmp.ne.s32.totalorder %s122, %s123
      %p135 = scmp.eq.s32.totalorder %s29, 1
      %p136 = por %p134, %p135
      %p138 = scmp.ne.s32.totalorder %s123, %s137
      %p139 = scmp.eq.s32.totalorder %s29, 0
      %p140 = por %p138, %p139
      %s142 = sadd.s32 %s141, 1
      %p145 = scmp.eq.s32.totalorder %s23, 1
      %p146 = scmp.ne.s32.totalorder %s141, %s143
      %p147 = scmp.eq.s32.totalorder %s23, 0
      %p148 = por %p146, %p147
      %p149 = scmp.ne.s32.totalorder %s141, %s143
      %p150 = scmp.eq.s32.totalorder %s28, 1
      %p151 = por %p149, %p150
      %p152 = scmp.ne.s32.totalorder %s143, %s144
      %p153 = scmp.eq.s32.totalorder %s28, 0
      %p154 = por %p152, %p153
      %p155 = scmp.ne.s32.totalorder %s143, %s144
      %p156 = scmp.eq.s32.totalorder %s29, 1
      %p157 = por %p155, %p156
      %p159 = scmp.ne.s32.totalorder %s144, %s158
      %p160 = scmp.eq.s32.totalorder %s29, 0
      %p161 = por %p159, %p160
      %s163 = sadd.s32 %s162, 1
      %p166 = scmp.eq.s32.totalorder %s23, 1
      %p167 = scmp.ne.s32.totalorder %s162, %s164
      %p168 = scmp.eq.s32.totalorder %s23, 0
      %p169 = por %p167, %p168
      %p170 = scmp.ne.s32.totalorder %s162, %s164
      %p171 = scmp.eq.s32.totalorder %s28, 1
      %p172 = por %p170, %p171
      %p173 = scmp.ne.s32.totalorder %s164, %s165
      %p174 = scmp.eq.s32.totalorder %s28, 0
      %p175 = por %p173, %p174
      %p176 = scmp.ne.s32.totalorder %s164, %s165
      %p177 = scmp.eq.s32.totalorder %s29, 1
      %p178 = por %p176, %p177
      %p180 = scmp.ne.s32.totalorder %s165, %s179
      %p181 = scmp.eq.s32.totalorder %s29, 0
      %p182 = por %p180, %p181
      %s184 = sadd.s32 %s183, 1
      %p187 = scmp.eq.s32.totalorder %s23, 1
      %p188 = scmp.ne.s32.totalorder %s183, %s185
      %p189 = scmp.eq.s32.totalorder %s23, 0
      %p190 = por %p188, %p189
      %p191 = scmp.ne.s32.totalorder %s183, %s185
      %p192 = scmp.eq.s32.totalorder %s28, 1
      %p193 = por %p191, %p192
      %p194 = scmp.ne.s32.totalorder %s185, %s186
      %p195 = scmp.eq.s32.totalorder %s28, 0
      %p196 = por %p194, %p195
      %p197 = scmp.ne.s32.totalorder %s185, %s186
      %p198 = scmp.eq.s32.totalorder %s29, 1
      %p199 = por %p197, %p198
      %p201 = scmp.ne.s32.totalorder %s186, %s200
      %p202 = scmp.eq.s32.totalorder %s29, 0
      %p203 = por %p201, %p202
      %s205 = sadd.s32 %s204, 1
      %p208 = scmp.eq.s32.totalorder %s23, 1
      %p209 = scmp.ne.s32.totalorder %s204, %s206
      %p210 = scmp.eq.s32.totalorder %s23, 0
      %p211 = por %p209, %p210
      %p212 = scmp.ne.s32.totalorder %s204, %s206
      %p213 = scmp.eq.s32.totalorder %s28, 1
      %p214 = por %p212, %p213
      %p215 = scmp.ne.s32.totalorder %s206, %s207
      %p216 = scmp.eq.s32.totalorder %s28, 0
      %p217 = por %p215, %p216
      %p218 = scmp.ne.s32.totalorder %s206, %s207
      %p219 = scmp.eq.s32.totalorder %s29, 1
      %p220 = por %p218, %p219
      %p222 = scmp.ne.s32.totalorder %s207, %s221
      %p223 = scmp.eq.s32.totalorder %s29, 0
      %p224 = por %p222, %p223
      %s226 = sadd.s32 %s225, 1
      %p229 = scmp.eq.s32.totalorder %s23, 1
      %p230 = scmp.ne.s32.totalorder %s225, %s227
      %p231 = scmp.eq.s32.totalorder %s23, 0
      %p232 = por %p230, %p231
      %p233 = scmp.ne.s32.totalorder %s225, %s227
      %p234 = scmp.eq.s32.totalorder %s28, 1
      %p235 = por %p233, %p234
      %p236 = scmp.ne.s32.totalorder %s227, %s228
      %p237 = scmp.eq.s32.totalorder %s28, 0
      %p238 = por %p236, %p237
      %p239 = scmp.ne.s32.totalorder %s227, %s228
      %p240 = scmp.eq.s32.totalorder %s29, 1
      %p241 = por %p239, %p240
      %p243 = scmp.ne.s32.totalorder %s228, %s242
      %p244 = scmp.eq.s32.totalorder %s29, 0
      %p245 = por %p243, %p244
      %s247 = sadd.s32 %s246, 1
      %p250 = scmp.eq.s32.totalorder %s23, 1
      %p251 = scmp.ne.s32.totalorder %s246, %s248
      %p252 = scmp.eq.s32.totalorder %s23, 0
      %p253 = por %p251, %p252
      %p254 = scmp.ne.s32.totalorder %s246, %s248
      %p255 = scmp.eq.s32.totalorder %s28, 1
      %p256 = por %p254, %p255
      %p257 = scmp.ne.s32.totalorder %s248, %s249
      %p258 = scmp.eq.s32.totalorder %s28, 0
      %p259 = por %p257, %p258
      %p260 = scmp.ne.s32.totalorder %s248, %s249
      %p261 = scmp.eq.s32.totalorder %s29, 1
      %p262 = por %p260, %p261
      %p264 = scmp.ne.s32.totalorder %s249, %s263
      %p265 = scmp.eq.s32.totalorder %s29, 0
      %p266 = por %p264, %p265
      %s268 = sadd.s32 %s267, 1
      %p271 = scmp.eq.s32.totalorder %s23, 1
      %p272 = scmp.ne.s32.totalorder %s267, %s269
      %p273 = scmp.eq.s32.totalorder %s23, 0
      %p274 = por %p272, %p273
      %p275 = scmp.ne.s32.totalorder %s267, %s269
      %p276 = scmp.eq.s32.totalorder %s28, 1
      %p277 = por %p275, %p276
      %p278 = scmp.ne.s32.totalorder %s269, %s270
      %p279 = scmp.eq.s32.totalorder %s28, 0
      %p280 = por %p278, %p279
      %p281 = scmp.ne.s32.totalorder %s269, %s270
      %p282 = scmp.eq.s32.totalorder %s29, 1
      %p283 = por %p281, %p282
      %p285 = scmp.ne.s32.totalorder %s270, %s284
      %p286 = scmp.eq.s32.totalorder %s29, 0
      %p287 = por %p285, %p286
      %s289 = sadd.s32 %s288, 1
      %p292 = scmp.eq.s32.totalorder %s23, 1
      %p293 = scmp.ne.s32.totalorder %s288, %s290
      %p294 = scmp.eq.s32.totalorder %s23, 0
      %p295 = por %p293, %p294
      %p296 = scmp.ne.s32.totalorder %s288, %s290
      %p297 = scmp.eq.s32.totalorder %s28, 1
      %p298 = por %p296, %p297
      %p299 = scmp.ne.s32.totalorder %s290, %s291
      %p300 = scmp.eq.s32.totalorder %s28, 0
      %p301 = por %p299, %p300
      %p302 = scmp.ne.s32.totalorder %s290, %s291
      %p303 = scmp.eq.s32.totalorder %s29, 1
      %p304 = por %p302, %p303
      %p306 = scmp.ne.s32.totalorder %s291, %s305
      %p307 = scmp.eq.s32.totalorder %s29, 0
      %p308 = por %p306, %p307
      %s310 = sadd.s32 %s309, 1
      %p313 = scmp.eq.s32.totalorder %s23, 1
      %p314 = scmp.ne.s32.totalorder %s309, %s311
      %p315 = scmp.eq.s32.totalorder %s23, 0
      %p316 = por %p314, %p315
      %p317 = scmp.ne.s32.totalorder %s309, %s311
      %p318 = scmp.eq.s32.totalorder %s28, 1
      %p319 = por %p317, %p318
      %p320 = scmp.ne.s32.totalorder %s311, %s312
      %p321 = scmp.eq.s32.totalorder %s28, 0
      %p322 = por %p320, %p321
      %p323 = scmp.ne.s32.totalorder %s311, %s312
      %p324 = scmp.eq.s32.totalorder %s29, 1
      %p325 = por %p323, %p324
      %p327 = scmp.ne.s32.totalorder %s312, %s326
      %p328 = scmp.eq.s32.totalorder %s29, 0
      %p329 = por %p327, %p328
      %s330 = ssub.s32 %s23, %s30
      %p331 = scmp.eq.s32.totalorder %s330, 0
      %s333 = sadd.s32 %s332, 1
      %s334 = scalar_select %p331, %s332, %s333
      %p337 = pneg %p331
      %p338 = scmp.eq.s32.totalorder %s23, 1
      %p339 = por %p337, %p338
      %p340 = scmp.ne.s32.totalorder %s332, %s335
      %p341 = scmp.eq.s32.totalorder %s23, 0
      %p342 = por %p340, %p341
      %p343 = scmp.ne.s32.totalorder %s332, %s335
      %p344 = scmp.eq.s32.totalorder %s28, 1
      %p345 = por %p343, %p344
      %p346 = scmp.ne.s32.totalorder %s335, %s336
      %p347 = scmp.eq.s32.totalorder %s28, 0
      %p348 = por %p346, %p347
      %p349 = scmp.ne.s32.totalorder %s335, %s336
      %p350 = scmp.eq.s32.totalorder %s29, 1
      %p351 = por %p349, %p350
      %p353 = scmp.ne.s32.totalorder %s336, %s352
      %p354 = scmp.eq.s32.totalorder %s29, 0
      %p355 = por %p353, %p354
      %p356 = scmp.le.s32.totalorder 1, %s23
      %p357 = scmp.lt.s32.totalorder %s23, 3
      %p358 = pnand %p356, %p357
      %p359 = pneg %p358
      // Predicated region
      $region9: #{network_block_forward.1} parent=5 // pred_check
        _
      $region10: #{network_block_forward.1} parent=5 // pred_check_branch
        %361 = sbr.rel (%p358) target = $region12
      $region11: #{network_block_forward.1} parent=5 // pred_region
        %s362 = ssub.s32 %s23, 1
        // Predicated region
        $region13: #{network_block_forward.1} parent=11 // pred_check
          %p363 = pneg %p70
        $region14: #{network_block_forward.1} parent=11 // pred_check_branch
          %365 = sbr.rel (%p363) target = $region16
        $region15: #{network_block_forward.1} parent=11 // pred_region
          _
        $region16: #{network_block_forward.1} parent=11 // pred_fallthru
          _
        // Predicated region
        $region17: #{network_block_forward.1} parent=11 // pred_check
          %p366 = pneg %p91
        $region18: #{network_block_forward.1} parent=11 // pred_check_branch
          %368 = sbr.rel (%p366) target = $region20
        $region19: #{network_block_forward.1} parent=11 // pred_region
          _
        $region20: #{network_block_forward.1} parent=11 // pred_fallthru
          _
        // Predicated region
        $region21: #{network_block_forward.1} parent=11 // pred_check
          %p369 = pneg %p112
        $region22: #{network_block_forward.1} parent=11 // pred_check_branch
          %371 = sbr.rel (%p369) target = $region24
        $region23: #{network_block_forward.1} parent=11 // pred_region
          _
        $region24: #{network_block_forward.1} parent=11 // pred_fallthru
          _
        // Predicated region
        $region25: #{network_block_forward.1} parent=11 // pred_check
          %p372 = pneg %p133
        $region26: #{network_block_forward.1} parent=11 // pred_check_branch
          %374 = sbr.rel (%p372) target = $region28
        $region27: #{network_block_forward.1} parent=11 // pred_region
          _
        $region28: #{network_block_forward.1} parent=11 // pred_fallthru
          _
        // Predicated region
        $region29: #{network_block_forward.1} parent=11 // pred_check
          %p375 = pneg %p154
        $region30: #{network_block_forward.1} parent=11 // pred_check_branch
          %377 = sbr.rel (%p375) target = $region32
        $region31: #{network_block_forward.1} parent=11 // pred_region
          _
        $region32: #{network_block_forward.1} parent=11 // pred_fallthru
          _
        // Predicated region
        $region33: #{network_block_forward.1} parent=11 // pred_check
          %p378 = pneg %p175
        $region34: #{network_block_forward.1} parent=11 // pred_check_branch
          %380 = sbr.rel (%p378) target = $region36
        $region35: #{network_block_forward.1} parent=11 // pred_region
          _
        $region36: #{network_block_forward.1} parent=11 // pred_fallthru
          _
        // Predicated region
        $region37: #{network_block_forward.1} parent=11 // pred_check
          %p381 = pneg %p196
        $region38: #{network_block_forward.1} parent=11 // pred_check_branch
          %383 = sbr.rel (%p381) target = $region40
        $region39: #{network_block_forward.1} parent=11 // pred_region
          _
        $region40: #{network_block_forward.1} parent=11 // pred_fallthru
          _
        // Predicated region
        $region41: #{network_block_forward.1} parent=11 // pred_check
          %p384 = pneg %p217
        $region42: #{network_block_forward.1} parent=11 // pred_check_branch
          %386 = sbr.rel (%p384) target = $region44
        $region43: #{network_block_forward.1} parent=11 // pred_region
          _
        $region44: #{network_block_forward.1} parent=11 // pred_fallthru
          _
        // Predicated region
        $region45: #{network_block_forward.1} parent=11 // pred_check
          %p387 = pneg %p238
        $region46: #{network_block_forward.1} parent=11 // pred_check_branch
          %389 = sbr.rel (%p387) target = $region48
        $region47: #{network_block_forward.1} parent=11 // pred_region
          _
        $region48: #{network_block_forward.1} parent=11 // pred_fallthru
          _
        // Predicated region
        $region49: #{network_block_forward.1} parent=11 // pred_check
          %p390 = pneg %p259
        $region50: #{network_block_forward.1} parent=11 // pred_check_branch
          %392 = sbr.rel (%p390) target = $region52
        $region51: #{network_block_forward.1} parent=11 // pred_region
          _
        $region52: #{network_block_forward.1} parent=11 // pred_fallthru
          _
        // Predicated region
        $region53: #{network_block_forward.1} parent=11 // pred_check
          %p393 = pneg %p280
        $region54: #{network_block_forward.1} parent=11 // pred_check_branch
          %395 = sbr.rel (%p393) target = $region56
        $region55: #{network_block_forward.1} parent=11 // pred_region
          _
        $region56: #{network_block_forward.1} parent=11 // pred_fallthru
          _
        // Predicated region
        $region57: #{network_block_forward.1} parent=11 // pred_check
          %p396 = pneg %p301
        $region58: #{network_block_forward.1} parent=11 // pred_check_branch
          %398 = sbr.rel (%p396) target = $region60
        $region59: #{network_block_forward.1} parent=11 // pred_region
          _
        $region60: #{network_block_forward.1} parent=11 // pred_fallthru
          _
        // Predicated region
        $region61: #{network_block_forward.1} parent=11 // pred_check
          %p399 = pneg %p322
        $region62: #{network_block_forward.1} parent=11 // pred_check_branch
          %401 = sbr.rel (%p399) target = $region64
        $region63: #{network_block_forward.1} parent=11 // pred_region
          _
        $region64: #{network_block_forward.1} parent=11 // pred_fallthru
          _
      $region12: #{network_block_forward.1} parent=5 // pred_fallthru
        _
      %p402 = scmp.lt.s32.totalorder %s23, 2
      // Predicated region
      $region65: #{network_block_forward.1} parent=5 // pred_check
        %p403 = pneg %p402
      $region66: #{network_block_forward.1} parent=5 // pred_check_branch
        %405 = sbr.rel (%p403) target = $region68
      $region67: #{network_block_forward.1} parent=5 // pred_region
        // Predicated region
        $region69: #{network_block_forward.1} parent=67 // pred_check
          %p406 = pneg %p43
        $region70: #{network_block_forward.1} parent=67 // pred_check_branch
          %408 = sbr.rel (%p406) target = $region72
        $region71: #{network_block_forward.1} parent=67 // pred_region
          %p409 = scmp.lt.s32.totalorder %s23, 1
          %s410 = scalar_select %p409, %s23, 1
          %s411 = smul.addr %s410, 32
          %s412 = smul.addr %s411, 8
          %s413 = scalar_lea.vmem %s0, %s412
        $region72: #{network_block_forward.1} parent=67 // pred_fallthru
          _
      $region68: #{network_block_forward.1} parent=5 // pred_fallthru
        _
      %p414 = scmp.le.s32.totalorder 1, %s23
      %p415 = scmp.lt.s32.totalorder %s23, 3
      %p416 = pnand %p414, %p415
      %p417 = pneg %p416
      // Predicated region
      $region73: #{network_block_forward.1} parent=5 // pred_check
        _
      $region74: #{network_block_forward.1} parent=5 // pred_check_branch
        %419 = sbr.rel (%p416) target = $region76
      $region75: #{network_block_forward.1} parent=5 // pred_region
        %s420 = ssub.s32 %s23, 1
        %p421 = scmp.lt.s32.totalorder %s28, 1
        %s422 = scalar_select %p421, %s28, 1
        %s423 = smul.addr %s422, 32
        %s424 = smul.addr %s423, 8
        %s425 = scalar_lea.vmem %s0, %s424
        %p426 = pneg %p49
        %p427 = pneg %p46
        %p428 = pneg %p70
        %p429 = pneg %p67
        %p430 = pneg %p91
        %p431 = pneg %p88
        %p432 = pneg %p112
        %p433 = pneg %p109
        %p434 = pneg %p133
        %p435 = pneg %p130
        %p436 = pneg %p154
        %p437 = pneg %p151
        %p438 = pneg %p175
        %p439 = pneg %p172
        %p440 = pneg %p196
        %p441 = pneg %p193
        %p442 = pneg %p217
        %p443 = pneg %p214
        %p444 = pneg %p238
        %p445 = pneg %p235
        %p446 = pneg %p259
        %p447 = pneg %p256
        %p448 = pneg %p280
        %p449 = pneg %p277
        %p450 = pneg %p301
        %p451 = pneg %p298
        %p452 = pneg %p322
        %p453 = pneg %p319
        %p454 = pneg %p348
        %p455 = pneg %p345
        %s456 = sand.u32 %s335, 1
        %s457 = scalar_lea.sflag [#allocation6], %s456
        %s458 = sand.u32 %s335, 1
        %s459 = smul.addr %s458, 64
        %s460 = scalar_lea.vmem [#allocation5], %s459
        %p461 = scmp.lt.s32.totalorder %s28, 1
        %s462 = scalar_select %p461, %s28, 1
        %s463 = smul.addr %s462, 32
        %s464 = smul.addr %s463, 8
        %s465 = scalar_lea.vmem %s0, %s464
        %v467 = vld [vmem:[%s465] sm:$0xff]
        %v468 = vld [vmem:[%s465 + $0x8] sm:$0xff]
        %v469 = vld [vmem:[%s465 + $0x10] sm:$0xff]
        %v470 = vld [vmem:[%s465 + $0x18] sm:$0xff]
        %v471 = vld [vmem:[%s465 + $0x20] sm:$0xff]
        %v472 = vld [vmem:[%s465 + $0x28] sm:$0xff]
        %v473 = vld [vmem:[%s465 + $0x30] sm:$0xff]
        %v474 = vld [vmem:[%s465 + $0x38] sm:$0xff]
        %v475 = vld [vmem:[%s465 + $0x40] sm:$0xff]
        %v476 = vld [vmem:[%s465 + $0x48] sm:$0xff]
        %v477 = vld [vmem:[%s465 + $0x50] sm:$0xff]
        %v478 = vld [vmem:[%s465 + $0x58] sm:$0xff]
        %v479 = vld [vmem:[%s465 + $0x60] sm:$0xff]
        %v480 = vld [vmem:[%s465 + $0x68] sm:$0xff]
        %v481 = vld [vmem:[%s465 + $0x70] sm:$0xff]
        %v482 = vld [vmem:[%s465 + $0x78] sm:$0xff]
        %v483 = vld [vmem:[%s465 + $0x80] sm:$0xff]
        %v484 = vld [vmem:[%s465 + $0x88] sm:$0xff]
        %v485 = vld [vmem:[%s465 + $0x90] sm:$0xff]
        %v486 = vld [vmem:[%s465 + $0x98] sm:$0xff]
        %v487 = vld [vmem:[%s465 + $0xa0] sm:$0xff]
        %v488 = vld [vmem:[%s465 + $0xa8] sm:$0xff]
        %v489 = vld [vmem:[%s465 + $0xb0] sm:$0xff]
        %v490 = vld [vmem:[%s465 + $0xb8] sm:$0xff]
        %v491 = vld [vmem:[%s465 + $0xc0] sm:$0xff]
        %v492 = vld [vmem:[%s465 + $0xc8] sm:$0xff]
        %v493 = vld [vmem:[%s465 + $0xd0] sm:$0xff]
        %v494 = vld [vmem:[%s465 + $0xd8] sm:$0xff]
        %v495 = vld [vmem:[%s465 + $0xe0] sm:$0xff]
        %v496 = vld [vmem:[%s465 + $0xe8] sm:$0xff]
        %v497 = vld [vmem:[%s465 + $0xf0] sm:$0xff]
        %v498 = vld [vmem:[%s465 + $0xf8] sm:$0xff]
        %v499 = vld [vmem:[%s1] sm:$0x1]
        %v501 = vlaneseq
        %v502 = vshrl.u32 %v501, 7
        %v503 = vsub.s32 0, %v502
        %v504 = vrot.slane %v499, %v503
        %v506 = vmul.f32 %v467, %v504
        %v507 = vmul.f32 %v468, %v504
        %v508 = vmul.f32 %v469, %v504
        %v509 = vmul.f32 %v470, %v504
        %v510 = vmul.f32 %v471, %v504
        %v511 = vmul.f32 %v472, %v504
        %v512 = vmul.f32 %v473, %v504
        %v513 = vmul.f32 %v474, %v504
        %v514 = vmul.f32 %v475, %v504
        %v515 = vmul.f32 %v476, %v504
        %v516 = vmul.f32 %v477, %v504
        %v517 = vmul.f32 %v478, %v504
        %v518 = vmul.f32 %v479, %v504
        %v519 = vmul.f32 %v480, %v504
        %v520 = vmul.f32 %v481, %v504
        %v521 = vmul.f32 %v482, %v504
        %v522 = vmul.f32 %v483, %v504
        %v523 = vmul.f32 %v484, %v504
        %v524 = vmul.f32 %v485, %v504
        %v525 = vmul.f32 %v486, %v504
        %v526 = vmul.f32 %v487, %v504
        %v527 = vmul.f32 %v488, %v504
        %v528 = vmul.f32 %v489, %v504
        %v529 = vmul.f32 %v490, %v504
        %v530 = vmul.f32 %v491, %v504
        %v531 = vmul.f32 %v492, %v504
        %v532 = vmul.f32 %v493, %v504
        %v533 = vmul.f32 %v494, %v504
        %v534 = vmul.f32 %v495, %v504
        %v535 = vmul.f32 %v496, %v504
        %v536 = vmul.f32 %v497, %v504
        %v537 = vmul.f32 %v498, %v504
        %v538 = vld [vmem:[%s2] sm:$0x1]
        %v540 = vlaneseq
        %v541 = vshrl.u32 %v540, 7
        %v542 = vsub.s32 0, %v541
        %v543 = vrot.slane %v538, %v542
        %v545 = vadd.f32 %v506, %v543
        %v546 = vadd.f32 %v507, %v543
        %v547 = vadd.f32 %v508, %v543
        %v548 = vadd.f32 %v509, %v543
        %v549 = vadd.f32 %v510, %v543
        %v550 = vadd.f32 %v511, %v543
        %v551 = vadd.f32 %v512, %v543
        %v552 = vadd.f32 %v513, %v543
        %v553 = vadd.f32 %v514, %v543
        %v554 = vadd.f32 %v515, %v543
        %v555 = vadd.f32 %v516, %v543
        %v556 = vadd.f32 %v517, %v543
        %v557 = vadd.f32 %v518, %v543
        %v558 = vadd.f32 %v519, %v543
        %v559 = vadd.f32 %v520, %v543
        %v560 = vadd.f32 %v521, %v543
        %v561 = vadd.f32 %v522, %v543
        %v562 = vadd.f32 %v523, %v543
        %v563 = vadd.f32 %v524, %v543
        %v564 = vadd.f32 %v525, %v543
        %v565 = vadd.f32 %v526, %v543
        %v566 = vadd.f32 %v527, %v543
        %v567 = vadd.f32 %v528, %v543
        %v568 = vadd.f32 %v529, %v543
        %v569 = vadd.f32 %v530, %v543
        %v570 = vadd.f32 %v531, %v543
        %v571 = vadd.f32 %v532, %v543
        %v572 = vadd.f32 %v533, %v543
        %v573 = vadd.f32 %v534, %v543
        %v574 = vadd.f32 %v535, %v543
        %v575 = vadd.f32 %v536, %v543
        %v576 = vadd.f32 %v537, %v543
        %vm577 = vcmp.gt.f32.partialorder %v545, 0.0
        %vm578 = vcmp.gt.f32.partialorder %v546, 0.0
        %vm579 = vcmp.gt.f32.partialorder %v547, 0.0
        %vm580 = vcmp.gt.f32.partialorder %v548, 0.0
        %vm581 = vcmp.gt.f32.partialorder %v549, 0.0
        %vm582 = vcmp.gt.f32.partialorder %v550, 0.0
        %vm583 = vcmp.gt.f32.partialorder %v551, 0.0
        %vm584 = vcmp.gt.f32.partialorder %v552, 0.0
        %vm585 = vcmp.gt.f32.partialorder %v553, 0.0
        %vm586 = vcmp.gt.f32.partialorder %v554, 0.0
        %vm587 = vcmp.gt.f32.partialorder %v555, 0.0
        %vm588 = vcmp.gt.f32.partialorder %v556, 0.0
        %vm589 = vcmp.gt.f32.partialorder %v557, 0.0
        %vm590 = vcmp.gt.f32.partialorder %v558, 0.0
        %vm591 = vcmp.gt.f32.partialorder %v559, 0.0
        %vm592 = vcmp.gt.f32.partialorder %v560, 0.0
        %vm593 = vcmp.gt.f32.partialorder %v561, 0.0
        %vm594 = vcmp.gt.f32.partialorder %v562, 0.0
        %vm595 = vcmp.gt.f32.partialorder %v563, 0.0
        %vm596 = vcmp.gt.f32.partialorder %v564, 0.0
        %vm597 = vcmp.gt.f32.partialorder %v565, 0.0
        %vm598 = vcmp.gt.f32.partialorder %v566, 0.0
        %vm599 = vcmp.gt.f32.partialorder %v567, 0.0
        %vm600 = vcmp.gt.f32.partialorder %v568, 0.0
        %vm601 = vcmp.gt.f32.partialorder %v569, 0.0
        %vm602 = vcmp.gt.f32.partialorder %v570, 0.0
        %vm603 = vcmp.gt.f32.partialorder %v571, 0.0
        %vm604 = vcmp.gt.f32.partialorder %v572, 0.0
        %vm605 = vcmp.gt.f32.partialorder %v573, 0.0
        %vm606 = vcmp.gt.f32.partialorder %v574, 0.0
        %vm607 = vcmp.gt.f32.partialorder %v575, 0.0
        %vm608 = vcmp.gt.f32.partialorder %v576, 0.0
        %v609 = vmul.f32 %v545, 0.1
        %v610 = vmul.f32 %v546, 0.1
        %v611 = vmul.f32 %v547, 0.1
        %v612 = vmul.f32 %v548, 0.1
        %v613 = vmul.f32 %v549, 0.1
        %v614 = vmul.f32 %v550, 0.1
        %v615 = vmul.f32 %v551, 0.1
        %v616 = vmul.f32 %v552, 0.1
        %v617 = vmul.f32 %v553, 0.1
        %v618 = vmul.f32 %v554, 0.1
        %v619 = vmul.f32 %v555, 0.1
        %v620 = vmul.f32 %v556, 0.1
        %v621 = vmul.f32 %v557, 0.1
        %v622 = vmul.f32 %v558, 0.1
        %v623 = vmul.f32 %v559, 0.1
        %v624 = vmul.f32 %v560, 0.1
        %v625 = vmul.f32 %v561, 0.1
        %v626 = vmul.f32 %v562, 0.1
        %v627 = vmul.f32 %v563, 0.1
        %v628 = vmul.f32 %v564, 0.1
        %v629 = vmul.f32 %v565, 0.1
        %v630 = vmul.f32 %v566, 0.1
        %v631 = vmul.f32 %v567, 0.1
        %v632 = vmul.f32 %v568, 0.1
        %v633 = vmul.f32 %v569, 0.1
        %v634 = vmul.f32 %v570, 0.1
        %v635 = vmul.f32 %v571, 0.1
        %v636 = vmul.f32 %v572, 0.1
        %v637 = vmul.f32 %v573, 0.1
        %v638 = vmul.f32 %v574, 0.1
        %v639 = vmul.f32 %v575, 0.1
        %v640 = vmul.f32 %v576, 0.1
        %v641 = vsel %vm577, %v545, %v609
        %v642 = vsel %vm578, %v546, %v610
        %v643 = vsel %vm579, %v547, %v611
        %v644 = vsel %vm580, %v548, %v612
        %v645 = vsel %vm581, %v549, %v613
        %v646 = vsel %vm582, %v550, %v614
        %v647 = vsel %vm583, %v551, %v615
        %v648 = vsel %vm584, %v552, %v616
        %v649 = vsel %vm585, %v553, %v617
        %v650 = vsel %vm586, %v554, %v618
        %v651 = vsel %vm587, %v555, %v619
        %v652 = vsel %vm588, %v556, %v620
        %v653 = vsel %vm589, %v557, %v621
        %v654 = vsel %vm590, %v558, %v622
        %v655 = vsel %vm591, %v559, %v623
        %v656 = vsel %vm592, %v560, %v624
        %v657 = vsel %vm593, %v561, %v625
        %v658 = vsel %vm594, %v562, %v626
        %v659 = vsel %vm595, %v563, %v627
        %v660 = vsel %vm596, %v564, %v628
        %v661 = vsel %vm597, %v565, %v629
        %v662 = vsel %vm598, %v566, %v630
        %v663 = vsel %vm599, %v567, %v631
        %v664 = vsel %vm600, %v568, %v632
        %v665 = vsel %vm601, %v569, %v633
        %v666 = vsel %vm602, %v570, %v634
        %v667 = vsel %vm603, %v571, %v635
        %v668 = vsel %vm604, %v572, %v636
        %v669 = vsel %vm605, %v573, %v637
        %v670 = vsel %vm606, %v574, %v638
        %v671 = vsel %vm607, %v575, %v639
        %v672 = vsel %vm608, %v576, %v640
        %s673 = scalar_lea.vmem [#allocation2], 24
        %vm674 = vcmask 31744
        %675 = vst.msk [vmem:[%s673 + $0x1] sm:$0xff] %vm674, %v641
        %676 = vst.msk [vmem:[%s673 + $0x9] sm:$0xff] %vm674, %v642
        %677 = vst.msk [vmem:[%s673 + $0x19] sm:$0xff] %vm674, %v643
        %678 = vst.msk [vmem:[%s673 + $0x21] sm:$0xff] %vm674, %v644
        %679 = vst.msk [vmem:[%s673 + $0x31] sm:$0xff] %vm674, %v645
        %680 = vst.msk [vmem:[%s673 + $0x39] sm:$0xff] %vm674, %v646
        %681 = vst.msk [vmem:[%s673 + $0x49] sm:$0xff] %vm674, %v647
        %682 = vst.msk [vmem:[%s673 + $0x51] sm:$0xff] %vm674, %v648
        %683 = vst.msk [vmem:[%s673 + $0x61] sm:$0xff] %vm674, %v649
        %684 = vst.msk [vmem:[%s673 + $0x69] sm:$0xff] %vm674, %v650
        %685 = vst.msk [vmem:[%s673 + $0x79] sm:$0xff] %vm674, %v651
        %686 = vst.msk [vmem:[%s673 + $0x81] sm:$0xff] %vm674, %v652
        %687 = vst.msk [vmem:[%s673 + $0x91] sm:$0xff] %vm674, %v653
        %688 = vst.msk [vmem:[%s673 + $0x99] sm:$0xff] %vm674, %v654
        %689 = vst.msk [vmem:[%s673 + $0xa9] sm:$0xff] %vm674, %v655
        %690 = vst.msk [vmem:[%s673 + $0xb1] sm:$0xff] %vm674, %v656
        %691 = vst.msk [vmem:[%s673 + $0xc1] sm:$0xff] %vm674, %v657
        %692 = vst.msk [vmem:[%s673 + $0xc9] sm:$0xff] %vm674, %v658
        %693 = vst.msk [vmem:[%s673 + $0xd9] sm:$0xff] %vm674, %v659
        %694 = vst.msk [vmem:[%s673 + $0xe1] sm:$0xff] %vm674, %v660
        %695 = vst.msk [vmem:[%s673 + $0xf1] sm:$0xff] %vm674, %v661
        %696 = vst.msk [vmem:[%s673 + $0xf9] sm:$0xff] %vm674, %v662
        %697 = vst.msk [vmem:[%s673 + $0x109] sm:$0xff] %vm674, %v663
        %698 = vst.msk [vmem:[%s673 + $0x111] sm:$0xff] %vm674, %v664
        %699 = vst.msk [vmem:[%s673 + $0x121] sm:$0xff] %vm674, %v665
        %700 = vst.msk [vmem:[%s673 + $0x129] sm:$0xff] %vm674, %v666
        %701 = vst.msk [vmem:[%s673 + $0x139] sm:$0xff] %vm674, %v667
        %702 = vst.msk [vmem:[%s673 + $0x141] sm:$0xff] %vm674, %v668
        %703 = vst.msk [vmem:[%s673 + $0x151] sm:$0xff] %vm674, %v669
        %704 = vst.msk [vmem:[%s673 + $0x159] sm:$0xff] %vm674, %v670
        %705 = vst.msk [vmem:[%s673 + $0x169] sm:$0xff] %vm674, %v671
        %706 = vst.msk [vmem:[%s673 + $0x171] sm:$0xff] %vm674, %v672
        %707 = vst.msk [vmem:[#allocation2] sm:$0xff] %vm674, 0.0
        %708 = vst.msk [vmem:[#allocation2 + $0x8] sm:$0xff] %vm674, 0.0
        %vm709 = vcmask 25600
        %710 = vst.msk [vmem:[#allocation2 + $0x10] sm:$0x3] %vm709, 0.0
        %s711 = scalar_lea.vmem [#allocation2], 408
        %712 = vst.msk [vmem:[%s711] sm:$0xff] %vm674, 0.0
        %713 = vst.msk [vmem:[%s711 + $0x8] sm:$0xff] %vm674, 0.0
        %714 = vst.msk [vmem:[%s711 + $0x10] sm:$0x3] %vm709, 0.0
        %vm715 = vcmask 24576
        %716 = vst.msk [vmem:[#allocation2] sm:$0x1] %vm715, 0.0
        %717 = vst.msk [vmem:[#allocation2 + $0x18] sm:$0x1] %vm715, 0.0
        %718 = vst.msk [vmem:[#allocation2 + $0x30] sm:$0x1] %vm715, 0.0
        %719 = vst.msk [vmem:[#allocation2 + $0x48] sm:$0x1] %vm715, 0.0
        %720 = vst.msk [vmem:[#allocation2 + $0x60] sm:$0x1] %vm715, 0.0
        %721 = vst.msk [vmem:[#allocation2 + $0x78] sm:$0x1] %vm715, 0.0
        %722 = vst.msk [vmem:[#allocation2 + $0x90] sm:$0x1] %vm715, 0.0
        %723 = vst.msk [vmem:[#allocation2 + $0xa8] sm:$0x1] %vm715, 0.0
        %724 = vst.msk [vmem:[#allocation2 + $0xc0] sm:$0x1] %vm715, 0.0
        %725 = vst.msk [vmem:[#allocation2 + $0xd8] sm:$0x1] %vm715, 0.0
        %726 = vst.msk [vmem:[#allocation2 + $0xf0] sm:$0x1] %vm715, 0.0
        %727 = vst.msk [vmem:[#allocation2 + $0x108] sm:$0x1] %vm715, 0.0
        %728 = vst.msk [vmem:[#allocation2 + $0x120] sm:$0x1] %vm715, 0.0
        %729 = vst.msk [vmem:[#allocation2 + $0x138] sm:$0x1] %vm715, 0.0
        %730 = vst.msk [vmem:[#allocation2 + $0x150] sm:$0x1] %vm715, 0.0
        %731 = vst.msk [vmem:[#allocation2 + $0x168] sm:$0x1] %vm715, 0.0
        %732 = vst.msk [vmem:[#allocation2 + $0x180] sm:$0x1] %vm715, 0.0
        %733 = vst.msk [vmem:[#allocation2 + $0x198] sm:$0x1] %vm715, 0.0
        %734 = vst.msk [vmem:[#allocation2 + $0x11] sm:$0x1] %vm715, 0.0
        %735 = vst.msk [vmem:[#allocation2 + $0x29] sm:$0x1] %vm715, 0.0
        %736 = vst.msk [vmem:[#allocation2 + $0x41] sm:$0x1] %vm715, 0.0
        %737 = vst.msk [vmem:[#allocation2 + $0x59] sm:$0x1] %vm715, 0.0
        %738 = vst.msk [vmem:[#allocation2 + $0x71] sm:$0x1] %vm715, 0.0
        %739 = vst.msk [vmem:[#allocation2 + $0x89] sm:$0x1] %vm715, 0.0
        %740 = vst.msk [vmem:[#allocation2 + $0xa1] sm:$0x1] %vm715, 0.0
        %741 = vst.msk [vmem:[#allocation2 + $0xb9] sm:$0x1] %vm715, 0.0
        %742 = vst.msk [vmem:[#allocation2 + $0xd1] sm:$0x1] %vm715, 0.0
        %743 = vst.msk [vmem:[#allocation2 + $0xe9] sm:$0x1] %vm715, 0.0
        %744 = vst.msk [vmem:[#allocation2 + $0x101] sm:$0x1] %vm715, 0.0
        %745 = vst.msk [vmem:[#allocation2 + $0x119] sm:$0x1] %vm715, 0.0
        %746 = vst.msk [vmem:[#allocation2 + $0x131] sm:$0x1] %vm715, 0.0
        %747 = vst.msk [vmem:[#allocation2 + $0x149] sm:$0x1] %vm715, 0.0
        %748 = vst.msk [vmem:[#allocation2 + $0x161] sm:$0x1] %vm715, 0.0
        %749 = vst.msk [vmem:[#allocation2 + $0x179] sm:$0x1] %vm715, 0.0
        %750 = vst.msk [vmem:[#allocation2 + $0x191] sm:$0x1] %vm715, 0.0
        %751 = vst.msk [vmem:[#allocation2 + $0x1a9] sm:$0x1] %vm715, 0.0
        %v752 = vld [vmem:[#allocation2] ss:$2 sm:$0xff]
        %s753 = scalar_lea.vmem [#allocation2], 48
        %v754 = vld [vmem:[%s753] ss:$2 sm:$0xff]
        %s755 = scalar_lea.vmem [#allocation2], 96
        %v756 = vld [vmem:[%s755] ss:$2 sm:$0xff]
        %s757 = scalar_lea.vmem [#allocation2], 144
        %v758 = vld [vmem:[%s757] ss:$2 sm:$0xff]
        %s759 = scalar_lea.vmem [#allocation2], 192
        %v760 = vld [vmem:[%s759] ss:$2 sm:$0xff]
        %s761 = scalar_lea.vmem [#allocation2], 240
        %v762 = vld [vmem:[%s761] ss:$2 sm:$0xff]
        %s763 = scalar_lea.vmem [#allocation2], 288
        %v764 = vld [vmem:[%s763] ss:$2 sm:$0xff]
        %s765 = scalar_lea.vmem [#allocation2], 336
        %v766 = vld [vmem:[%s765] ss:$2 sm:$0xff]
        %767 = vst.msk [vmem:[#allocation4] sm:$0xff] %vm674, %v752
        %768 = vst.msk [vmem:[#allocation4 + $0x8] sm:$0xff] %vm674, %v754
        %769 = vst.msk [vmem:[#allocation4 + $0x10] sm:$0xff] %vm674, %v756
        %770 = vst.msk [vmem:[#allocation4 + $0x18] sm:$0xff] %vm674, %v758
        %771 = vst.msk [vmem:[#allocation4 + $0x20] sm:$0xff] %vm674, %v760
        %772 = vst.msk [vmem:[#allocation4 + $0x28] sm:$0xff] %vm674, %v762
        %773 = vst.msk [vmem:[#allocation4 + $0x30] sm:$0xff] %vm674, %v764
        %774 = vst.msk [vmem:[#allocation4 + $0x38] sm:$0xff] %vm674, %v766
        %s775 = scalar_lea.vmem [#allocation2], 1
        %v776 = vld [vmem:[%s775] ss:$2 sm:$0xff]
        %s777 = scalar_lea.vmem [#allocation2], 49
        %v778 = vld [vmem:[%s777] ss:$2 sm:$0xff]
        %s779 = scalar_lea.vmem [#allocation2], 97
        %v780 = vld [vmem:[%s779] ss:$2 sm:$0xff]
        %s781 = scalar_lea.vmem [#allocation2], 145
        %v782 = vld [vmem:[%s781] ss:$2 sm:$0xff]
        %s783 = scalar_lea.vmem [#allocation2], 193
        %v784 = vld [vmem:[%s783] ss:$2 sm:$0xff]
        %s785 = scalar_lea.vmem [#allocation2], 241
        %v786 = vld [vmem:[%s785] ss:$2 sm:$0xff]
        %s787 = scalar_lea.vmem [#allocation2], 289
        %v788 = vld [vmem:[%s787] ss:$2 sm:$0xff]
        %s789 = scalar_lea.vmem [#allocation2], 337
        %v790 = vld [vmem:[%s789] ss:$2 sm:$0xff]
        %799 = vrot.lane.b32.xlu0 %v776, 4
        %v800 = vpop.permute.xlu0 %799
        %801 = vrot.lane.b32.xlu0 %v778, 4
        %v802 = vpop.permute.xlu0 %801
        %803 = vrot.lane.b32.xlu0 %v780, 4
        %v804 = vpop.permute.xlu0 %803
        %805 = vrot.lane.b32.xlu0 %v782, 4
        %v806 = vpop.permute.xlu0 %805
        %807 = vrot.lane.b32.xlu0 %v784, 4
        %v808 = vpop.permute.xlu0 %807
        %809 = vrot.lane.b32.xlu0 %v786, 4
        %v810 = vpop.permute.xlu0 %809
        %811 = vrot.lane.b32.xlu0 %v788, 4
        %v812 = vpop.permute.xlu0 %811
        %813 = vrot.lane.b32.xlu0 %v790, 4
        %v814 = vpop.permute.xlu0 %813
        %vm823 = vcmask 64544
        %824 = vst.msk [vmem:[#allocation4] sm:$0xff] %vm823, %v800
        %825 = vst.msk [vmem:[#allocation4 + $0x8] sm:$0xff] %vm823, %v802
        %826 = vst.msk [vmem:[#allocation4 + $0x10] sm:$0xff] %vm823, %v804
        %827 = vst.msk [vmem:[#allocation4 + $0x18] sm:$0xff] %vm823, %v806
        %828 = vst.msk [vmem:[#allocation4 + $0x20] sm:$0xff] %vm823, %v808
        %829 = vst.msk [vmem:[#allocation4 + $0x28] sm:$0xff] %vm823, %v810
        %830 = vst.msk [vmem:[#allocation4 + $0x30] sm:$0xff] %vm823, %v812
        %831 = vst.msk [vmem:[#allocation4 + $0x38] sm:$0xff] %vm823, %v814
        %s832 = scalar_lea.vmem [#allocation2], 2
        %v833 = vld [vmem:[%s832] ss:$2 sm:$0xff]
        %s834 = scalar_lea.vmem [#allocation2], 50
        %v835 = vld [vmem:[%s834] ss:$2 sm:$0xff]
        %s836 = scalar_lea.vmem [#allocation2], 98
        %v837 = vld [vmem:[%s836] ss:$2 sm:$0xff]
        %s838 = scalar_lea.vmem [#allocation2], 146
        %v839 = vld [vmem:[%s838] ss:$2 sm:$0xff]
        %s840 = scalar_lea.vmem [#allocation2], 194
        %v841 = vld [vmem:[%s840] ss:$2 sm:$0xff]
        %s842 = scalar_lea.vmem [#allocation2], 242
        %v843 = vld [vmem:[%s842] ss:$2 sm:$0xff]
        %s844 = scalar_lea.vmem [#allocation2], 290
        %v845 = vld [vmem:[%s844] ss:$2 sm:$0xff]
        %s846 = scalar_lea.vmem [#allocation2], 338
        %v847 = vld [vmem:[%s846] ss:$2 sm:$0xff]
        %856 = vrot.lane.b32.xlu0 %v833, 8
        %v857 = vpop.permute.xlu0 %856
        %858 = vrot.lane.b32.xlu0 %v835, 8
        %v859 = vpop.permute.xlu0 %858
        %860 = vrot.lane.b32.xlu0 %v837, 8
        %v861 = vpop.permute.xlu0 %860
        %862 = vrot.lane.b32.xlu0 %v839, 8
        %v863 = vpop.permute.xlu0 %862
        %864 = vrot.lane.b32.xlu0 %v841, 8
        %v865 = vpop.permute.xlu0 %864
        %866 = vrot.lane.b32.xlu0 %v843, 8
        %v867 = vpop.permute.xlu0 %866
        %868 = vrot.lane.b32.xlu0 %v845, 8
        %v869 = vpop.permute.xlu0 %868
        %870 = vrot.lane.b32.xlu0 %v847, 8
        %v871 = vpop.permute.xlu0 %870
        %vm880 = vcmask 97344
        %881 = vst.msk [vmem:[#allocation4] sm:$0xff] %vm880, %v857
        %882 = vst.msk [vmem:[#allocation4 + $0x8] sm:$0xff] %vm880, %v859
        %883 = vst.msk [vmem:[#allocation4 + $0x10] sm:$0xff] %vm880, %v861
        %884 = vst.msk [vmem:[#allocation4 + $0x18] sm:$0xff] %vm880, %v863
        %885 = vst.msk [vmem:[#allocation4 + $0x20] sm:$0xff] %vm880, %v865
        %886 = vst.msk [vmem:[#allocation4 + $0x28] sm:$0xff] %vm880, %v867
        %887 = vst.msk [vmem:[#allocation4 + $0x30] sm:$0xff] %vm880, %v869
        %888 = vst.msk [vmem:[#allocation4 + $0x38] sm:$0xff] %vm880, %v871
        %v889 = vld [vmem:[%s673] ss:$2 sm:$0xff]
        %s890 = scalar_lea.vmem %s673, 48 [#allocation2]
        %v891 = vld [vmem:[%s890] ss:$2 sm:$0xff]
        %s892 = scalar_lea.vmem %s673, 96 [#allocation2]
        %v893 = vld [vmem:[%s892] ss:$2 sm:$0xff]
        %s894 = scalar_lea.vmem %s673, 144 [#allocation2]
        %v895 = vld [vmem:[%s894] ss:$2 sm:$0xff]
        %s896 = scalar_lea.vmem %s673, 192 [#allocation2]
        %v897 = vld [vmem:[%s896] ss:$2 sm:$0xff]
        %s898 = scalar_lea.vmem %s673, 240 [#allocation2]
        %v899 = vld [vmem:[%s898] ss:$2 sm:$0xff]
        %s900 = scalar_lea.vmem %s673, 288 [#allocation2]
        %v901 = vld [vmem:[%s900] ss:$2 sm:$0xff]
        %s902 = scalar_lea.vmem %s673, 336 [#allocation2]
        %v903 = vld [vmem:[%s902] ss:$2 sm:$0xff]
        %912 = vrot.lane.b32.xlu0 %v889, 12
        %v913 = vpop.permute.xlu0 %912
        %914 = vrot.lane.b32.xlu0 %v891, 12
        %v915 = vpop.permute.xlu0 %914
        %916 = vrot.lane.b32.xlu0 %v893, 12
        %v917 = vpop.permute.xlu0 %916
        %918 = vrot.lane.b32.xlu0 %v895, 12
        %v919 = vpop.permute.xlu0 %918
        %920 = vrot.lane.b32.xlu0 %v897, 12
        %v921 = vpop.permute.xlu0 %920
        %922 = vrot.lane.b32.xlu0 %v899, 12
        %v923 = vpop.permute.xlu0 %922
        %924 = vrot.lane.b32.xlu0 %v901, 12
        %v925 = vpop.permute.xlu0 %924
        %926 = vrot.lane.b32.xlu0 %v903, 12
        %v927 = vpop.permute.xlu0 %926
        %vm936 = vcmask 130144
        %937 = vst.msk [vmem:[#allocation4] sm:$0xff] %vm936, %v913
        %938 = vst.msk [vmem:[#allocation4 + $0x8] sm:$0xff] %vm936, %v915
        %939 = vst.msk [vmem:[#allocation4 + $0x10] sm:$0xff] %vm936, %v917
        %940 = vst.msk [vmem:[#allocation4 + $0x18] sm:$0xff] %vm936, %v919
        %941 = vst.msk [vmem:[#allocation4 + $0x20] sm:$0xff] %vm936, %v921
        %942 = vst.msk [vmem:[#allocation4 + $0x28] sm:$0xff] %vm936, %v923
        %943 = vst.msk [vmem:[#allocation4 + $0x30] sm:$0xff] %vm936, %v925
        %944 = vst.msk [vmem:[#allocation4 + $0x38] sm:$0xff] %vm936, %v927
        %s945 = scalar_lea.vmem %s673, 1 [#allocation2]
        %v946 = vld [vmem:[%s945] ss:$2 sm:$0xff]
        %s947 = scalar_lea.vmem %s673, 49 [#allocation2]
        %v948 = vld [vmem:[%s947] ss:$2 sm:$0xff]
        %s949 = scalar_lea.vmem %s673, 97 [#allocation2]
        %v950 = vld [vmem:[%s949] ss:$2 sm:$0xff]
        %s951 = scalar_lea.vmem %s673, 145 [#allocation2]
        %v952 = vld [vmem:[%s951] ss:$2 sm:$0xff]
        %s953 = scalar_lea.vmem %s673, 193 [#allocation2]
        %v954 = vld [vmem:[%s953] ss:$2 sm:$0xff]
        %s955 = scalar_lea.vmem %s673, 241 [#allocation2]
        %v956 = vld [vmem:[%s955] ss:$2 sm:$0xff]
        %s957 = scalar_lea.vmem %s673, 289 [#allocation2]
        %v958 = vld [vmem:[%s957] ss:$2 sm:$0xff]
        %s959 = scalar_lea.vmem %s673, 337 [#allocation2]
        %v960 = vld [vmem:[%s959] ss:$2 sm:$0xff]
        %969 = vrot.lane.b32.xlu0 %v946, 16
        %v970 = vpop.permute.xlu0 %969
        %971 = vrot.lane.b32.xlu0 %v948, 16
        %v972 = vpop.permute.xlu0 %971
        %973 = vrot.lane.b32.xlu0 %v950, 16
        %v974 = vpop.permute.xlu0 %973
        %975 = vrot.lane.b32.xlu0 %v952, 16
        %v976 = vpop.permute.xlu0 %975
        %977 = vrot.lane.b32.xlu0 %v954, 16
        %v978 = vpop.permute.xlu0 %977
        %979 = vrot.lane.b32.xlu0 %v956, 16
        %v980 = vpop.permute.xlu0 %979
        %981 = vrot.lane.b32.xlu0 %v958, 16
        %v982 = vpop.permute.xlu0 %981
        %983 = vrot.lane.b32.xlu0 %v960, 16
        %v984 = vpop.permute.xlu0 %983
        %vm993 = vcmask 162944
        %994 = vst.msk [vmem:[#allocation4] sm:$0xff] %vm993, %v970
        %995 = vst.msk [vmem:[#allocation4 + $0x8] sm:$0xff] %vm993, %v972
        %996 = vst.msk [vmem:[#allocation4 + $0x10] sm:$0xff] %vm993, %v974
        %997 = vst.msk [vmem:[#allocation4 + $0x18] sm:$0xff] %vm993, %v976
        %998 = vst.msk [vmem:[#allocation4 + $0x20] sm:$0xff] %vm993, %v978
        %999 = vst.msk [vmem:[#allocation4 + $0x28] sm:$0xff] %vm993, %v980
        %1000 = vst.msk [vmem:[#allocation4 + $0x30] sm:$0xff] %vm993, %v982
        %1001 = vst.msk [vmem:[#allocation4 + $0x38] sm:$0xff] %vm993, %v984
        %s1002 = scalar_lea.vmem %s673, 2 [#allocation2]
        %v1003 = vld [vmem:[%s1002] ss:$2 sm:$0xff]
        %s1004 = scalar_lea.vmem %s673, 50 [#allocation2]
        %v1005 = vld [vmem:[%s1004] ss:$2 sm:$0xff]
        %s1006 = scalar_lea.vmem %s673, 98 [#allocation2]
        %v1007 = vld [vmem:[%s1006] ss:$2 sm:$0xff]
        %s1008 = scalar_lea.vmem %s673, 146 [#allocation2]
        %v1009 = vld [vmem:[%s1008] ss:$2 sm:$0xff]
        %s1010 = scalar_lea.vmem %s673, 194 [#allocation2]
        %v1011 = vld [vmem:[%s1010] ss:$2 sm:$0xff]
        %s1012 = scalar_lea.vmem %s673, 242 [#allocation2]
        %v1013 = vld [vmem:[%s1012] ss:$2 sm:$0xff]
        %s1014 = scalar_lea.vmem %s673, 290 [#allocation2]
        %v1015 = vld [vmem:[%s1014] ss:$2 sm:$0xff]
        %s1016 = scalar_lea.vmem %s673, 338 [#allocation2]
        %v1017 = vld [vmem:[%s1016] ss:$2 sm:$0xff]
        %1026 = vrot.lane.b32.xlu0 %v1003, 20
        %v1027 = vpop.permute.xlu0 %1026
        %1028 = vrot.lane.b32.xlu0 %v1005, 20
        %v1029 = vpop.permute.xlu0 %1028
        %1030 = vrot.lane.b32.xlu0 %v1007, 20
        %v1031 = vpop.permute.xlu0 %1030
        %1032 = vrot.lane.b32.xlu0 %v1009, 20
        %v1033 = vpop.permute.xlu0 %1032
        %1034 = vrot.lane.b32.xlu0 %v1011, 20
        %v1035 = vpop.permute.xlu0 %1034
        %1036 = vrot.lane.b32.xlu0 %v1013, 20
        %v1037 = vpop.permute.xlu0 %1036
        %1038 = vrot.lane.b32.xlu0 %v1015, 20
        %v1039 = vpop.permute.xlu0 %1038
        %1040 = vrot.lane.b32.xlu0 %v1017, 20
        %v1041 = vpop.permute.xlu0 %1040
        %vm1050 = vcmask 195744
        %1051 = vst.msk [vmem:[#allocation4] sm:$0xff] %vm1050, %v1027
        %1052 = vst.msk [vmem:[#allocation4 + $0x8] sm:$0xff] %vm1050, %v1029
        %1053 = vst.msk [vmem:[#allocation4 + $0x10] sm:$0xff] %vm1050, %v1031
        %1054 = vst.msk [vmem:[#allocation4 + $0x18] sm:$0xff] %vm1050, %v1033
        %1055 = vst.msk [vmem:[#allocation4 + $0x20] sm:$0xff] %vm1050, %v1035
        %1056 = vst.msk [vmem:[#allocation4 + $0x28] sm:$0xff] %vm1050, %v1037
        %1057 = vst.msk [vmem:[#allocation4 + $0x30] sm:$0xff] %vm1050, %v1039
        %1058 = vst.msk [vmem:[#allocation4 + $0x38] sm:$0xff] %vm1050, %v1041
        %s1059 = scalar_lea.vmem [#allocation2], 48
        %v1060 = vld [vmem:[%s1059] ss:$2 sm:$0xff]
        %s1061 = scalar_lea.vmem %s1059, 48 [#allocation2]
        %v1062 = vld [vmem:[%s1061] ss:$2 sm:$0xff]
        %s1063 = scalar_lea.vmem %s1059, 96 [#allocation2]
        %v1064 = vld [vmem:[%s1063] ss:$2 sm:$0xff]
        %s1065 = scalar_lea.vmem %s1059, 144 [#allocation2]
        %v1066 = vld [vmem:[%s1065] ss:$2 sm:$0xff]
        %s1067 = scalar_lea.vmem %s1059, 192 [#allocation2]
        %v1068 = vld [vmem:[%s1067] ss:$2 sm:$0xff]
        %s1069 = scalar_lea.vmem %s1059, 240 [#allocation2]
        %v1070 = vld [vmem:[%s1069] ss:$2 sm:$0xff]
        %s1071 = scalar_lea.vmem %s1059, 288 [#allocation2]
        %v1072 = vld [vmem:[%s1071] ss:$2 sm:$0xff]
        %s1073 = scalar_lea.vmem %s1059, 336 [#allocation2]
        %v1074 = vld [vmem:[%s1073] ss:$2 sm:$0xff]
        %1083 = vrot.lane.b32.xlu0 %v1060, 24
        %v1084 = vpop.permute.xlu0 %1083
        %1085 = vrot.lane.b32.xlu0 %v1062, 24
        %v1086 = vpop.permute.xlu0 %1085
        %1087 = vrot.lane.b32.xlu0 %v1064, 24
        %v1088 = vpop.permute.xlu0 %1087
        %1089 = vrot.lane.b32.xlu0 %v1066, 24
        %v1090 = vpop.permute.xlu0 %1089
        %1091 = vrot.lane.b32.xlu0 %v1068, 24
        %v1092 = vpop.permute.xlu0 %1091
        %1093 = vrot.lane.b32.xlu0 %v1070, 24
        %v1094 = vpop.permute.xlu0 %1093
        %1095 = vrot.lane.b32.xlu0 %v1072, 24
        %v1096 = vpop.permute.xlu0 %1095
        %1097 = vrot.lane.b32.xlu0 %v1074, 24
        %v1098 = vpop.permute.xlu0 %1097
        %vm1107 = vcmask 228544
        %1108 = vst.msk [vmem:[#allocation4] sm:$0xff] %vm1107, %v1084
        %1109 = vst.msk [vmem:[#allocation4 + $0x8] sm:$0xff] %vm1107, %v1086
        %1110 = vst.msk [vmem:[#allocation4 + $0x10] sm:$0xff] %vm1107, %v1088
        %1111 = vst.msk [vmem:[#allocation4 + $0x18] sm:$0xff] %vm1107, %v1090
        %1112 = vst.msk [vmem:[#allocation4 + $0x20] sm:$0xff] %vm1107, %v1092
        %1113 = vst.msk [vmem:[#allocation4 + $0x28] sm:$0xff] %vm1107, %v1094
        %1114 = vst.msk [vmem:[#allocation4 + $0x30] sm:$0xff] %vm1107, %v1096
        %1115 = vst.msk [vmem:[#allocation4 + $0x38] sm:$0xff] %vm1107, %v1098
        %s1116 = scalar_lea.vmem %s1059, 1 [#allocation2]
        %v1117 = vld [vmem:[%s1116] ss:$2 sm:$0xff]
        %s1118 = scalar_lea.vmem %s1059, 49 [#allocation2]
        %v1119 = vld [vmem:[%s1118] ss:$2 sm:$0xff]
        %s1120 = scalar_lea.vmem %s1059, 97 [#allocation2]
        %v1121 = vld [vmem:[%s1120] ss:$2 sm:$0xff]
        %s1122 = scalar_lea.vmem %s1059, 145 [#allocation2]
        %v1123 = vld [vmem:[%s1122] ss:$2 sm:$0xff]
        %s1124 = scalar_lea.vmem %s1059, 193 [#allocation2]
        %v1125 = vld [vmem:[%s1124] ss:$2 sm:$0xff]
        %s1126 = scalar_lea.vmem %s1059, 241 [#allocation2]
        %v1127 = vld [vmem:[%s1126] ss:$2 sm:$0xff]
        %s1128 = scalar_lea.vmem %s1059, 289 [#allocation2]
        %v1129 = vld [vmem:[%s1128] ss:$2 sm:$0xff]
        %s1130 = scalar_lea.vmem %s1059, 337 [#allocation2]
        %v1131 = vld [vmem:[%s1130] ss:$2 sm:$0xff]
        %1140 = vrot.lane.b32.xlu0 %v1117, 28
        %v1141 = vpop.permute.xlu0 %1140
        %1142 = vrot.lane.b32.xlu0 %v1119, 28
        %v1143 = vpop.permute.xlu0 %1142
        %1144 = vrot.lane.b32.xlu0 %v1121, 28
        %v1145 = vpop.permute.xlu0 %1144
        %1146 = vrot.lane.b32.xlu0 %v1123, 28
        %v1147 = vpop.permute.xlu0 %1146
        %1148 = vrot.lane.b32.xlu0 %v1125, 28
        %v1149 = vpop.permute.xlu0 %1148
        %1150 = vrot.lane.b32.xlu0 %v1127, 28
        %v1151 = vpop.permute.xlu0 %1150
        %1152 = vrot.lane.b32.xlu0 %v1129, 28
        %v1153 = vpop.permute.xlu0 %1152
        %1154 = vrot.lane.b32.xlu0 %v1131, 28
        %v1155 = vpop.permute.xlu0 %1154
        %vm1164 = vcmask 261344
        %1165 = vst.msk [vmem:[#allocation4] sm:$0xff] %vm1164, %v1141
        %1166 = vst.msk [vmem:[#allocation4 + $0x8] sm:$0xff] %vm1164, %v1143
        %1167 = vst.msk [vmem:[#allocation4 + $0x10] sm:$0xff] %vm1164, %v1145
        %1168 = vst.msk [vmem:[#allocation4 + $0x18] sm:$0xff] %vm1164, %v1147
        %1169 = vst.msk [vmem:[#allocation4 + $0x20] sm:$0xff] %vm1164, %v1149
        %1170 = vst.msk [vmem:[#allocation4 + $0x28] sm:$0xff] %vm1164, %v1151
        %1171 = vst.msk [vmem:[#allocation4 + $0x30] sm:$0xff] %vm1164, %v1153
        %1172 = vst.msk [vmem:[#allocation4 + $0x38] sm:$0xff] %vm1164, %v1155
        %s1173 = scalar_lea.vmem %s1059, 2 [#allocation2]
        %v1174 = vld [vmem:[%s1173] ss:$2 sm:$0xff]
        %s1175 = scalar_lea.vmem %s1059, 50 [#allocation2]
        %v1176 = vld [vmem:[%s1175] ss:$2 sm:$0xff]
        %s1177 = scalar_lea.vmem %s1059, 98 [#allocation2]
        %v1178 = vld [vmem:[%s1177] ss:$2 sm:$0xff]
        %s1179 = scalar_lea.vmem %s1059, 146 [#allocation2]
        %v1180 = vld [vmem:[%s1179] ss:$2 sm:$0xff]
        %s1181 = scalar_lea.vmem %s1059, 194 [#allocation2]
        %v1182 = vld [vmem:[%s1181] ss:$2 sm:$0xff]
        %s1183 = scalar_lea.vmem %s1059, 242 [#allocation2]
        %v1184 = vld [vmem:[%s1183] ss:$2 sm:$0xff]
        %s1185 = scalar_lea.vmem %s1059, 290 [#allocation2]
        %v1186 = vld [vmem:[%s1185] ss:$2 sm:$0xff]
        %s1187 = scalar_lea.vmem %s1059, 338 [#allocation2]
        %v1188 = vld [vmem:[%s1187] ss:$2 sm:$0xff]
        %1197 = vrot.lane.b32.xlu0 %v1174, 32
        %v1198 = vpop.permute.xlu0 %1197
        %1199 = vrot.lane.b32.xlu0 %v1176, 32
        %v1200 = vpop.permute.xlu0 %1199
        %1201 = vrot.lane.b32.xlu0 %v1178, 32
        %v1202 = vpop.permute.xlu0 %1201
        %1203 = vrot.lane.b32.xlu0 %v1180, 32
        %v1204 = vpop.permute.xlu0 %1203
        %1205 = vrot.lane.b32.xlu0 %v1182, 32
        %v1206 = vpop.permute.xlu0 %1205
        %1207 = vrot.lane.b32.xlu0 %v1184, 32
        %v1208 = vpop.permute.xlu0 %1207
        %1209 = vrot.lane.b32.xlu0 %v1186, 32
        %v1210 = vpop.permute.xlu0 %1209
        %1211 = vrot.lane.b32.xlu0 %v1188, 32
        %v1212 = vpop.permute.xlu0 %1211
        %vm1221 = vcmask 294144
        %1222 = vst.msk [vmem:[#allocation4] sm:$0xff] %vm1221, %v1198
        %1223 = vst.msk [vmem:[#allocation4 + $0x8] sm:$0xff] %vm1221, %v1200
        %1224 = vst.msk [vmem:[#allocation4 + $0x10] sm:$0xff] %vm1221, %v1202
        %1225 = vst.msk [vmem:[#allocation4 + $0x18] sm:$0xff] %vm1221, %v1204
        %1226 = vst.msk [vmem:[#allocation4 + $0x20] sm:$0xff] %vm1221, %v1206
        %1227 = vst.msk [vmem:[#allocation4 + $0x28] sm:$0xff] %vm1221, %v1208
        %1228 = vst.msk [vmem:[#allocation4 + $0x30] sm:$0xff] %vm1221, %v1210
        %1229 = vst.msk [vmem:[#allocation4 + $0x38] sm:$0xff] %vm1221, %v1212
        %v1230 = vld [vmem:[#allocation4] sm:$0xff]
        %v1231 = vld [vmem:[#allocation4 + $0x8] sm:$0xff]
        %v1232 = vld [vmem:[#allocation4 + $0x10] sm:$0xff]
        %v1233 = vld [vmem:[#allocation4 + $0x18] sm:$0xff]
        %v1234 = vld [vmem:[#allocation4 + $0x20] sm:$0xff]
        %v1235 = vld [vmem:[#allocation4 + $0x28] sm:$0xff]
        %v1236 = vld [vmem:[#allocation4 + $0x30] sm:$0xff]
        %v1237 = vld [vmem:[#allocation4 + $0x38] sm:$0xff]
        %v1238 = vpack.c.bf16 %v1231, %v1230
        %v1239 = vpack.c.bf16 %v1233, %v1232
        %v1240 = vpack.c.bf16 %v1235, %v1234
        %v1241 = vpack.c.bf16 %v1237, %v1236
        %v1242 = vld [vmem:[%s3] sm:$0xf]
        %v1243 = vld [vmem:[%s3 + $0x4] sm:$0xf]
        %v1244 = vld [vmem:[%s3 + $0x8] sm:$0xf]
        %v1245 = vld [vmem:[%s3 + $0xc] sm:$0xf]
        %v1246 = vld [vmem:[%s3 + $0x10] sm:$0x3]
        %v1252 = vunpack.c.l.b16 %v1242
        %v1253 = vunpack.c.l.b16 %v1243
        %v1254 = vunpack.c.l.b16 %v1244
        %v1255 = vunpack.c.l.b16 %v1245
        %v1256 = vunpack.c.l.b16 %v1246
        %v1257 = vpack.c.b16 %v1253, %v1252
        %v1258 = vpack.c.b16 %v1255, %v1254
        %v1259 = vpack.c.b16 %v1256, %v1256
        %vm1262 = vcmask 293888
        %v1264 = vsel %vm1262, %v1238, 0
        %v1267 = vsel %vm1262, %v1239, 0
        %v1270 = vsel %vm1262, %v1240, 0
        %v1273 = vsel %vm1262, %v1241, 0
        %vm1275 = vcmask 1041408
        %v1277 = vsel %vm1275, %v1259, 0
        %1279 = vmatprep.subr.bf16.mxu0 0
        %1280 = vmatpush1.bf16.msra.mxu0 %v1257
        %1281 = vmatprep.subr.bf16.mxu0 0
        %1282 = vmatpush1.bf16.msra.mxu0 %v1258
        %1283 = vmatprep.subr.bf16.mxu0 0
        %1284 = vmatpush1.bf16.msra.mxu0 %v1277
        %1285 = vmatprep.subr.bf16.mxu0 0
        %1286 = vmatpush1.bf16.msra.mxu0 0
        %1287 = vmatprep.subr.bf16.mxu0 0
        %1288 = vmatpush1.bf16.msra.mxu0 0
        %1289 = vmatprep.subr.bf16.mxu0 0
        %1290 = vmatpush1.bf16.msra.mxu0 0
        %1291 = vmatprep.subr.bf16.mxu0 0
        %1292 = vmatpush1.bf16.msra.mxu0 0
        %1293 = vmatprep.subr.bf16.mxu0 0
        %1294 = vmatpush1.bf16.msra.mxu0 0
        %1295 = vmatprep.subr.bf16.mxu0 0
        %1296 = vmatpush1.bf16.msra.mxu0 0
        %1297 = vmatprep.subr.bf16.mxu0 0
        %1298 = vmatpush1.bf16.msra.mxu0 0
        %1299 = vmatprep.subr.bf16.mxu0 0
        %1300 = vmatpush1.bf16.msra.mxu0 0
        %1301 = vmatprep.subr.bf16.mxu0 0
        %1302 = vmatpush1.bf16.msra.mxu0 0
        %1303 = vmatprep.subr.bf16.mxu0 0
        %1304 = vmatpush1.bf16.msra.mxu0 0
        %1305 = vmatprep.subr.bf16.mxu0 0
        %1306 = vmatpush1.bf16.msra.mxu0 0
        %1307 = vmatprep.subr.bf16.mxu0 0
        %1308 = vmatpush1.bf16.msra.mxu0 0
        %1309 = vmatprep.subr.bf16.mxu0 0
        %1310 = vmatpush1.bf16.msra.mxu0 0
        %1311 = vmatprep.mubr.bf16.mxu0 0
        %1312 = vmatmul.mubr.bf16.gmra.mrb[0].mxu0 %v1264
        %v1313 = vpop.f32.mrb[0].mxu0
        %v1314 = vadd.f32 0.0, %v1313
        %v1315 = vpop.f32.mrb[0].mxu0
        %v1316 = vpop.f32.mrb[0].mxu0
        %v1317 = vadd.f32 0.0, %v1316
        %v1318 = vpop.f32.mrb[0].mxu0
        %1319 = vmatprep.mubr.bf16.mxu0 0
        %1320 = vmatmul.mubr.bf16.gmra.mrb[0].mxu0 %v1267
        %v1321 = vpop.f32.mrb[0].mxu0
        %v1322 = vadd.f32 0.0, %v1321
        %v1323 = vpop.f32.mrb[0].mxu0
        %v1324 = vpop.f32.mrb[0].mxu0
        %v1325 = vadd.f32 0.0, %v1324
        %v1326 = vpop.f32.mrb[0].mxu0
        %1327 = vmatprep.mubr.bf16.mxu0 0
        %1328 = vmatmul.mubr.bf16.gmra.mrb[0].mxu0 %v1270
        %v1329 = vpop.f32.mrb[0].mxu0
        %v1330 = vadd.f32 0.0, %v1329
        %v1331 = vpop.f32.mrb[0].mxu0
        %v1332 = vpop.f32.mrb[0].mxu0
        %v1333 = vadd.f32 0.0, %v1332
        %v1334 = vpop.f32.mrb[0].mxu0
        %1335 = vmatprep.mubr.bf16.mxu0 0
        %1336 = vmatmul.mubr.bf16.gmra.mrb[0].mxu0 %v1273
        %v1337 = vpop.f32.mrb[0].mxu0
        %v1338 = vadd.f32 0.0, %v1337
        %v1339 = vpop.f32.mrb[0].mxu0
        %v1340 = vpop.f32.mrb[0].mxu0
        %v1341 = vadd.f32 0.0, %v1340
        %v1342 = vpop.f32.mrb[0].mxu0
        %1343 = vdwg.mxu0
        %v1344 = vld [vmem:[%s945] ss:$2 sm:$0xff]
        %v1345 = vld [vmem:[%s947] ss:$2 sm:$0xff]
        %v1346 = vld [vmem:[%s949] ss:$2 sm:$0xff]
        %v1347 = vld [vmem:[%s951] ss:$2 sm:$0xff]
        %v1348 = vld [vmem:[%s953] ss:$2 sm:$0xff]
        %v1349 = vld [vmem:[%s955] ss:$2 sm:$0xff]
        %v1350 = vld [vmem:[%s957] ss:$2 sm:$0xff]
        %v1351 = vld [vmem:[%s959] ss:$2 sm:$0xff]
        %v1352 = vld [vmem:[%s7] sm:$0xf]
        %v1354 = vsel %vm674, %v1344, 0
        %v1357 = vsel %vm674, %v1345, 0
        %v1360 = vsel %vm674, %v1346, 0
        %v1363 = vsel %vm674, %v1347, 0
        %v1366 = vsel %vm674, %v1348, 0
        %v1369 = vsel %vm674, %v1349, 0
        %v1372 = vsel %vm674, %v1350, 0
        %v1375 = vsel %vm674, %v1351, 0
        %vm1377 = vcmask 1043456
        %v1379 = vsel %vm1377, %v1352, 0
        %1381 = vmatprep.subr.mxu0 0.0
        %1382 = vmatpush1.msra.mxu0 %v1379
        %1383 = vmatprep.subr.mxu0 0.0
        %1384 = vmatpush1.msra.mxu0 0.0
        %1385 = vmatprep.subr.mxu0 0.0
        %1386 = vmatpush1.msra.mxu0 0.0
        %1387 = vmatprep.subr.mxu0 0.0
        %1388 = vmatpush1.msra.mxu0 0.0
        %1389 = vmatprep.subr.mxu0 0.0
        %1390 = vmatpush1.msra.mxu0 0.0
        %1391 = vmatprep.subr.mxu0 0.0
        %1392 = vmatpush1.msra.mxu0 0.0
        %1393 = vmatprep.subr.mxu0 0.0
        %1394 = vmatpush1.msra.mxu0 0.0
        %1395 = vmatprep.subr.mxu0 0.0
        %1396 = vmatpush1.msra.mxu0 0.0
        %1397 = vmatprep.subr.mxu0 0.0
        %1398 = vmatpush1.msra.mxu0 0.0
        %1399 = vmatprep.subr.mxu0 0.0
        %1400 = vmatpush1.msra.mxu0 0.0
        %1401 = vmatprep.subr.mxu0 0.0
        %1402 = vmatpush1.msra.mxu0 0.0
        %1403 = vmatprep.subr.mxu0 0.0
        %1404 = vmatpush1.msra.mxu0 0.0
        %1405 = vmatprep.subr.mxu0 0.0
        %1406 = vmatpush1.msra.mxu0 0.0
        %1407 = vmatprep.subr.mxu0 0.0
        %1408 = vmatpush1.msra.mxu0 0.0
        %1409 = vmatprep.subr.mxu0 0.0
        %1410 = vmatpush1.msra.mxu0 0.0
        %1411 = vmatprep.subr.mxu0 0.0
        %1412 = vmatpush1.msra.mxu0 0.0
        %1413 = vmatprep.subr.mxu0 0.0
        %1414 = vmatpush1.msra.mxu0 0.0
        %1415 = vmatprep.subr.mxu0 0.0
        %1416 = vmatpush1.msra.mxu0 0.0
        %1417 = vmatprep.subr.mxu0 0.0
        %1418 = vmatpush1.msra.mxu0 0.0
        %1419 = vmatprep.subr.mxu0 0.0
        %1420 = vmatpush1.msra.mxu0 0.0
        %1421 = vmatprep.subr.mxu0 0.0
        %1422 = vmatpush1.msra.mxu0 0.0
        %1423 = vmatprep.subr.mxu0 0.0
        %1424 = vmatpush1.msra.mxu0 0.0
        %1425 = vmatprep.subr.mxu0 0.0
        %1426 = vmatpush1.msra.mxu0 0.0
        %1427 = vmatprep.subr.mxu0 0.0
        %1428 = vmatpush1.msra.mxu0 0.0
        %1429 = vmatprep.subr.mxu0 0.0
        %1430 = vmatpush1.msra.mxu0 0.0
        %1431 = vmatprep.subr.mxu0 0.0
        %1432 = vmatpush1.msra.mxu0 0.0
        %1433 = vmatprep.subr.mxu0 0.0
        %1434 = vmatpush1.msra.mxu0 0.0
        %1435 = vmatprep.subr.mxu0 0.0
        %1436 = vmatpush1.msra.mxu0 0.0
        %1437 = vmatprep.subr.mxu0 0.0
        %1438 = vmatpush1.msra.mxu0 0.0
        %1439 = vmatprep.subr.mxu0 0.0
        %1440 = vmatpush1.msra.mxu0 0.0
        %1441 = vmatprep.subr.mxu0 0.0
        %1442 = vmatpush1.msra.mxu0 0.0
        %1443 = vmatprep.subr.mxu0 0.0
        %1444 = vmatpush1.msra.mxu0 0.0
        %1445 = vmatprep.mubr.f32.mxu0 0.0
        %1446 = vmatmul.mubr.f32.gmra.mrb[0].mxu0 %v1354
        %v1447 = vpop.f32.mrb[0].mxu0
        %v1448 = vadd.f32 0.0, %v1447
        %v1449 = vpop.f32.mrb[0].mxu0
        %1450 = vmatprep.mubr.f32.mxu0 0.0
        %1451 = vmatmul.mubr.f32.gmra.mrb[0].mxu0 %v1357
        %v1452 = vpop.f32.mrb[0].mxu0
        %v1453 = vadd.f32 0.0, %v1452
        %v1454 = vpop.f32.mrb[0].mxu0
        %1455 = vmatprep.mubr.f32.mxu0 0.0
        %1456 = vmatmul.mubr.f32.gmra.mrb[0].mxu0 %v1360
        %v1457 = vpop.f32.mrb[0].mxu0
        %v1458 = vadd.f32 0.0, %v1457
        %v1459 = vpop.f32.mrb[0].mxu0
        %1460 = vmatprep.mubr.f32.mxu0 0.0
        %1461 = vmatmul.mubr.f32.gmra.mrb[0].mxu0 %v1363
        %v1462 = vpop.f32.mrb[0].mxu0
        %v1463 = vadd.f32 0.0, %v1462
        %v1464 = vpop.f32.mrb[0].mxu0
        %1465 = vmatprep.mubr.f32.mxu0 0.0
        %1466 = vmatmul.mubr.f32.gmra.mrb[0].mxu0 %v1366
        %v1467 = vpop.f32.mrb[0].mxu0
        %v1468 = vadd.f32 0.0, %v1467
        %v1469 = vpop.f32.mrb[0].mxu0
        %1470 = vmatprep.mubr.f32.mxu0 0.0
        %1471 = vmatmul.mubr.f32.gmra.mrb[0].mxu0 %v1369
        %v1472 = vpop.f32.mrb[0].mxu0
        %v1473 = vadd.f32 0.0, %v1472
        %v1474 = vpop.f32.mrb[0].mxu0
        %1475 = vmatprep.mubr.f32.mxu0 0.0
        %1476 = vmatmul.mubr.f32.gmra.mrb[0].mxu0 %v1372
        %v1477 = vpop.f32.mrb[0].mxu0
        %v1478 = vadd.f32 0.0, %v1477
        %v1479 = vpop.f32.mrb[0].mxu0
        %1480 = vmatprep.mubr.f32.mxu0 0.0
        %1481 = vmatmul.mubr.f32.gmra.mrb[0].mxu0 %v1375
        %v1482 = vpop.f32.mrb[0].mxu0
        %v1483 = vadd.f32 0.0, %v1482
        %v1484 = vpop.f32.mrb[0].mxu0
        %1485 = vdwg.mxu0
        %v1486 = vld [vmem:[%s4] sm:$0x1]
        %v1488 = vlaneseq
        %v1489 = vshrl.u32 %v1488, 7
        %v1490 = vsub.s32 0, %v1489
        %v1491 = vrot.slane %v1486, %v1490
        %v1493 = vmul.f32 %v1314, %v1491
        %v1494 = vmul.f32 %v1317, %v1491
        %v1495 = vmul.f32 %v1322, %v1491
        %v1496 = vmul.f32 %v1325, %v1491
        %v1497 = vmul.f32 %v1330, %v1491
        %v1498 = vmul.f32 %v1333, %v1491
        %v1499 = vmul.f32 %v1338, %v1491
        %v1500 = vmul.f32 %v1341, %v1491
        %v1501 = vld [vmem:[%s5] sm:$0x1]
        %v1503 = vlaneseq
        %v1504 = vshrl.u32 %v1503, 7
        %v1505 = vsub.s32 0, %v1504
        %v1506 = vrot.slane %v1501, %v1505
        %v1508 = vadd.f32 %v1493, %v1506
        %v1509 = vadd.f32 %v1494, %v1506
        %v1510 = vadd.f32 %v1495, %v1506
        %v1511 = vadd.f32 %v1496, %v1506
        %v1512 = vadd.f32 %v1497, %v1506
        %v1513 = vadd.f32 %v1498, %v1506
        %v1514 = vadd.f32 %v1499, %v1506
        %v1515 = vadd.f32 %v1500, %v1506
        %vm1516 = vcmp.gt.f32.partialorder %v1508, 0.0
        %vm1517 = vcmp.gt.f32.partialorder %v1509, 0.0
        %vm1518 = vcmp.gt.f32.partialorder %v1510, 0.0
        %vm1519 = vcmp.gt.f32.partialorder %v1511, 0.0
        %vm1520 = vcmp.gt.f32.partialorder %v1512, 0.0
        %vm1521 = vcmp.gt.f32.partialorder %v1513, 0.0
        %vm1522 = vcmp.gt.f32.partialorder %v1514, 0.0
        %vm1523 = vcmp.gt.f32.partialorder %v1515, 0.0
        %v1524 = vmul.f32 %v1508, 0.1
        %v1525 = vmul.f32 %v1509, 0.1
        %v1526 = vmul.f32 %v1510, 0.1
        %v1527 = vmul.f32 %v1511, 0.1
        %v1528 = vmul.f32 %v1512, 0.1
        %v1529 = vmul.f32 %v1513, 0.1
        %v1530 = vmul.f32 %v1514, 0.1
        %v1531 = vmul.f32 %v1515, 0.1
        %v1532 = vsel %vm1516, %v1508, %v1524
        %v1533 = vsel %vm1517, %v1509, %v1525
        %v1534 = vsel %vm1518, %v1510, %v1526
        %v1535 = vsel %vm1519, %v1511, %v1527
        %v1536 = vsel %vm1520, %v1512, %v1528
        %v1537 = vsel %vm1521, %v1513, %v1529
        %v1538 = vsel %vm1522, %v1514, %v1530
        %v1539 = vsel %vm1523, %v1515, %v1531
        %s1540 = scalar_lea.vmem [#allocation3], 16
        %vm1541 = vcmask 64512
        %1542 = vst.msk [vmem:[%s1540 + $0x1] sm:$0xff] %vm1541, %v1532
        %1543 = vst.msk [vmem:[%s1540 + $0x11] sm:$0xff] %vm1541, %v1533
        %1544 = vst.msk [vmem:[%s1540 + $0x21] sm:$0xff] %vm1541, %v1534
        %1545 = vst.msk [vmem:[%s1540 + $0x31] sm:$0xff] %vm1541, %v1535
        %1546 = vst.msk [vmem:[%s1540 + $0x41] sm:$0xff] %vm1541, %v1536
        %1547 = vst.msk [vmem:[%s1540 + $0x51] sm:$0xff] %vm1541, %v1537
        %1548 = vst.msk [vmem:[%s1540 + $0x61] sm:$0xff] %vm1541, %v1538
        %1549 = vst.msk [vmem:[%s1540 + $0x71] sm:$0xff] %vm1541, %v1539
        %1550 = vst.msk [vmem:[#allocation3] sm:$0xff] %vm1541, 0.0
        %vm1551 = vcmask 58368
        %1552 = vst.msk [vmem:[#allocation3 + $0x8] sm:$0x3] %vm1551, 0.0
        %s1553 = scalar_lea.vmem [#allocation3], 144
        %1554 = vst.msk [vmem:[%s1553] sm:$0xff] %vm1541, 0.0
        %1555 = vst.msk [vmem:[%s1553 + $0x8] sm:$0x3] %vm1551, 0.0
        %vm1556 = vcmask 57344
        %1557 = vst.msk [vmem:[#allocation3] sm:$0x1] %vm1556, 0.0
        %1558 = vst.msk [vmem:[#allocation3 + $0x10] sm:$0x1] %vm1556, 0.0
        %1559 = vst.msk [vmem:[#allocation3 + $0x20] sm:$0x1] %vm1556, 0.0
        %1560 = vst.msk [vmem:[#allocation3 + $0x30] sm:$0x1] %vm1556, 0.0
        %1561 = vst.msk [vmem:[#allocation3 + $0x40] sm:$0x1] %vm1556, 0.0
        %1562 = vst.msk [vmem:[#allocation3 + $0x50] sm:$0x1] %vm1556, 0.0
        %1563 = vst.msk [vmem:[#allocation3 + $0x60] sm:$0x1] %vm1556, 0.0
        %1564 = vst.msk [vmem:[#allocation3 + $0x70] sm:$0x1] %vm1556, 0.0
        %1565 = vst.msk [vmem:[#allocation3 + $0x80] sm:$0x1] %vm1556, 0.0
        %1566 = vst.msk [vmem:[#allocation3 + $0x90] sm:$0x1] %vm1556, 0.0
        %1567 = vst.msk [vmem:[#allocation3 + $0x9] sm:$0x1] %vm1556, 0.0
        %1568 = vst.msk [vmem:[#allocation3 + $0x19] sm:$0x1] %vm1556, 0.0
        %1569 = vst.msk [vmem:[#allocation3 + $0x29] sm:$0x1] %vm1556, 0.0
        %1570 = vst.msk [vmem:[#allocation3 + $0x39] sm:$0x1] %vm1556, 0.0
        %1571 = vst.msk [vmem:[#allocation3 + $0x49] sm:$0x1] %vm1556, 0.0
        %1572 = vst.msk [vmem:[#allocation3 + $0x59] sm:$0x1] %vm1556, 0.0
        %1573 = vst.msk [vmem:[#allocation3 + $0x69] sm:$0x1] %vm1556, 0.0
        %1574 = vst.msk [vmem:[#allocation3 + $0x79] sm:$0x1] %vm1556, 0.0
        %1575 = vst.msk [vmem:[#allocation3 + $0x89] sm:$0x1] %vm1556, 0.0
        %1576 = vst.msk [vmem:[#allocation3 + $0x99] sm:$0x1] %vm1556, 0.0
        %v1577 = vld [vmem:[#allocation3] sm:$0xff]
        %v1578 = vld [vmem:[#allocation3 + $0x10] sm:$0xff]
        %v1579 = vld [vmem:[#allocation3 + $0x20] sm:$0xff]
        %v1580 = vld [vmem:[#allocation3 + $0x30] sm:$0xff]
        %v1581 = vld [vmem:[#allocation3 + $0x40] sm:$0xff]
        %v1582 = vld [vmem:[#allocation3 + $0x50] sm:$0xff]
        %v1583 = vld [vmem:[#allocation3 + $0x60] sm:$0xff]
        %v1584 = vld [vmem:[#allocation3 + $0x70] sm:$0xff]
        %1585 = vst.msk [vmem:[#allocation4] sm:$0xff] %vm1541, %v1577
        %1586 = vst.msk [vmem:[#allocation4 + $0x8] sm:$0xff] %vm1541, %v1578
        %1587 = vst.msk [vmem:[#allocation4 + $0x10] sm:$0xff] %vm1541, %v1579
        %1588 = vst.msk [vmem:[#allocation4 + $0x18] sm:$0xff] %vm1541, %v1580
        %1589 = vst.msk [vmem:[#allocation4 + $0x20] sm:$0xff] %vm1541, %v1581
        %1590 = vst.msk [vmem:[#allocation4 + $0x28] sm:$0xff] %vm1541, %v1582
        %1591 = vst.msk [vmem:[#allocation4 + $0x30] sm:$0xff] %vm1541, %v1583
        %1592 = vst.msk [vmem:[#allocation4 + $0x38] sm:$0xff] %vm1541, %v1584
        %v1593 = vld [vmem:[#allocation3 + $0x1] sm:$0xff]
        %v1594 = vld [vmem:[#allocation3 + $0x11] sm:$0xff]
        %v1595 = vld [vmem:[#allocation3 + $0x21] sm:$0xff]
        %v1596 = vld [vmem:[#allocation3 + $0x31] sm:$0xff]
        %v1597 = vld [vmem:[#allocation3 + $0x41] sm:$0xff]
        %v1598 = vld [vmem:[#allocation3 + $0x51] sm:$0xff]
        %v1599 = vld [vmem:[#allocation3 + $0x61] sm:$0xff]
        %v1600 = vld [vmem:[#allocation3 + $0x71] sm:$0xff]
        %1609 = vrot.lane.b32.xlu0 %v1593, 8
        %v1610 = vpop.permute.xlu0 %1609
        %1611 = vrot.lane.b32.xlu0 %v1594, 8
        %v1612 = vpop.permute.xlu0 %1611
        %1613 = vrot.lane.b32.xlu0 %v1595, 8
        %v1614 = vpop.permute.xlu0 %1613
        %1615 = vrot.lane.b32.xlu0 %v1596, 8
        %v1616 = vpop.permute.xlu0 %1615
        %1617 = vrot.lane.b32.xlu0 %v1597, 8
        %v1618 = vpop.permute.xlu0 %1617
        %1619 = vrot.lane.b32.xlu0 %v1598, 8
        %v1620 = vpop.permute.xlu0 %1619
        %1621 = vrot.lane.b32.xlu0 %v1599, 8
        %v1622 = vpop.permute.xlu0 %1621
        %1623 = vrot.lane.b32.xlu0 %v1600, 8
        %v1624 = vpop.permute.xlu0 %1623
        %vm1633 = vcmask 130112
        %1634 = vst.msk [vmem:[#allocation4] sm:$0xff] %vm1633, %v1610
        %1635 = vst.msk [vmem:[#allocation4 + $0x8] sm:$0xff] %vm1633, %v1612
        %1636 = vst.msk [vmem:[#allocation4 + $0x10] sm:$0xff] %vm1633, %v1614
        %1637 = vst.msk [vmem:[#allocation4 + $0x18] sm:$0xff] %vm1633, %v1616
        %1638 = vst.msk [vmem:[#allocation4 + $0x20] sm:$0xff] %vm1633, %v1618
        %1639 = vst.msk [vmem:[#allocation4 + $0x28] sm:$0xff] %vm1633, %v1620
        %1640 = vst.msk [vmem:[#allocation4 + $0x30] sm:$0xff] %vm1633, %v1622
        %1641 = vst.msk [vmem:[#allocation4 + $0x38] sm:$0xff] %vm1633, %v1624
        %v1642 = vld [vmem:[#allocation3 + $0x2] sm:$0xff]
        %v1643 = vld [vmem:[#allocation3 + $0x12] sm:$0xff]
        %v1644 = vld [vmem:[#allocation3 + $0x22] sm:$0xff]
        %v1645 = vld [vmem:[#allocation3 + $0x32] sm:$0xff]
        %v1646 = vld [vmem:[#allocation3 + $0x42] sm:$0xff]
        %v1647 = vld [vmem:[#allocation3 + $0x52] sm:$0xff]
        %v1648 = vld [vmem:[#allocation3 + $0x62] sm:$0xff]
        %v1649 = vld [vmem:[#allocation3 + $0x72] sm:$0xff]
        %1658 = vrot.lane.b32.xlu0 %v1642, 16
        %v1659 = vpop.permute.xlu0 %1658
        %1660 = vrot.lane.b32.xlu0 %v1643, 16
        %v1661 = vpop.permute.xlu0 %1660
        %1662 = vrot.lane.b32.xlu0 %v1644, 16
        %v1663 = vpop.permute.xlu0 %1662
        %1664 = vrot.lane.b32.xlu0 %v1645, 16
        %v1665 = vpop.permute.xlu0 %1664
        %1666 = vrot.lane.b32.xlu0 %v1646, 16
        %v1667 = vpop.permute.xlu0 %1666
        %1668 = vrot.lane.b32.xlu0 %v1647, 16
        %v1669 = vpop.permute.xlu0 %1668
        %1670 = vrot.lane.b32.xlu0 %v1648, 16
        %v1671 = vpop.permute.xlu0 %1670
        %1672 = vrot.lane.b32.xlu0 %v1649, 16
        %v1673 = vpop.permute.xlu0 %1672
        %vm1682 = vcmask 195712
        %1683 = vst.msk [vmem:[#allocation4] sm:$0xff] %vm1682, %v1659
        %1684 = vst.msk [vmem:[#allocation4 + $0x8] sm:$0xff] %vm1682, %v1661
        %1685 = vst.msk [vmem:[#allocation4 + $0x10] sm:$0xff] %vm1682, %v1663
        %1686 = vst.msk [vmem:[#allocation4 + $0x18] sm:$0xff] %vm1682, %v1665
        %1687 = vst.msk [vmem:[#allocation4 + $0x20] sm:$0xff] %vm1682, %v1667
        %1688 = vst.msk [vmem:[#allocation4 + $0x28] sm:$0xff] %vm1682, %v1669
        %1689 = vst.msk [vmem:[#allocation4 + $0x30] sm:$0xff] %vm1682, %v1671
        %1690 = vst.msk [vmem:[#allocation4 + $0x38] sm:$0xff] %vm1682, %v1673
        %v1691 = vld [vmem:[%s1540] sm:$0xff]
        %v1692 = vld [vmem:[%s1540 + $0x10] sm:$0xff]
        %v1693 = vld [vmem:[%s1540 + $0x20] sm:$0xff]
        %v1694 = vld [vmem:[%s1540 + $0x30] sm:$0xff]
        %v1695 = vld [vmem:[%s1540 + $0x40] sm:$0xff]
        %v1696 = vld [vmem:[%s1540 + $0x50] sm:$0xff]
        %v1697 = vld [vmem:[%s1540 + $0x60] sm:$0xff]
        %v1698 = vld [vmem:[%s1540 + $0x70] sm:$0xff]
        %1707 = vrot.lane.b32.xlu0 %v1691, 24
        %v1708 = vpop.permute.xlu0 %1707
        %1709 = vrot.lane.b32.xlu0 %v1692, 24
        %v1710 = vpop.permute.xlu0 %1709
        %1711 = vrot.lane.b32.xlu0 %v1693, 24
        %v1712 = vpop.permute.xlu0 %1711
        %1713 = vrot.lane.b32.xlu0 %v1694, 24
        %v1714 = vpop.permute.xlu0 %1713
        %1715 = vrot.lane.b32.xlu0 %v1695, 24
        %v1716 = vpop.permute.xlu0 %1715
        %1717 = vrot.lane.b32.xlu0 %v1696, 24
        %v1718 = vpop.permute.xlu0 %1717
        %1719 = vrot.lane.b32.xlu0 %v1697, 24
        %v1720 = vpop.permute.xlu0 %1719
        %1721 = vrot.lane.b32.xlu0 %v1698, 24
        %v1722 = vpop.permute.xlu0 %1721
        %vm1731 = vcmask 261312
        %1732 = vst.msk [vmem:[#allocation4] sm:$0xff] %vm1731, %v1708
        %1733 = vst.msk [vmem:[#allocation4 + $0x8] sm:$0xff] %vm1731, %v1710
        %1734 = vst.msk [vmem:[#allocation4 + $0x10] sm:$0xff] %vm1731, %v1712
        %1735 = vst.msk [vmem:[#allocation4 + $0x18] sm:$0xff] %vm1731, %v1714
        %1736 = vst.msk [vmem:[#allocation4 + $0x20] sm:$0xff] %vm1731, %v1716
        %1737 = vst.msk [vmem:[#allocation4 + $0x28] sm:$0xff] %vm1731, %v1718
        %1738 = vst.msk [vmem:[#allocation4 + $0x30] sm:$0xff] %vm1731, %v1720
        %1739 = vst.msk [vmem:[#allocation4 + $0x38] sm:$0xff] %vm1731, %v1722
        %v1740 = vld [vmem:[%s1540 + $0x1] sm:$0xff]
        %v1741 = vld [vmem:[%s1540 + $0x11] sm:$0xff]
        %v1742 = vld [vmem:[%s1540 + $0x21] sm:$0xff]
        %v1743 = vld [vmem:[%s1540 + $0x31] sm:$0xff]
        %v1744 = vld [vmem:[%s1540 + $0x41] sm:$0xff]
        %v1745 = vld [vmem:[%s1540 + $0x51] sm:$0xff]
        %v1746 = vld [vmem:[%s1540 + $0x61] sm:$0xff]
        %v1747 = vld [vmem:[%s1540 + $0x71] sm:$0xff]
        %1756 = vrot.lane.b32.xlu0 %v1740, 32
        %v1757 = vpop.permute.xlu0 %1756
        %1758 = vrot.lane.b32.xlu0 %v1741, 32
        %v1759 = vpop.permute.xlu0 %1758
        %1760 = vrot.lane.b32.xlu0 %v1742, 32
        %v1761 = vpop.permute.xlu0 %1760
        %1762 = vrot.lane.b32.xlu0 %v1743, 32
        %v1763 = vpop.permute.xlu0 %1762
        %1764 = vrot.lane.b32.xlu0 %v1744, 32
        %v1765 = vpop.permute.xlu0 %1764
        %1766 = vrot.lane.b32.xlu0 %v1745, 32
        %v1767 = vpop.permute.xlu0 %1766
        %1768 = vrot.lane.b32.xlu0 %v1746, 32
        %v1769 = vpop.permute.xlu0 %1768
        %1770 = vrot.lane.b32.xlu0 %v1747, 32
        %v1771 = vpop.permute.xlu0 %1770
        %vm1780 = vcmask 326912
        %1781 = vst.msk [vmem:[#allocation4] sm:$0xff] %vm1780, %v1757
        %1782 = vst.msk [vmem:[#allocation4 + $0x8] sm:$0xff] %vm1780, %v1759
        %1783 = vst.msk [vmem:[#allocation4 + $0x10] sm:$0xff] %vm1780, %v1761
        %1784 = vst.msk [vmem:[#allocation4 + $0x18] sm:$0xff] %vm1780, %v1763
        %1785 = vst.msk [vmem:[#allocation4 + $0x20] sm:$0xff] %vm1780, %v1765
        %1786 = vst.msk [vmem:[#allocation4 + $0x28] sm:$0xff] %vm1780, %v1767
        %1787 = vst.msk [vmem:[#allocation4 + $0x30] sm:$0xff] %vm1780, %v1769
        %1788 = vst.msk [vmem:[#allocation4 + $0x38] sm:$0xff] %vm1780, %v1771
        %v1789 = vld [vmem:[%s1540 + $0x2] sm:$0xff]
        %v1790 = vld [vmem:[%s1540 + $0x12] sm:$0xff]
        %v1791 = vld [vmem:[%s1540 + $0x22] sm:$0xff]
        %v1792 = vld [vmem:[%s1540 + $0x32] sm:$0xff]
        %v1793 = vld [vmem:[%s1540 + $0x42] sm:$0xff]
        %v1794 = vld [vmem:[%s1540 + $0x52] sm:$0xff]
        %v1795 = vld [vmem:[%s1540 + $0x62] sm:$0xff]
        %v1796 = vld [vmem:[%s1540 + $0x72] sm:$0xff]
        %1805 = vrot.lane.b32.xlu0 %v1789, 40
        %v1806 = vpop.permute.xlu0 %1805
        %1807 = vrot.lane.b32.xlu0 %v1790, 40
        %v1808 = vpop.permute.xlu0 %1807
        %1809 = vrot.lane.b32.xlu0 %v1791, 40
        %v1810 = vpop.permute.xlu0 %1809
        %1811 = vrot.lane.b32.xlu0 %v1792, 40
        %v1812 = vpop.permute.xlu0 %1811
        %1813 = vrot.lane.b32.xlu0 %v1793, 40
        %v1814 = vpop.permute.xlu0 %1813
        %1815 = vrot.lane.b32.xlu0 %v1794, 40
        %v1816 = vpop.permute.xlu0 %1815
        %1817 = vrot.lane.b32.xlu0 %v1795, 40
        %v1818 = vpop.permute.xlu0 %1817
        %1819 = vrot.lane.b32.xlu0 %v1796, 40
        %v1820 = vpop.permute.xlu0 %1819
        %vm1829 = vcmask 392512
        %1830 = vst.msk [vmem:[#allocation4] sm:$0xff] %vm1829, %v1806
        %1831 = vst.msk [vmem:[#allocation4 + $0x8] sm:$0xff] %vm1829, %v1808
        %1832 = vst.msk [vmem:[#allocation4 + $0x10] sm:$0xff] %vm1829, %v1810
        %1833 = vst.msk [vmem:[#allocation4 + $0x18] sm:$0xff] %vm1829, %v1812
        %1834 = vst.msk [vmem:[#allocation4 + $0x20] sm:$0xff] %vm1829, %v1814
        %1835 = vst.msk [vmem:[#allocation4 + $0x28] sm:$0xff] %vm1829, %v1816
        %1836 = vst.msk [vmem:[#allocation4 + $0x30] sm:$0xff] %vm1829, %v1818
        %1837 = vst.msk [vmem:[#allocation4 + $0x38] sm:$0xff] %vm1829, %v1820
        %s1838 = scalar_lea.vmem [#allocation3], 32
        %v1839 = vld [vmem:[%s1838] sm:$0xff]
        %v1840 = vld [vmem:[%s1838 + $0x10] sm:$0xff]
        %v1841 = vld [vmem:[%s1838 + $0x20] sm:$0xff]
        %v1842 = vld [vmem:[%s1838 + $0x30] sm:$0xff]
        %v1843 = vld [vmem:[%s1838 + $0x40] sm:$0xff]
        %v1844 = vld [vmem:[%s1838 + $0x50] sm:$0xff]
        %v1845 = vld [vmem:[%s1838 + $0x60] sm:$0xff]
        %v1846 = vld [vmem:[%s1838 + $0x70] sm:$0xff]
        %1855 = vrot.lane.b32.xlu0 %v1839, 48
        %v1856 = vpop.permute.xlu0 %1855
        %1857 = vrot.lane.b32.xlu0 %v1840, 48
        %v1858 = vpop.permute.xlu0 %1857
        %1859 = vrot.lane.b32.xlu0 %v1841, 48
        %v1860 = vpop.permute.xlu0 %1859
        %1861 = vrot.lane.b32.xlu0 %v1842, 48
        %v1862 = vpop.permute.xlu0 %1861
        %1863 = vrot.lane.b32.xlu0 %v1843, 48
        %v1864 = vpop.permute.xlu0 %1863
        %1865 = vrot.lane.b32.xlu0 %v1844, 48
        %v1866 = vpop.permute.xlu0 %1865
        %1867 = vrot.lane.b32.xlu0 %v1845, 48
        %v1868 = vpop.permute.xlu0 %1867
        %1869 = vrot.lane.b32.xlu0 %v1846, 48
        %v1870 = vpop.permute.xlu0 %1869
        %vm1879 = vcmask 458112
        %1880 = vst.msk [vmem:[#allocation4] sm:$0xff] %vm1879, %v1856
        %1881 = vst.msk [vmem:[#allocation4 + $0x8] sm:$0xff] %vm1879, %v1858
        %1882 = vst.msk [vmem:[#allocation4 + $0x10] sm:$0xff] %vm1879, %v1860
        %1883 = vst.msk [vmem:[#allocation4 + $0x18] sm:$0xff] %vm1879, %v1862
        %1884 = vst.msk [vmem:[#allocation4 + $0x20] sm:$0xff] %vm1879, %v1864
        %1885 = vst.msk [vmem:[#allocation4 + $0x28] sm:$0xff] %vm1879, %v1866
        %1886 = vst.msk [vmem:[#allocation4 + $0x30] sm:$0xff] %vm1879, %v1868
        %1887 = vst.msk [vmem:[#allocation4 + $0x38] sm:$0xff] %vm1879, %v1870
        %v1888 = vld [vmem:[%s1838 + $0x1] sm:$0xff]
        %v1889 = vld [vmem:[%s1838 + $0x11] sm:$0xff]
        %v1890 = vld [vmem:[%s1838 + $0x21] sm:$0xff]
        %v1891 = vld [vmem:[%s1838 + $0x31] sm:$0xff]
        %v1892 = vld [vmem:[%s1838 + $0x41] sm:$0xff]
        %v1893 = vld [vmem:[%s1838 + $0x51] sm:$0xff]
        %v1894 = vld [vmem:[%s1838 + $0x61] sm:$0xff]
        %v1895 = vld [vmem:[%s1838 + $0x71] sm:$0xff]
        %1904 = vrot.lane.b32.xlu0 %v1888, 56
        %v1905 = vpop.permute.xlu0 %1904
        %1906 = vrot.lane.b32.xlu0 %v1889, 56
        %v1907 = vpop.permute.xlu0 %1906
        %1908 = vrot.lane.b32.xlu0 %v1890, 56
        %v1909 = vpop.permute.xlu0 %1908
        %1910 = vrot.lane.b32.xlu0 %v1891, 56
        %v1911 = vpop.permute.xlu0 %1910
        %1912 = vrot.lane.b32.xlu0 %v1892, 56
        %v1913 = vpop.permute.xlu0 %1912
        %1914 = vrot.lane.b32.xlu0 %v1893, 56
        %v1915 = vpop.permute.xlu0 %1914
        %1916 = vrot.lane.b32.xlu0 %v1894, 56
        %v1917 = vpop.permute.xlu0 %1916
        %1918 = vrot.lane.b32.xlu0 %v1895, 56
        %v1919 = vpop.permute.xlu0 %1918
        %vm1928 = vcmask 523712
        %1929 = vst.msk [vmem:[#allocation4] sm:$0xff] %vm1928, %v1905
        %1930 = vst.msk [vmem:[#allocation4 + $0x8] sm:$0xff] %vm1928, %v1907
        %1931 = vst.msk [vmem:[#allocation4 + $0x10] sm:$0xff] %vm1928, %v1909
        %1932 = vst.msk [vmem:[#allocation4 + $0x18] sm:$0xff] %vm1928, %v1911
        %1933 = vst.msk [vmem:[#allocation4 + $0x20] sm:$0xff] %vm1928, %v1913
        %1934 = vst.msk [vmem:[#allocation4 + $0x28] sm:$0xff] %vm1928, %v1915
        %1935 = vst.msk [vmem:[#allocation4 + $0x30] sm:$0xff] %vm1928, %v1917
        %1936 = vst.msk [vmem:[#allocation4 + $0x38] sm:$0xff] %vm1928, %v1919
        %v1937 = vld [vmem:[%s1838 + $0x2] sm:$0xff]
        %v1938 = vld [vmem:[%s1838 + $0x12] sm:$0xff]
        %v1939 = vld [vmem:[%s1838 + $0x22] sm:$0xff]
        %v1940 = vld [vmem:[%s1838 + $0x32] sm:$0xff]
        %v1941 = vld [vmem:[%s1838 + $0x42] sm:$0xff]
        %v1942 = vld [vmem:[%s1838 + $0x52] sm:$0xff]
        %v1943 = vld [vmem:[%s1838 + $0x62] sm:$0xff]
        %v1944 = vld [vmem:[%s1838 + $0x72] sm:$0xff]
        %1953 = vrot.lane.b32.xlu0 %v1937, 64
        %v1954 = vpop.permute.xlu0 %1953
        %1955 = vrot.lane.b32.xlu0 %v1938, 64
        %v1956 = vpop.permute.xlu0 %1955
        %1957 = vrot.lane.b32.xlu0 %v1939, 64
        %v1958 = vpop.permute.xlu0 %1957
        %1959 = vrot.lane.b32.xlu0 %v1940, 64
        %v1960 = vpop.permute.xlu0 %1959
        %1961 = vrot.lane.b32.xlu0 %v1941, 64
        %v1962 = vpop.permute.xlu0 %1961
        %1963 = vrot.lane.b32.xlu0 %v1942, 64
        %v1964 = vpop.permute.xlu0 %1963
        %1965 = vrot.lane.b32.xlu0 %v1943, 64
        %v1966 = vpop.permute.xlu0 %1965
        %1967 = vrot.lane.b32.xlu0 %v1944, 64
        %v1968 = vpop.permute.xlu0 %1967
        %vm1977 = vcmask 589312
        %1978 = vst.msk [vmem:[#allocation4] sm:$0xff] %vm1977, %v1954
        %1979 = vst.msk [vmem:[#allocation4 + $0x8] sm:$0xff] %vm1977, %v1956
        %1980 = vst.msk [vmem:[#allocation4 + $0x10] sm:$0xff] %vm1977, %v1958
        %1981 = vst.msk [vmem:[#allocation4 + $0x18] sm:$0xff] %vm1977, %v1960
        %1982 = vst.msk [vmem:[#allocation4 + $0x20] sm:$0xff] %vm1977, %v1962
        %1983 = vst.msk [vmem:[#allocation4 + $0x28] sm:$0xff] %vm1977, %v1964
        %1984 = vst.msk [vmem:[#allocation4 + $0x30] sm:$0xff] %vm1977, %v1966
        %1985 = vst.msk [vmem:[#allocation4 + $0x38] sm:$0xff] %vm1977, %v1968
        %v1986 = vld [vmem:[#allocation4] sm:$0xff]
        %v1987 = vld [vmem:[#allocation4 + $0x8] sm:$0xff]
        %v1988 = vld [vmem:[#allocation4 + $0x10] sm:$0xff]
        %v1989 = vld [vmem:[#allocation4 + $0x18] sm:$0xff]
        %v1990 = vld [vmem:[#allocation4 + $0x20] sm:$0xff]
        %v1991 = vld [vmem:[#allocation4 + $0x28] sm:$0xff]
        %v1992 = vld [vmem:[#allocation4 + $0x30] sm:$0xff]
        %v1993 = vld [vmem:[#allocation4 + $0x38] sm:$0xff]
        %v1994 = vpack.c.bf16 %v1987, %v1986
        %v1995 = vpack.c.bf16 %v1989, %v1988
        %v1996 = vpack.c.bf16 %v1991, %v1990
        %v1997 = vpack.c.bf16 %v1993, %v1992
        %v1998 = vld [vmem:[%s6] sm:$0xf]
        %v1999 = vld [vmem:[%s6 + $0x4] sm:$0xf]
        %v2000 = vld [vmem:[%s6 + $0x8] sm:$0xf]
        %v2001 = vld [vmem:[%s6 + $0xc] sm:$0xf]
        %v2002 = vld [vmem:[%s6 + $0x10] sm:$0xf]
        %v2003 = vld [vmem:[%s6 + $0x14] sm:$0xf]
        %v2004 = vld [vmem:[%s6 + $0x18] sm:$0xf]
        %v2005 = vld [vmem:[%s6 + $0x1c] sm:$0xf]
        %v2006 = vld [vmem:[%s6 + $0x20] sm:$0xf]
        %v2016 = vunpack.c.l.b16 %v1998
        %v2017 = vunpack.c.l.b16 %v1999
        %v2018 = vunpack.c.l.b16 %v2000
        %v2019 = vunpack.c.l.b16 %v2001
        %v2020 = vunpack.c.l.b16 %v2002
        %v2021 = vunpack.c.l.b16 %v2003
        %v2022 = vunpack.c.l.b16 %v2004
        %v2023 = vunpack.c.l.b16 %v2005
        %v2024 = vunpack.c.l.b16 %v2006
        %v2025 = vpack.c.b16 %v2017, %v2016
        %v2026 = vpack.c.b16 %v2019, %v2018
        %v2027 = vpack.c.b16 %v2021, %v2020
        %v2028 = vpack.c.b16 %v2023, %v2022
        %v2029 = vpack.c.b16 %v2024, %v2024
        %vm2034 = vcmask 588800
        %v2036 = vsel %vm2034, %v1994, 0
        %v2039 = vsel %vm2034, %v1995, 0
        %v2042 = vsel %vm2034, %v1996, 0
        %v2045 = vsel %vm2034, %v1997, 0
        %v2048 = vsel %vm1377, %v2029, 0
        %2050 = vmatprep.subr.bf16.mxu0 0
        %2051 = vmatpush1.bf16.msra.mxu0 %v2025
        %2052 = vmatprep.subr.bf16.mxu0 0
        %2053 = vmatpush1.bf16.msra.mxu0 %v2026
        %2054 = vmatprep.subr.bf16.mxu0 0
        %2055 = vmatpush1.bf16.msra.mxu0 %v2027
        %2056 = vmatprep.subr.bf16.mxu0 0
        %2057 = vmatpush1.bf16.msra.mxu0 %v2028
        %2058 = vmatprep.subr.bf16.mxu0 0
        %2059 = vmatpush1.bf16.msra.mxu0 %v2048
        %2060 = vmatprep.subr.bf16.mxu0 0
        %2061 = vmatpush1.bf16.msra.mxu0 0
        %2062 = vmatprep.subr.bf16.mxu0 0
        %2063 = vmatpush1.bf16.msra.mxu0 0
        %2064 = vmatprep.subr.bf16.mxu0 0
        %2065 = vmatpush1.bf16.msra.mxu0 0
        %2066 = vmatprep.subr.bf16.mxu0 0
        %2067 = vmatpush1.bf16.msra.mxu0 0
        %2068 = vmatprep.subr.bf16.mxu0 0
        %2069 = vmatpush1.bf16.msra.mxu0 0
        %2070 = vmatprep.subr.bf16.mxu0 0
        %2071 = vmatpush1.bf16.msra.mxu0 0
        %2072 = vmatprep.subr.bf16.mxu0 0
        %2073 = vmatpush1.bf16.msra.mxu0 0
        %2074 = vmatprep.subr.bf16.mxu0 0
        %2075 = vmatpush1.bf16.msra.mxu0 0
        %2076 = vmatprep.subr.bf16.mxu0 0
        %2077 = vmatpush1.bf16.msra.mxu0 0
        %2078 = vmatprep.subr.bf16.mxu0 0
        %2079 = vmatpush1.bf16.msra.mxu0 0
        %2080 = vmatprep.subr.bf16.mxu0 0
        %2081 = vmatpush1.bf16.msra.mxu0 0
        %2082 = vmatprep.mubr.bf16.mxu0 0
        %2083 = vmatmul.mubr.bf16.gmra.mrb[0].mxu0 %v2036
        %v2084 = vpop.f32.mrb[0].mxu0
        %v2085 = vadd.f32 %v1448, %v2084
        %v2086 = vpop.f32.mrb[0].mxu0
        %v2087 = vpop.f32.mrb[0].mxu0
        %v2088 = vadd.f32 %v1453, %v2087
        %v2089 = vpop.f32.mrb[0].mxu0
        %2090 = vmatprep.mubr.bf16.mxu0 0
        %2091 = vmatmul.mubr.bf16.gmra.mrb[0].mxu0 %v2039
        %v2092 = vpop.f32.mrb[0].mxu0
        %v2093 = vadd.f32 %v1458, %v2092
        %v2094 = vpop.f32.mrb[0].mxu0
        %v2095 = vpop.f32.mrb[0].mxu0
        %v2096 = vadd.f32 %v1463, %v2095
        %v2097 = vpop.f32.mrb[0].mxu0
        %2098 = vmatprep.mubr.bf16.mxu0 0
        %2099 = vmatmul.mubr.bf16.gmra.mrb[0].mxu0 %v2042
        %v2100 = vpop.f32.mrb[0].mxu0
        %v2101 = vadd.f32 %v1468, %v2100
        %v2102 = vpop.f32.mrb[0].mxu0
        %v2103 = vpop.f32.mrb[0].mxu0
        %v2104 = vadd.f32 %v1473, %v2103
        %v2105 = vpop.f32.mrb[0].mxu0
        %2106 = vmatprep.mubr.bf16.mxu0 0
        %2107 = vmatmul.mubr.bf16.gmra.mrb[0].mxu0 %v2045
        %v2108 = vpop.f32.mrb[0].mxu0
        %v2109 = vadd.f32 %v1478, %v2108
        %v2110 = vpop.f32.mrb[0].mxu0
        %v2111 = vpop.f32.mrb[0].mxu0
        %v2112 = vadd.f32 %v1483, %v2111
        %v2113 = vpop.f32.mrb[0].mxu0
        %2114 = vdwg.mxu0
        %v2115 = vld [vmem:[%s8] sm:$0x1]
        %v2117 = vlaneseq
        %v2118 = vshrl.u32 %v2117, 7
        %v2119 = vsub.s32 0, %v2118
        %v2120 = vrot.slane %v2115, %v2119
        %v2122 = vmul.f32 %v2085, %v2120
        %v2123 = vmul.f32 %v2088, %v2120
        %v2124 = vmul.f32 %v2093, %v2120
        %v2125 = vmul.f32 %v2096, %v2120
        %v2126 = vmul.f32 %v2101, %v2120
        %v2127 = vmul.f32 %v2104, %v2120
        %v2128 = vmul.f32 %v2109, %v2120
        %v2129 = vmul.f32 %v2112, %v2120
        %v2130 = vld [vmem:[%s9] sm:$0x1]
        %v2132 = vlaneseq
        %v2133 = vshrl.u32 %v2132, 7
        %v2134 = vsub.s32 0, %v2133
        %v2135 = vrot.slane %v2130, %v2134
        %v2137 = vadd.f32 %v2122, %v2135
        %v2138 = vadd.f32 %v2123, %v2135
        %v2139 = vadd.f32 %v2124, %v2135
        %v2140 = vadd.f32 %v2125, %v2135
        %v2141 = vadd.f32 %v2126, %v2135
        %v2142 = vadd.f32 %v2127, %v2135
        %v2143 = vadd.f32 %v2128, %v2135
        %v2144 = vadd.f32 %v2129, %v2135
        %vm2145 = vcmp.gt.f32.partialorder %v2137, 0.0
        %vm2146 = vcmp.gt.f32.partialorder %v2138, 0.0
        %vm2147 = vcmp.gt.f32.partialorder %v2139, 0.0
        %vm2148 = vcmp.gt.f32.partialorder %v2140, 0.0
        %vm2149 = vcmp.gt.f32.partialorder %v2141, 0.0
        %vm2150 = vcmp.gt.f32.partialorder %v2142, 0.0
        %vm2151 = vcmp.gt.f32.partialorder %v2143, 0.0
        %vm2152 = vcmp.gt.f32.partialorder %v2144, 0.0
        %v2153 = vmul.f32 %v2137, 0.1
        %v2154 = vmul.f32 %v2138, 0.1
        %v2155 = vmul.f32 %v2139, 0.1
        %v2156 = vmul.f32 %v2140, 0.1
        %v2157 = vmul.f32 %v2141, 0.1
        %v2158 = vmul.f32 %v2142, 0.1
        %v2159 = vmul.f32 %v2143, 0.1
        %v2160 = vmul.f32 %v2144, 0.1
        %v2161 = vsel %vm2145, %v2137, %v2153
        %v2162 = vsel %vm2146, %v2138, %v2154
        %v2163 = vsel %vm2147, %v2139, %v2155
        %v2164 = vsel %vm2148, %v2140, %v2156
        %v2165 = vsel %vm2149, %v2141, %v2157
        %v2166 = vsel %vm2150, %v2142, %v2158
        %v2167 = vsel %vm2151, %v2143, %v2159
        %v2168 = vsel %vm2152, %v2144, %v2160
        %2169 = vst.msk [vmem:[%s1540 + $0x1] sm:$0xff] %vm1541, %v2161
        %2170 = vst.msk [vmem:[%s1540 + $0x11] sm:$0xff] %vm1541, %v2162
        %2171 = vst.msk [vmem:[%s1540 + $0x21] sm:$0xff] %vm1541, %v2163
        %2172 = vst.msk [vmem:[%s1540 + $0x31] sm:$0xff] %vm1541, %v2164
        %2173 = vst.msk [vmem:[%s1540 + $0x41] sm:$0xff] %vm1541, %v2165
        %2174 = vst.msk [vmem:[%s1540 + $0x51] sm:$0xff] %vm1541, %v2166
        %2175 = vst.msk [vmem:[%s1540 + $0x61] sm:$0xff] %vm1541, %v2167
        %2176 = vst.msk [vmem:[%s1540 + $0x71] sm:$0xff] %vm1541, %v2168
        %2177 = vst.msk [vmem:[#allocation3] sm:$0xff] %vm1541, 0.0
        %2178 = vst.msk [vmem:[#allocation3 + $0x8] sm:$0x3] %vm1551, 0.0
        %2179 = vst.msk [vmem:[%s1553] sm:$0xff] %vm1541, 0.0
        %2180 = vst.msk [vmem:[%s1553 + $0x8] sm:$0x3] %vm1551, 0.0
        %2181 = vst.msk [vmem:[#allocation3] sm:$0x1] %vm1556, 0.0
        %2182 = vst.msk [vmem:[#allocation3 + $0x10] sm:$0x1] %vm1556, 0.0
        %2183 = vst.msk [vmem:[#allocation3 + $0x20] sm:$0x1] %vm1556, 0.0
        %2184 = vst.msk [vmem:[#allocation3 + $0x30] sm:$0x1] %vm1556, 0.0
        %2185 = vst.msk [vmem:[#allocation3 + $0x40] sm:$0x1] %vm1556, 0.0
        %2186 = vst.msk [vmem:[#allocation3 + $0x50] sm:$0x1] %vm1556, 0.0
        %2187 = vst.msk [vmem:[#allocation3 + $0x60] sm:$0x1] %vm1556, 0.0
        %2188 = vst.msk [vmem:[#allocation3 + $0x70] sm:$0x1] %vm1556, 0.0
        %2189 = vst.msk [vmem:[#allocation3 + $0x80] sm:$0x1] %vm1556, 0.0
        %2190 = vst.msk [vmem:[#allocation3 + $0x90] sm:$0x1] %vm1556, 0.0
        %2191 = vst.msk [vmem:[#allocation3 + $0x9] sm:$0x1] %vm1556, 0.0
        %2192 = vst.msk [vmem:[#allocation3 + $0x19] sm:$0x1] %vm1556, 0.0
        %2193 = vst.msk [vmem:[#allocation3 + $0x29] sm:$0x1] %vm1556, 0.0
        %2194 = vst.msk [vmem:[#allocation3 + $0x39] sm:$0x1] %vm1556, 0.0
        %2195 = vst.msk [vmem:[#allocation3 + $0x49] sm:$0x1] %vm1556, 0.0
        %2196 = vst.msk [vmem:[#allocation3 + $0x59] sm:$0x1] %vm1556, 0.0
        %2197 = vst.msk [vmem:[#allocation3 + $0x69] sm:$0x1] %vm1556, 0.0
        %2198 = vst.msk [vmem:[#allocation3 + $0x79] sm:$0x1] %vm1556, 0.0
        %2199 = vst.msk [vmem:[#allocation3 + $0x89] sm:$0x1] %vm1556, 0.0
        %2200 = vst.msk [vmem:[#allocation3 + $0x99] sm:$0x1] %vm1556, 0.0
        %v2201 = vld [vmem:[#allocation3] sm:$0xff]
        %v2202 = vld [vmem:[#allocation3 + $0x10] sm:$0xff]
        %v2203 = vld [vmem:[#allocation3 + $0x20] sm:$0xff]
        %v2204 = vld [vmem:[#allocation3 + $0x30] sm:$0xff]
        %v2205 = vld [vmem:[#allocation3 + $0x40] sm:$0xff]
        %v2206 = vld [vmem:[#allocation3 + $0x50] sm:$0xff]
        %v2207 = vld [vmem:[#allocation3 + $0x60] sm:$0xff]
        %v2208 = vld [vmem:[#allocation3 + $0x70] sm:$0xff]
        %2209 = vst.msk [vmem:[#allocation4] sm:$0xff] %vm1541, %v2201
        %2210 = vst.msk [vmem:[#allocation4 + $0x8] sm:$0xff] %vm1541, %v2202
        %2211 = vst.msk [vmem:[#allocation4 + $0x10] sm:$0xff] %vm1541, %v2203
        %2212 = vst.msk [vmem:[#allocation4 + $0x18] sm:$0xff] %vm1541, %v2204
        %2213 = vst.msk [vmem:[#allocation4 + $0x20] sm:$0xff] %vm1541, %v2205
        %2214 = vst.msk [vmem:[#allocation4 + $0x28] sm:$0xff] %vm1541, %v2206
        %2215 = vst.msk [vmem:[#allocation4 + $0x30] sm:$0xff] %vm1541, %v2207
        %2216 = vst.msk [vmem:[#allocation4 + $0x38] sm:$0xff] %vm1541, %v2208
        %v2217 = vld [vmem:[#allocation3 + $0x1] sm:$0xff]
        %v2218 = vld [vmem:[#allocation3 + $0x11] sm:$0xff]
        %v2219 = vld [vmem:[#allocation3 + $0x21] sm:$0xff]
        %v2220 = vld [vmem:[#allocation3 + $0x31] sm:$0xff]
        %v2221 = vld [vmem:[#allocation3 + $0x41] sm:$0xff]
        %v2222 = vld [vmem:[#allocation3 + $0x51] sm:$0xff]
        %v2223 = vld [vmem:[#allocation3 + $0x61] sm:$0xff]
        %v2224 = vld [vmem:[#allocation3 + $0x71] sm:$0xff]
        %2233 = vrot.lane.b32.xlu0 %v2217, 8
        %v2234 = vpop.permute.xlu0 %2233
        %2235 = vrot.lane.b32.xlu0 %v2218, 8
        %v2236 = vpop.permute.xlu0 %2235
        %2237 = vrot.lane.b32.xlu0 %v2219, 8
        %v2238 = vpop.permute.xlu0 %2237
        %2239 = vrot.lane.b32.xlu0 %v2220, 8
        %v2240 = vpop.permute.xlu0 %2239
        %2241 = vrot.lane.b32.xlu0 %v2221, 8
        %v2242 = vpop.permute.xlu0 %2241
        %2243 = vrot.lane.b32.xlu0 %v2222, 8
        %v2244 = vpop.permute.xlu0 %2243
        %2245 = vrot.lane.b32.xlu0 %v2223, 8
        %v2246 = vpop.permute.xlu0 %2245
        %2247 = vrot.lane.b32.xlu0 %v2224, 8
        %v2248 = vpop.permute.xlu0 %2247
        %2257 = vst.msk [vmem:[#allocation4] sm:$0xff] %vm1633, %v2234
        %2258 = vst.msk [vmem:[#allocation4 + $0x8] sm:$0xff] %vm1633, %v2236
        %2259 = vst.msk [vmem:[#allocation4 + $0x10] sm:$0xff] %vm1633, %v2238
        %2260 = vst.msk [vmem:[#allocation4 + $0x18] sm:$0xff] %vm1633, %v2240
        %2261 = vst.msk [vmem:[#allocation4 + $0x20] sm:$0xff] %vm1633, %v2242
        %2262 = vst.msk [vmem:[#allocation4 + $0x28] sm:$0xff] %vm1633, %v2244
        %2263 = vst.msk [vmem:[#allocation4 + $0x30] sm:$0xff] %vm1633, %v2246
        %2264 = vst.msk [vmem:[#allocation4 + $0x38] sm:$0xff] %vm1633, %v2248
        %v2265 = vld [vmem:[#allocation3 + $0x2] sm:$0xff]
        %v2266 = vld [vmem:[#allocation3 + $0x12] sm:$0xff]
        %v2267 = vld [vmem:[#allocation3 + $0x22] sm:$0xff]
        %v2268 = vld [vmem:[#allocation3 + $0x32] sm:$0xff]
        %v2269 = vld [vmem:[#allocation3 + $0x42] sm:$0xff]
        %v2270 = vld [vmem:[#allocation3 + $0x52] sm:$0xff]
        %v2271 = vld [vmem:[#allocation3 + $0x62] sm:$0xff]
        %v2272 = vld [vmem:[#allocation3 + $0x72] sm:$0xff]
        %2281 = vrot.lane.b32.xlu0 %v2265, 16
        %v2282 = vpop.permute.xlu0 %2281
        %2283 = vrot.lane.b32.xlu0 %v2266, 16
        %v2284 = vpop.permute.xlu0 %2283
        %2285 = vrot.lane.b32.xlu0 %v2267, 16
        %v2286 = vpop.permute.xlu0 %2285
        %2287 = vrot.lane.b32.xlu0 %v2268, 16
        %v2288 = vpop.permute.xlu0 %2287
        %2289 = vrot.lane.b32.xlu0 %v2269, 16
        %v2290 = vpop.permute.xlu0 %2289
        %2291 = vrot.lane.b32.xlu0 %v2270, 16
        %v2292 = vpop.permute.xlu0 %2291
        %2293 = vrot.lane.b32.xlu0 %v2271, 16
        %v2294 = vpop.permute.xlu0 %2293
        %2295 = vrot.lane.b32.xlu0 %v2272, 16
        %v2296 = vpop.permute.xlu0 %2295
        %2305 = vst.msk [vmem:[#allocation4] sm:$0xff] %vm1682, %v2282
        %2306 = vst.msk [vmem:[#allocation4 + $0x8] sm:$0xff] %vm1682, %v2284
        %2307 = vst.msk [vmem:[#allocation4 + $0x10] sm:$0xff] %vm1682, %v2286
        %2308 = vst.msk [vmem:[#allocation4 + $0x18] sm:$0xff] %vm1682, %v2288
        %2309 = vst.msk [vmem:[#allocation4 + $0x20] sm:$0xff] %vm1682, %v2290
        %2310 = vst.msk [vmem:[#allocation4 + $0x28] sm:$0xff] %vm1682, %v2292
        %2311 = vst.msk [vmem:[#allocation4 + $0x30] sm:$0xff] %vm1682, %v2294
        %2312 = vst.msk [vmem:[#allocation4 + $0x38] sm:$0xff] %vm1682, %v2296
        %v2313 = vld [vmem:[%s1540] sm:$0xff]
        %v2314 = vld [vmem:[%s1540 + $0x10] sm:$0xff]
        %v2315 = vld [vmem:[%s1540 + $0x20] sm:$0xff]
        %v2316 = vld [vmem:[%s1540 + $0x30] sm:$0xff]
        %v2317 = vld [vmem:[%s1540 + $0x40] sm:$0xff]
        %v2318 = vld [vmem:[%s1540 + $0x50] sm:$0xff]
        %v2319 = vld [vmem:[%s1540 + $0x60] sm:$0xff]
        %v2320 = vld [vmem:[%s1540 + $0x70] sm:$0xff]
        %2329 = vrot.lane.b32.xlu0 %v2313, 24
        %v2330 = vpop.permute.xlu0 %2329
        %2331 = vrot.lane.b32.xlu0 %v2314, 24
        %v2332 = vpop.permute.xlu0 %2331
        %2333 = vrot.lane.b32.xlu0 %v2315, 24
        %v2334 = vpop.permute.xlu0 %2333
        %2335 = vrot.lane.b32.xlu0 %v2316, 24
        %v2336 = vpop.permute.xlu0 %2335
        %2337 = vrot.lane.b32.xlu0 %v2317, 24
        %v2338 = vpop.permute.xlu0 %2337
        %2339 = vrot.lane.b32.xlu0 %v2318, 24
        %v2340 = vpop.permute.xlu0 %2339
        %2341 = vrot.lane.b32.xlu0 %v2319, 24
        %v2342 = vpop.permute.xlu0 %2341
        %2343 = vrot.lane.b32.xlu0 %v2320, 24
        %v2344 = vpop.permute.xlu0 %2343
        %2353 = vst.msk [vmem:[#allocation4] sm:$0xff] %vm1731, %v2330
        %2354 = vst.msk [vmem:[#allocation4 + $0x8] sm:$0xff] %vm1731, %v2332
        %2355 = vst.msk [vmem:[#allocation4 + $0x10] sm:$0xff] %vm1731, %v2334
        %2356 = vst.msk [vmem:[#allocation4 + $0x18] sm:$0xff] %vm1731, %v2336
        %2357 = vst.msk [vmem:[#allocation4 + $0x20] sm:$0xff] %vm1731, %v2338
        %2358 = vst.msk [vmem:[#allocation4 + $0x28] sm:$0xff] %vm1731, %v2340
        %2359 = vst.msk [vmem:[#allocation4 + $0x30] sm:$0xff] %vm1731, %v2342
        %2360 = vst.msk [vmem:[#allocation4 + $0x38] sm:$0xff] %vm1731, %v2344
        %v2361 = vld [vmem:[%s1540 + $0x1] sm:$0xff]
        %v2362 = vld [vmem:[%s1540 + $0x11] sm:$0xff]
        %v2363 = vld [vmem:[%s1540 + $0x21] sm:$0xff]
        %v2364 = vld [vmem:[%s1540 + $0x31] sm:$0xff]
        %v2365 = vld [vmem:[%s1540 + $0x41] sm:$0xff]
        %v2366 = vld [vmem:[%s1540 + $0x51] sm:$0xff]
        %v2367 = vld [vmem:[%s1540 + $0x61] sm:$0xff]
        %v2368 = vld [vmem:[%s1540 + $0x71] sm:$0xff]
        %2377 = vrot.lane.b32.xlu0 %v2361, 32
        %v2378 = vpop.permute.xlu0 %2377
        %2379 = vrot.lane.b32.xlu0 %v2362, 32
        %v2380 = vpop.permute.xlu0 %2379
        %2381 = vrot.lane.b32.xlu0 %v2363, 32
        %v2382 = vpop.permute.xlu0 %2381
        %2383 = vrot.lane.b32.xlu0 %v2364, 32
        %v2384 = vpop.permute.xlu0 %2383
        %2385 = vrot.lane.b32.xlu0 %v2365, 32
        %v2386 = vpop.permute.xlu0 %2385
        %2387 = vrot.lane.b32.xlu0 %v2366, 32
        %v2388 = vpop.permute.xlu0 %2387
        %2389 = vrot.lane.b32.xlu0 %v2367, 32
        %v2390 = vpop.permute.xlu0 %2389
        %2391 = vrot.lane.b32.xlu0 %v2368, 32
        %v2392 = vpop.permute.xlu0 %2391
        %2401 = vst.msk [vmem:[#allocation4] sm:$0xff] %vm1780, %v2378
        %2402 = vst.msk [vmem:[#allocation4 + $0x8] sm:$0xff] %vm1780, %v2380
        %2403 = vst.msk [vmem:[#allocation4 + $0x10] sm:$0xff] %vm1780, %v2382
        %2404 = vst.msk [vmem:[#allocation4 + $0x18] sm:$0xff] %vm1780, %v2384
        %2405 = vst.msk [vmem:[#allocation4 + $0x20] sm:$0xff] %vm1780, %v2386
        %2406 = vst.msk [vmem:[#allocation4 + $0x28] sm:$0xff] %vm1780, %v2388
        %2407 = vst.msk [vmem:[#allocation4 + $0x30] sm:$0xff] %vm1780, %v2390
        %2408 = vst.msk [vmem:[#allocation4 + $0x38] sm:$0xff] %vm1780, %v2392
        %v2409 = vld [vmem:[%s1540 + $0x2] sm:$0xff]
        %v2410 = vld [vmem:[%s1540 + $0x12] sm:$0xff]
        %v2411 = vld [vmem:[%s1540 + $0x22] sm:$0xff]
        %v2412 = vld [vmem:[%s1540 + $0x32] sm:$0xff]
        %v2413 = vld [vmem:[%s1540 + $0x42] sm:$0xff]
        %v2414 = vld [vmem:[%s1540 + $0x52] sm:$0xff]
        %v2415 = vld [vmem:[%s1540 + $0x62] sm:$0xff]
        %v2416 = vld [vmem:[%s1540 + $0x72] sm:$0xff]
        %2425 = vrot.lane.b32.xlu0 %v2409, 40
        %v2426 = vpop.permute.xlu0 %2425
        %2427 = vrot.lane.b32.xlu0 %v2410, 40
        %v2428 = vpop.permute.xlu0 %2427
        %2429 = vrot.lane.b32.xlu0 %v2411, 40
        %v2430 = vpop.permute.xlu0 %2429
        %2431 = vrot.lane.b32.xlu0 %v2412, 40
        %v2432 = vpop.permute.xlu0 %2431
        %2433 = vrot.lane.b32.xlu0 %v2413, 40
        %v2434 = vpop.permute.xlu0 %2433
        %2435 = vrot.lane.b32.xlu0 %v2414, 40
        %v2436 = vpop.permute.xlu0 %2435
        %2437 = vrot.lane.b32.xlu0 %v2415, 40
        %v2438 = vpop.permute.xlu0 %2437
        %2439 = vrot.lane.b32.xlu0 %v2416, 40
        %v2440 = vpop.permute.xlu0 %2439
        %2449 = vst.msk [vmem:[#allocation4] sm:$0xff] %vm1829, %v2426
        %2450 = vst.msk [vmem:[#allocation4 + $0x8] sm:$0xff] %vm1829, %v2428
        %2451 = vst.msk [vmem:[#allocation4 + $0x10] sm:$0xff] %vm1829, %v2430
        %2452 = vst.msk [vmem:[#allocation4 + $0x18] sm:$0xff] %vm1829, %v2432
        %2453 = vst.msk [vmem:[#allocation4 + $0x20] sm:$0xff] %vm1829, %v2434
        %2454 = vst.msk [vmem:[#allocation4 + $0x28] sm:$0xff] %vm1829, %v2436
        %2455 = vst.msk [vmem:[#allocation4 + $0x30] sm:$0xff] %vm1829, %v2438
        %2456 = vst.msk [vmem:[#allocation4 + $0x38] sm:$0xff] %vm1829, %v2440
        %v2457 = vld [vmem:[%s1838] sm:$0xff]
        %v2458 = vld [vmem:[%s1838 + $0x10] sm:$0xff]
        %v2459 = vld [vmem:[%s1838 + $0x20] sm:$0xff]
        %v2460 = vld [vmem:[%s1838 + $0x30] sm:$0xff]
        %v2461 = vld [vmem:[%s1838 + $0x40] sm:$0xff]
        %v2462 = vld [vmem:[%s1838 + $0x50] sm:$0xff]
        %v2463 = vld [vmem:[%s1838 + $0x60] sm:$0xff]
        %v2464 = vld [vmem:[%s1838 + $0x70] sm:$0xff]
        %2473 = vrot.lane.b32.xlu0 %v2457, 48
        %v2474 = vpop.permute.xlu0 %2473
        %2475 = vrot.lane.b32.xlu0 %v2458, 48
        %v2476 = vpop.permute.xlu0 %2475
        %2477 = vrot.lane.b32.xlu0 %v2459, 48
        %v2478 = vpop.permute.xlu0 %2477
        %2479 = vrot.lane.b32.xlu0 %v2460, 48
        %v2480 = vpop.permute.xlu0 %2479
        %2481 = vrot.lane.b32.xlu0 %v2461, 48
        %v2482 = vpop.permute.xlu0 %2481
        %2483 = vrot.lane.b32.xlu0 %v2462, 48
        %v2484 = vpop.permute.xlu0 %2483
        %2485 = vrot.lane.b32.xlu0 %v2463, 48
        %v2486 = vpop.permute.xlu0 %2485
        %2487 = vrot.lane.b32.xlu0 %v2464, 48
        %v2488 = vpop.permute.xlu0 %2487
        %2497 = vst.msk [vmem:[#allocation4] sm:$0xff] %vm1879, %v2474
        %2498 = vst.msk [vmem:[#allocation4 + $0x8] sm:$0xff] %vm1879, %v2476
        %2499 = vst.msk [vmem:[#allocation4 + $0x10] sm:$0xff] %vm1879, %v2478
        %2500 = vst.msk [vmem:[#allocation4 + $0x18] sm:$0xff] %vm1879, %v2480
        %2501 = vst.msk [vmem:[#allocation4 + $0x20] sm:$0xff] %vm1879, %v2482
        %2502 = vst.msk [vmem:[#allocation4 + $0x28] sm:$0xff] %vm1879, %v2484
        %2503 = vst.msk [vmem:[#allocation4 + $0x30] sm:$0xff] %vm1879, %v2486
        %2504 = vst.msk [vmem:[#allocation4 + $0x38] sm:$0xff] %vm1879, %v2488
        %v2505 = vld [vmem:[%s1838 + $0x1] sm:$0xff]
        %v2506 = vld [vmem:[%s1838 + $0x11] sm:$0xff]
        %v2507 = vld [vmem:[%s1838 + $0x21] sm:$0xff]
        %v2508 = vld [vmem:[%s1838 + $0x31] sm:$0xff]
        %v2509 = vld [vmem:[%s1838 + $0x41] sm:$0xff]
        %v2510 = vld [vmem:[%s1838 + $0x51] sm:$0xff]
        %v2511 = vld [vmem:[%s1838 + $0x61] sm:$0xff]
        %v2512 = vld [vmem:[%s1838 + $0x71] sm:$0xff]
        %2521 = vrot.lane.b32.xlu0 %v2505, 56
        %v2522 = vpop.permute.xlu0 %2521
        %2523 = vrot.lane.b32.xlu0 %v2506, 56
        %v2524 = vpop.permute.xlu0 %2523
        %2525 = vrot.lane.b32.xlu0 %v2507, 56
        %v2526 = vpop.permute.xlu0 %2525
        %2527 = vrot.lane.b32.xlu0 %v2508, 56
        %v2528 = vpop.permute.xlu0 %2527
        %2529 = vrot.lane.b32.xlu0 %v2509, 56
        %v2530 = vpop.permute.xlu0 %2529
        %2531 = vrot.lane.b32.xlu0 %v2510, 56
        %v2532 = vpop.permute.xlu0 %2531
        %2533 = vrot.lane.b32.xlu0 %v2511, 56
        %v2534 = vpop.permute.xlu0 %2533
        %2535 = vrot.lane.b32.xlu0 %v2512, 56
        %v2536 = vpop.permute.xlu0 %2535
        %2545 = vst.msk [vmem:[#allocation4] sm:$0xff] %vm1928, %v2522
        %2546 = vst.msk [vmem:[#allocation4 + $0x8] sm:$0xff] %vm1928, %v2524
        %2547 = vst.msk [vmem:[#allocation4 + $0x10] sm:$0xff] %vm1928, %v2526
        %2548 = vst.msk [vmem:[#allocation4 + $0x18] sm:$0xff] %vm1928, %v2528
        %2549 = vst.msk [vmem:[#allocation4 + $0x20] sm:$0xff] %vm1928, %v2530
        %2550 = vst.msk [vmem:[#allocation4 + $0x28] sm:$0xff] %vm1928, %v2532
        %2551 = vst.msk [vmem:[#allocation4 + $0x30] sm:$0xff] %vm1928, %v2534
        %2552 = vst.msk [vmem:[#allocation4 + $0x38] sm:$0xff] %vm1928, %v2536
        %v2553 = vld [vmem:[%s1838 + $0x2] sm:$0xff]
        %v2554 = vld [vmem:[%s1838 + $0x12] sm:$0xff]
        %v2555 = vld [vmem:[%s1838 + $0x22] sm:$0xff]
        %v2556 = vld [vmem:[%s1838 + $0x32] sm:$0xff]
        %v2557 = vld [vmem:[%s1838 + $0x42] sm:$0xff]
        %v2558 = vld [vmem:[%s1838 + $0x52] sm:$0xff]
        %v2559 = vld [vmem:[%s1838 + $0x62] sm:$0xff]
        %v2560 = vld [vmem:[%s1838 + $0x72] sm:$0xff]
        %2569 = vrot.lane.b32.xlu0 %v2553, 64
        %v2570 = vpop.permute.xlu0 %2569
        %2571 = vrot.lane.b32.xlu0 %v2554, 64
        %v2572 = vpop.permute.xlu0 %2571
        %2573 = vrot.lane.b32.xlu0 %v2555, 64
        %v2574 = vpop.permute.xlu0 %2573
        %2575 = vrot.lane.b32.xlu0 %v2556, 64
        %v2576 = vpop.permute.xlu0 %2575
        %2577 = vrot.lane.b32.xlu0 %v2557, 64
        %v2578 = vpop.permute.xlu0 %2577
        %2579 = vrot.lane.b32.xlu0 %v2558, 64
        %v2580 = vpop.permute.xlu0 %2579
        %2581 = vrot.lane.b32.xlu0 %v2559, 64
        %v2582 = vpop.permute.xlu0 %2581
        %2583 = vrot.lane.b32.xlu0 %v2560, 64
        %v2584 = vpop.permute.xlu0 %2583
        %2593 = vst.msk [vmem:[#allocation4] sm:$0xff] %vm1977, %v2570
        %2594 = vst.msk [vmem:[#allocation4 + $0x8] sm:$0xff] %vm1977, %v2572
        %2595 = vst.msk [vmem:[#allocation4 + $0x10] sm:$0xff] %vm1977, %v2574
        %2596 = vst.msk [vmem:[#allocation4 + $0x18] sm:$0xff] %vm1977, %v2576
        %2597 = vst.msk [vmem:[#allocation4 + $0x20] sm:$0xff] %vm1977, %v2578
        %2598 = vst.msk [vmem:[#allocation4 + $0x28] sm:$0xff] %vm1977, %v2580
        %2599 = vst.msk [vmem:[#allocation4 + $0x30] sm:$0xff] %vm1977, %v2582
        %2600 = vst.msk [vmem:[#allocation4 + $0x38] sm:$0xff] %vm1977, %v2584
        %v2601 = vld [vmem:[#allocation4] sm:$0xff]
        %v2602 = vld [vmem:[#allocation4 + $0x8] sm:$0xff]
        %v2603 = vld [vmem:[#allocation4 + $0x10] sm:$0xff]
        %v2604 = vld [vmem:[#allocation4 + $0x18] sm:$0xff]
        %v2605 = vld [vmem:[#allocation4 + $0x20] sm:$0xff]
        %v2606 = vld [vmem:[#allocation4 + $0x28] sm:$0xff]
        %v2607 = vld [vmem:[#allocation4 + $0x30] sm:$0xff]
        %v2608 = vld [vmem:[#allocation4 + $0x38] sm:$0xff]
        %v2609 = vpack.c.bf16 %v2602, %v2601
        %v2610 = vpack.c.bf16 %v2604, %v2603
        %v2611 = vpack.c.bf16 %v2606, %v2605
        %v2612 = vpack.c.bf16 %v2608, %v2607
        %v2613 = vld [vmem:[%s10] sm:$0xf]
        %v2614 = vld [vmem:[%s10 + $0x4] sm:$0xf]
        %v2615 = vld [vmem:[%s10 + $0x8] sm:$0xf]
        %v2616 = vld [vmem:[%s10 + $0xc] sm:$0xf]
        %v2617 = vld [vmem:[%s10 + $0x10] sm:$0xf]
        %v2618 = vld [vmem:[%s10 + $0x14] sm:$0xf]
        %v2619 = vld [vmem:[%s10 + $0x18] sm:$0xf]
        %v2620 = vld [vmem:[%s10 + $0x1c] sm:$0xf]
        %v2621 = vld [vmem:[%s10 + $0x20] sm:$0xf]
        %v2631 = vunpack.c.l.b16 %v2613
        %v2632 = vunpack.c.l.b16 %v2614
        %v2633 = vunpack.c.l.b16 %v2615
        %v2634 = vunpack.c.l.b16 %v2616
        %v2635 = vunpack.c.l.b16 %v2617
        %v2636 = vunpack.c.l.b16 %v2618
        %v2637 = vunpack.c.l.b16 %v2619
        %v2638 = vunpack.c.l.b16 %v2620
        %v2639 = vunpack.c.l.b16 %v2621
        %v2640 = vpack.c.b16 %v2632, %v2631
        %v2641 = vpack.c.b16 %v2634, %v2633
        %v2642 = vpack.c.b16 %v2636, %v2635
        %v2643 = vpack.c.b16 %v2638, %v2637
        %v2644 = vpack.c.b16 %v2639, %v2639
        %v2650 = vsel %vm2034, %v2609, 0
        %v2653 = vsel %vm2034, %v2610, 0
        %v2656 = vsel %vm2034, %v2611, 0
        %v2659 = vsel %vm2034, %v2612, 0
        %v2662 = vsel %vm1377, %v2644, 0
        %2664 = vmatprep.subr.bf16.mxu0 0
        %2665 = vmatpush1.bf16.msra.mxu0 %v2640
        %2666 = vmatprep.subr.bf16.mxu0 0
        %2667 = vmatpush1.bf16.msra.mxu0 %v2641
        %2668 = vmatprep.subr.bf16.mxu0 0
        %2669 = vmatpush1.bf16.msra.mxu0 %v2642
        %2670 = vmatprep.subr.bf16.mxu0 0
        %2671 = vmatpush1.bf16.msra.mxu0 %v2643
        %2672 = vmatprep.subr.bf16.mxu0 0
        %2673 = vmatpush1.bf16.msra.mxu0 %v2662
        %2674 = vmatprep.subr.bf16.mxu0 0
        %2675 = vmatpush1.bf16.msra.mxu0 0
        %2676 = vmatprep.subr.bf16.mxu0 0
        %2677 = vmatpush1.bf16.msra.mxu0 0
        %2678 = vmatprep.subr.bf16.mxu0 0
        %2679 = vmatpush1.bf16.msra.mxu0 0
        %2680 = vmatprep.subr.bf16.mxu0 0
        %2681 = vmatpush1.bf16.msra.mxu0 0
        %2682 = vmatprep.subr.bf16.mxu0 0
        %2683 = vmatpush1.bf16.msra.mxu0 0
        %2684 = vmatprep.subr.bf16.mxu0 0
        %2685 = vmatpush1.bf16.msra.mxu0 0
        %2686 = vmatprep.subr.bf16.mxu0 0
        %2687 = vmatpush1.bf16.msra.mxu0 0
        %2688 = vmatprep.subr.bf16.mxu0 0
        %2689 = vmatpush1.bf16.msra.mxu0 0
        %2690 = vmatprep.subr.bf16.mxu0 0
        %2691 = vmatpush1.bf16.msra.mxu0 0
        %2692 = vmatprep.subr.bf16.mxu0 0
        %2693 = vmatpush1.bf16.msra.mxu0 0
        %2694 = vmatprep.subr.bf16.mxu0 0
        %2695 = vmatpush1.bf16.msra.mxu0 0
        %2696 = vmatprep.mubr.bf16.mxu0 0
        %2697 = vmatmul.mubr.bf16.gmra.mrb[0].mxu0 %v2650
        %v2698 = vpop.f32.mrb[0].mxu0
        %v2699 = vadd.f32 0.0, %v2698
        %v2700 = vpop.f32.mrb[0].mxu0
        %v2701 = vpop.f32.mrb[0].mxu0
        %v2702 = vadd.f32 0.0, %v2701
        %v2703 = vpop.f32.mrb[0].mxu0
        %2704 = vmatprep.mubr.bf16.mxu0 0
        %2705 = vmatmul.mubr.bf16.gmra.mrb[0].mxu0 %v2653
        %v2706 = vpop.f32.mrb[0].mxu0
        %v2707 = vadd.f32 0.0, %v2706
        %v2708 = vpop.f32.mrb[0].mxu0
        %v2709 = vpop.f32.mrb[0].mxu0
        %v2710 = vadd.f32 0.0, %v2709
        %v2711 = vpop.f32.mrb[0].mxu0
        %2712 = vmatprep.mubr.bf16.mxu0 0
        %2713 = vmatmul.mubr.bf16.gmra.mrb[0].mxu0 %v2656
        %v2714 = vpop.f32.mrb[0].mxu0
        %v2715 = vadd.f32 0.0, %v2714
        %v2716 = vpop.f32.mrb[0].mxu0
        %v2717 = vpop.f32.mrb[0].mxu0
        %v2718 = vadd.f32 0.0, %v2717
        %v2719 = vpop.f32.mrb[0].mxu0
        %2720 = vmatprep.mubr.bf16.mxu0 0
        %2721 = vmatmul.mubr.bf16.gmra.mrb[0].mxu0 %v2659
        %v2722 = vpop.f32.mrb[0].mxu0
        %v2723 = vadd.f32 0.0, %v2722
        %v2724 = vpop.f32.mrb[0].mxu0
        %v2725 = vpop.f32.mrb[0].mxu0
        %v2726 = vadd.f32 0.0, %v2725
        %v2727 = vpop.f32.mrb[0].mxu0
        %2728 = vdwg.mxu0
        %v2729 = vld [vmem:[%s11] sm:$0x1]
        %v2731 = vlaneseq
        %v2732 = vshrl.u32 %v2731, 7
        %v2733 = vsub.s32 0, %v2732
        %v2734 = vrot.slane %v2729, %v2733
        %v2736 = vmul.f32 %v2699, %v2734
        %v2737 = vmul.f32 %v2702, %v2734
        %v2738 = vmul.f32 %v2707, %v2734
        %v2739 = vmul.f32 %v2710, %v2734
        %v2740 = vmul.f32 %v2715, %v2734
        %v2741 = vmul.f32 %v2718, %v2734
        %v2742 = vmul.f32 %v2723, %v2734
        %v2743 = vmul.f32 %v2726, %v2734
        %v2744 = vld [vmem:[%s12] sm:$0x1]
        %v2746 = vlaneseq
        %v2747 = vshrl.u32 %v2746, 7
        %v2748 = vsub.s32 0, %v2747
        %v2749 = vrot.slane %v2744, %v2748
        %v2751 = vadd.f32 %v2736, %v2749
        %v2752 = vadd.f32 %v2737, %v2749
        %v2753 = vadd.f32 %v2738, %v2749
        %v2754 = vadd.f32 %v2739, %v2749
        %v2755 = vadd.f32 %v2740, %v2749
        %v2756 = vadd.f32 %v2741, %v2749
        %v2757 = vadd.f32 %v2742, %v2749
        %v2758 = vadd.f32 %v2743, %v2749
        %vm2759 = vcmp.gt.f32.partialorder %v2751, 0.0
        %vm2760 = vcmp.gt.f32.partialorder %v2752, 0.0
        %vm2761 = vcmp.gt.f32.partialorder %v2753, 0.0
        %vm2762 = vcmp.gt.f32.partialorder %v2754, 0.0
        %vm2763 = vcmp.gt.f32.partialorder %v2755, 0.0
        %vm2764 = vcmp.gt.f32.partialorder %v2756, 0.0
        %vm2765 = vcmp.gt.f32.partialorder %v2757, 0.0
        %vm2766 = vcmp.gt.f32.partialorder %v2758, 0.0
        %v2767 = vmul.f32 %v2751, 0.1
        %v2768 = vmul.f32 %v2752, 0.1
        %v2769 = vmul.f32 %v2753, 0.1
        %v2770 = vmul.f32 %v2754, 0.1
        %v2771 = vmul.f32 %v2755, 0.1
        %v2772 = vmul.f32 %v2756, 0.1
        %v2773 = vmul.f32 %v2757, 0.1
        %v2774 = vmul.f32 %v2758, 0.1
        %v2775 = vsel %vm2759, %v2751, %v2767
        %v2776 = vsel %vm2760, %v2752, %v2768
        %v2777 = vsel %vm2761, %v2753, %v2769
        %v2778 = vsel %vm2762, %v2754, %v2770
        %v2779 = vsel %vm2763, %v2755, %v2771
        %v2780 = vsel %vm2764, %v2756, %v2772
        %v2781 = vsel %vm2765, %v2757, %v2773
        %v2782 = vsel %vm2766, %v2758, %v2774
        %2783 = vst.msk [vmem:[%s1540 + $0x1] sm:$0xff] %vm1541, %v2775
        %2784 = vst.msk [vmem:[%s1540 + $0x11] sm:$0xff] %vm1541, %v2776
        %2785 = vst.msk [vmem:[%s1540 + $0x21] sm:$0xff] %vm1541, %v2777
        %2786 = vst.msk [vmem:[%s1540 + $0x31] sm:$0xff] %vm1541, %v2778
        %2787 = vst.msk [vmem:[%s1540 + $0x41] sm:$0xff] %vm1541, %v2779
        %2788 = vst.msk [vmem:[%s1540 + $0x51] sm:$0xff] %vm1541, %v2780
        %2789 = vst.msk [vmem:[%s1540 + $0x61] sm:$0xff] %vm1541, %v2781
        %2790 = vst.msk [vmem:[%s1540 + $0x71] sm:$0xff] %vm1541, %v2782
        %2791 = vst.msk [vmem:[#allocation3] sm:$0xff] %vm1541, 0.0
        %2792 = vst.msk [vmem:[#allocation3 + $0x8] sm:$0x3] %vm1551, 0.0
        %2793 = vst.msk [vmem:[%s1553] sm:$0xff] %vm1541, 0.0
        %2794 = vst.msk [vmem:[%s1553 + $0x8] sm:$0x3] %vm1551, 0.0
        %2795 = vst.msk [vmem:[#allocation3] sm:$0x1] %vm1556, 0.0
        %2796 = vst.msk [vmem:[#allocation3 + $0x10] sm:$0x1] %vm1556, 0.0
        %2797 = vst.msk [vmem:[#allocation3 + $0x20] sm:$0x1] %vm1556, 0.0
        %2798 = vst.msk [vmem:[#allocation3 + $0x30] sm:$0x1] %vm1556, 0.0
        %2799 = vst.msk [vmem:[#allocation3 + $0x40] sm:$0x1] %vm1556, 0.0
        %2800 = vst.msk [vmem:[#allocation3 + $0x50] sm:$0x1] %vm1556, 0.0
        %2801 = vst.msk [vmem:[#allocation3 + $0x60] sm:$0x1] %vm1556, 0.0
        %2802 = vst.msk [vmem:[#allocation3 + $0x70] sm:$0x1] %vm1556, 0.0
        %2803 = vst.msk [vmem:[#allocation3 + $0x80] sm:$0x1] %vm1556, 0.0
        %2804 = vst.msk [vmem:[#allocation3 + $0x90] sm:$0x1] %vm1556, 0.0
        %2805 = vst.msk [vmem:[#allocation3 + $0x9] sm:$0x1] %vm1556, 0.0
        %2806 = vst.msk [vmem:[#allocation3 + $0x19] sm:$0x1] %vm1556, 0.0
        %2807 = vst.msk [vmem:[#allocation3 + $0x29] sm:$0x1] %vm1556, 0.0
        %2808 = vst.msk [vmem:[#allocation3 + $0x39] sm:$0x1] %vm1556, 0.0
        %2809 = vst.msk [vmem:[#allocation3 + $0x49] sm:$0x1] %vm1556, 0.0
        %2810 = vst.msk [vmem:[#allocation3 + $0x59] sm:$0x1] %vm1556, 0.0
        %2811 = vst.msk [vmem:[#allocation3 + $0x69] sm:$0x1] %vm1556, 0.0
        %2812 = vst.msk [vmem:[#allocation3 + $0x79] sm:$0x1] %vm1556, 0.0
        %2813 = vst.msk [vmem:[#allocation3 + $0x89] sm:$0x1] %vm1556, 0.0
        %2814 = vst.msk [vmem:[#allocation3 + $0x99] sm:$0x1] %vm1556, 0.0
        %v2815 = vld [vmem:[#allocation3] sm:$0xff]
        %v2816 = vld [vmem:[#allocation3 + $0x10] sm:$0xff]
        %v2817 = vld [vmem:[#allocation3 + $0x20] sm:$0xff]
        %v2818 = vld [vmem:[#allocation3 + $0x30] sm:$0xff]
        %v2819 = vld [vmem:[#allocation3 + $0x40] sm:$0xff]
        %v2820 = vld [vmem:[#allocation3 + $0x50] sm:$0xff]
        %v2821 = vld [vmem:[#allocation3 + $0x60] sm:$0xff]
        %v2822 = vld [vmem:[#allocation3 + $0x70] sm:$0xff]
        %2823 = vst.msk [vmem:[#allocation4] sm:$0xff] %vm1541, %v2815
        %2824 = vst.msk [vmem:[#allocation4 + $0x8] sm:$0xff] %vm1541, %v2816
        %2825 = vst.msk [vmem:[#allocation4 + $0x10] sm:$0xff] %vm1541, %v2817
        %2826 = vst.msk [vmem:[#allocation4 + $0x18] sm:$0xff] %vm1541, %v2818
        %2827 = vst.msk [vmem:[#allocation4 + $0x20] sm:$0xff] %vm1541, %v2819
        %2828 = vst.msk [vmem:[#allocation4 + $0x28] sm:$0xff] %vm1541, %v2820
        %2829 = vst.msk [vmem:[#allocation4 + $0x30] sm:$0xff] %vm1541, %v2821
        %2830 = vst.msk [vmem:[#allocation4 + $0x38] sm:$0xff] %vm1541, %v2822
        %v2831 = vld [vmem:[#allocation3 + $0x1] sm:$0xff]
        %v2832 = vld [vmem:[#allocation3 + $0x11] sm:$0xff]
        %v2833 = vld [vmem:[#allocation3 + $0x21] sm:$0xff]
        %v2834 = vld [vmem:[#allocation3 + $0x31] sm:$0xff]
        %v2835 = vld [vmem:[#allocation3 + $0x41] sm:$0xff]
        %v2836 = vld [vmem:[#allocation3 + $0x51] sm:$0xff]
        %v2837 = vld [vmem:[#allocation3 + $0x61] sm:$0xff]
        %v2838 = vld [vmem:[#allocation3 + $0x71] sm:$0xff]
        %2847 = vrot.lane.b32.xlu0 %v2831, 8
        %v2848 = vpop.permute.xlu0 %2847
        %2849 = vrot.lane.b32.xlu0 %v2832, 8
        %v2850 = vpop.permute.xlu0 %2849
        %2851 = vrot.lane.b32.xlu0 %v2833, 8
        %v2852 = vpop.permute.xlu0 %2851
        %2853 = vrot.lane.b32.xlu0 %v2834, 8
        %v2854 = vpop.permute.xlu0 %2853
        %2855 = vrot.lane.b32.xlu0 %v2835, 8
        %v2856 = vpop.permute.xlu0 %2855
        %2857 = vrot.lane.b32.xlu0 %v2836, 8
        %v2858 = vpop.permute.xlu0 %2857
        %2859 = vrot.lane.b32.xlu0 %v2837, 8
        %v2860 = vpop.permute.xlu0 %2859
        %2861 = vrot.lane.b32.xlu0 %v2838, 8
        %v2862 = vpop.permute.xlu0 %2861
        %2871 = vst.msk [vmem:[#allocation4] sm:$0xff] %vm1633, %v2848
        %2872 = vst.msk [vmem:[#allocation4 + $0x8] sm:$0xff] %vm1633, %v2850
        %2873 = vst.msk [vmem:[#allocation4 + $0x10] sm:$0xff] %vm1633, %v2852
        %2874 = vst.msk [vmem:[#allocation4 + $0x18] sm:$0xff] %vm1633, %v2854
        %2875 = vst.msk [vmem:[#allocation4 + $0x20] sm:$0xff] %vm1633, %v2856
        %2876 = vst.msk [vmem:[#allocation4 + $0x28] sm:$0xff] %vm1633, %v2858
        %2877 = vst.msk [vmem:[#allocation4 + $0x30] sm:$0xff] %vm1633, %v2860
        %2878 = vst.msk [vmem:[#allocation4 + $0x38] sm:$0xff] %vm1633, %v2862
        %v2879 = vld [vmem:[#allocation3 + $0x2] sm:$0xff]
        %v2880 = vld [vmem:[#allocation3 + $0x12] sm:$0xff]
        %v2881 = vld [vmem:[#allocation3 + $0x22] sm:$0xff]
        %v2882 = vld [vmem:[#allocation3 + $0x32] sm:$0xff]
        %v2883 = vld [vmem:[#allocation3 + $0x42] sm:$0xff]
        %v2884 = vld [vmem:[#allocation3 + $0x52] sm:$0xff]
        %v2885 = vld [vmem:[#allocation3 + $0x62] sm:$0xff]
        %v2886 = vld [vmem:[#allocation3 + $0x72] sm:$0xff]
        %2895 = vrot.lane.b32.xlu0 %v2879, 16
        %v2896 = vpop.permute.xlu0 %2895
        %2897 = vrot.lane.b32.xlu0 %v2880, 16
        %v2898 = vpop.permute.xlu0 %2897
        %2899 = vrot.lane.b32.xlu0 %v2881, 16
        %v2900 = vpop.permute.xlu0 %2899
        %2901 = vrot.lane.b32.xlu0 %v2882, 16
        %v2902 = vpop.permute.xlu0 %2901
        %2903 = vrot.lane.b32.xlu0 %v2883, 16
        %v2904 = vpop.permute.xlu0 %2903
        %2905 = vrot.lane.b32.xlu0 %v2884, 16
        %v2906 = vpop.permute.xlu0 %2905
        %2907 = vrot.lane.b32.xlu0 %v2885, 16
        %v2908 = vpop.permute.xlu0 %2907
        %2909 = vrot.lane.b32.xlu0 %v2886, 16
        %v2910 = vpop.permute.xlu0 %2909
        %2919 = vst.msk [vmem:[#allocation4] sm:$0xff] %vm1682, %v2896
        %2920 = vst.msk [vmem:[#allocation4 + $0x8] sm:$0xff] %vm1682, %v2898
        %2921 = vst.msk [vmem:[#allocation4 + $0x10] sm:$0xff] %vm1682, %v2900
        %2922 = vst.msk [vmem:[#allocation4 + $0x18] sm:$0xff] %vm1682, %v2902
        %2923 = vst.msk [vmem:[#allocation4 + $0x20] sm:$0xff] %vm1682, %v2904
        %2924 = vst.msk [vmem:[#allocation4 + $0x28] sm:$0xff] %vm1682, %v2906
        %2925 = vst.msk [vmem:[#allocation4 + $0x30] sm:$0xff] %vm1682, %v2908
        %2926 = vst.msk [vmem:[#allocation4 + $0x38] sm:$0xff] %vm1682, %v2910
        %v2927 = vld [vmem:[%s1540] sm:$0xff]
        %v2928 = vld [vmem:[%s1540 + $0x10] sm:$0xff]
        %v2929 = vld [vmem:[%s1540 + $0x20] sm:$0xff]
        %v2930 = vld [vmem:[%s1540 + $0x30] sm:$0xff]
        %v2931 = vld [vmem:[%s1540 + $0x40] sm:$0xff]
        %v2932 = vld [vmem:[%s1540 + $0x50] sm:$0xff]
        %v2933 = vld [vmem:[%s1540 + $0x60] sm:$0xff]
        %v2934 = vld [vmem:[%s1540 + $0x70] sm:$0xff]
        %2943 = vrot.lane.b32.xlu0 %v2927, 24
        %v2944 = vpop.permute.xlu0 %2943
        %2945 = vrot.lane.b32.xlu0 %v2928, 24
        %v2946 = vpop.permute.xlu0 %2945
        %2947 = vrot.lane.b32.xlu0 %v2929, 24
        %v2948 = vpop.permute.xlu0 %2947
        %2949 = vrot.lane.b32.xlu0 %v2930, 24
        %v2950 = vpop.permute.xlu0 %2949
        %2951 = vrot.lane.b32.xlu0 %v2931, 24
        %v2952 = vpop.permute.xlu0 %2951
        %2953 = vrot.lane.b32.xlu0 %v2932, 24
        %v2954 = vpop.permute.xlu0 %2953
        %2955 = vrot.lane.b32.xlu0 %v2933, 24
        %v2956 = vpop.permute.xlu0 %2955
        %2957 = vrot.lane.b32.xlu0 %v2934, 24
        %v2958 = vpop.permute.xlu0 %2957
        %2967 = vst.msk [vmem:[#allocation4] sm:$0xff] %vm1731, %v2944
        %2968 = vst.msk [vmem:[#allocation4 + $0x8] sm:$0xff] %vm1731, %v2946
        %2969 = vst.msk [vmem:[#allocation4 + $0x10] sm:$0xff] %vm1731, %v2948
        %2970 = vst.msk [vmem:[#allocation4 + $0x18] sm:$0xff] %vm1731, %v2950
        %2971 = vst.msk [vmem:[#allocation4 + $0x20] sm:$0xff] %vm1731, %v2952
        %2972 = vst.msk [vmem:[#allocation4 + $0x28] sm:$0xff] %vm1731, %v2954
        %2973 = vst.msk [vmem:[#allocation4 + $0x30] sm:$0xff] %vm1731, %v2956
        %2974 = vst.msk [vmem:[#allocation4 + $0x38] sm:$0xff] %vm1731, %v2958
        %v2975 = vld [vmem:[%s1540 + $0x1] sm:$0xff]
        %v2976 = vld [vmem:[%s1540 + $0x11] sm:$0xff]
        %v2977 = vld [vmem:[%s1540 + $0x21] sm:$0xff]
        %v2978 = vld [vmem:[%s1540 + $0x31] sm:$0xff]
        %v2979 = vld [vmem:[%s1540 + $0x41] sm:$0xff]
        %v2980 = vld [vmem:[%s1540 + $0x51] sm:$0xff]
        %v2981 = vld [vmem:[%s1540 + $0x61] sm:$0xff]
        %v2982 = vld [vmem:[%s1540 + $0x71] sm:$0xff]
        %2991 = vrot.lane.b32.xlu0 %v2975, 32
        %v2992 = vpop.permute.xlu0 %2991
        %2993 = vrot.lane.b32.xlu0 %v2976, 32
        %v2994 = vpop.permute.xlu0 %2993
        %2995 = vrot.lane.b32.xlu0 %v2977, 32
        %v2996 = vpop.permute.xlu0 %2995
        %2997 = vrot.lane.b32.xlu0 %v2978, 32
        %v2998 = vpop.permute.xlu0 %2997
        %2999 = vrot.lane.b32.xlu0 %v2979, 32
        %v3000 = vpop.permute.xlu0 %2999
        %3001 = vrot.lane.b32.xlu0 %v2980, 32
        %v3002 = vpop.permute.xlu0 %3001
        %3003 = vrot.lane.b32.xlu0 %v2981, 32
        %v3004 = vpop.permute.xlu0 %3003
        %3005 = vrot.lane.b32.xlu0 %v2982, 32
        %v3006 = vpop.permute.xlu0 %3005
        %3015 = vst.msk [vmem:[#allocation4] sm:$0xff] %vm1780, %v2992
        %3016 = vst.msk [vmem:[#allocation4 + $0x8] sm:$0xff] %vm1780, %v2994
        %3017 = vst.msk [vmem:[#allocation4 + $0x10] sm:$0xff] %vm1780, %v2996
        %3018 = vst.msk [vmem:[#allocation4 + $0x18] sm:$0xff] %vm1780, %v2998
        %3019 = vst.msk [vmem:[#allocation4 + $0x20] sm:$0xff] %vm1780, %v3000
        %3020 = vst.msk [vmem:[#allocation4 + $0x28] sm:$0xff] %vm1780, %v3002
        %3021 = vst.msk [vmem:[#allocation4 + $0x30] sm:$0xff] %vm1780, %v3004
        %3022 = vst.msk [vmem:[#allocation4 + $0x38] sm:$0xff] %vm1780, %v3006
        %v3023 = vld [vmem:[%s1540 + $0x2] sm:$0xff]
        %v3024 = vld [vmem:[%s1540 + $0x12] sm:$0xff]
        %v3025 = vld [vmem:[%s1540 + $0x22] sm:$0xff]
        %v3026 = vld [vmem:[%s1540 + $0x32] sm:$0xff]
        %v3027 = vld [vmem:[%s1540 + $0x42] sm:$0xff]
        %v3028 = vld [vmem:[%s1540 + $0x52] sm:$0xff]
        %v3029 = vld [vmem:[%s1540 + $0x62] sm:$0xff]
        %v3030 = vld [vmem:[%s1540 + $0x72] sm:$0xff]
        %3039 = vrot.lane.b32.xlu0 %v3023, 40
        %v3040 = vpop.permute.xlu0 %3039
        %3041 = vrot.lane.b32.xlu0 %v3024, 40
        %v3042 = vpop.permute.xlu0 %3041
        %3043 = vrot.lane.b32.xlu0 %v3025, 40
        %v3044 = vpop.permute.xlu0 %3043
        %3045 = vrot.lane.b32.xlu0 %v3026, 40
        %v3046 = vpop.permute.xlu0 %3045
        %3047 = vrot.lane.b32.xlu0 %v3027, 40
        %v3048 = vpop.permute.xlu0 %3047
        %3049 = vrot.lane.b32.xlu0 %v3028, 40
        %v3050 = vpop.permute.xlu0 %3049
        %3051 = vrot.lane.b32.xlu0 %v3029, 40
        %v3052 = vpop.permute.xlu0 %3051
        %3053 = vrot.lane.b32.xlu0 %v3030, 40
        %v3054 = vpop.permute.xlu0 %3053
        %3063 = vst.msk [vmem:[#allocation4] sm:$0xff] %vm1829, %v3040
        %3064 = vst.msk [vmem:[#allocation4 + $0x8] sm:$0xff] %vm1829, %v3042
        %3065 = vst.msk [vmem:[#allocation4 + $0x10] sm:$0xff] %vm1829, %v3044
        %3066 = vst.msk [vmem:[#allocation4 + $0x18] sm:$0xff] %vm1829, %v3046
        %3067 = vst.msk [vmem:[#allocation4 + $0x20] sm:$0xff] %vm1829, %v3048
        %3068 = vst.msk [vmem:[#allocation4 + $0x28] sm:$0xff] %vm1829, %v3050
        %3069 = vst.msk [vmem:[#allocation4 + $0x30] sm:$0xff] %vm1829, %v3052
        %3070 = vst.msk [vmem:[#allocation4 + $0x38] sm:$0xff] %vm1829, %v3054
        %v3071 = vld [vmem:[%s1838] sm:$0xff]
        %v3072 = vld [vmem:[%s1838 + $0x10] sm:$0xff]
        %v3073 = vld [vmem:[%s1838 + $0x20] sm:$0xff]
        %v3074 = vld [vmem:[%s1838 + $0x30] sm:$0xff]
        %v3075 = vld [vmem:[%s1838 + $0x40] sm:$0xff]
        %v3076 = vld [vmem:[%s1838 + $0x50] sm:$0xff]
        %v3077 = vld [vmem:[%s1838 + $0x60] sm:$0xff]
        %v3078 = vld [vmem:[%s1838 + $0x70] sm:$0xff]
        %3087 = vrot.lane.b32.xlu0 %v3071, 48
        %v3088 = vpop.permute.xlu0 %3087
        %3089 = vrot.lane.b32.xlu0 %v3072, 48
        %v3090 = vpop.permute.xlu0 %3089
        %3091 = vrot.lane.b32.xlu0 %v3073, 48
        %v3092 = vpop.permute.xlu0 %3091
        %3093 = vrot.lane.b32.xlu0 %v3074, 48
        %v3094 = vpop.permute.xlu0 %3093
        %3095 = vrot.lane.b32.xlu0 %v3075, 48
        %v3096 = vpop.permute.xlu0 %3095
        %3097 = vrot.lane.b32.xlu0 %v3076, 48
        %v3098 = vpop.permute.xlu0 %3097
        %3099 = vrot.lane.b32.xlu0 %v3077, 48
        %v3100 = vpop.permute.xlu0 %3099
        %3101 = vrot.lane.b32.xlu0 %v3078, 48
        %v3102 = vpop.permute.xlu0 %3101
        %3111 = vst.msk [vmem:[#allocation4] sm:$0xff] %vm1879, %v3088
        %3112 = vst.msk [vmem:[#allocation4 + $0x8] sm:$0xff] %vm1879, %v3090
        %3113 = vst.msk [vmem:[#allocation4 + $0x10] sm:$0xff] %vm1879, %v3092
        %3114 = vst.msk [vmem:[#allocation4 + $0x18] sm:$0xff] %vm1879, %v3094
        %3115 = vst.msk [vmem:[#allocation4 + $0x20] sm:$0xff] %vm1879, %v3096
        %3116 = vst.msk [vmem:[#allocation4 + $0x28] sm:$0xff] %vm1879, %v3098
        %3117 = vst.msk [vmem:[#allocation4 + $0x30] sm:$0xff] %vm1879, %v3100
        %3118 = vst.msk [vmem:[#allocation4 + $0x38] sm:$0xff] %vm1879, %v3102
        %v3119 = vld [vmem:[%s1838 + $0x1] sm:$0xff]
        %v3120 = vld [vmem:[%s1838 + $0x11] sm:$0xff]
        %v3121 = vld [vmem:[%s1838 + $0x21] sm:$0xff]
        %v3122 = vld [vmem:[%s1838 + $0x31] sm:$0xff]
        %v3123 = vld [vmem:[%s1838 + $0x41] sm:$0xff]
        %v3124 = vld [vmem:[%s1838 + $0x51] sm:$0xff]
        %v3125 = vld [vmem:[%s1838 + $0x61] sm:$0xff]
        %v3126 = vld [vmem:[%s1838 + $0x71] sm:$0xff]
        %3135 = vrot.lane.b32.xlu0 %v3119, 56
        %v3136 = vpop.permute.xlu0 %3135
        %3137 = vrot.lane.b32.xlu0 %v3120, 56
        %v3138 = vpop.permute.xlu0 %3137
        %3139 = vrot.lane.b32.xlu0 %v3121, 56
        %v3140 = vpop.permute.xlu0 %3139
        %3141 = vrot.lane.b32.xlu0 %v3122, 56
        %v3142 = vpop.permute.xlu0 %3141
        %3143 = vrot.lane.b32.xlu0 %v3123, 56
        %v3144 = vpop.permute.xlu0 %3143
        %3145 = vrot.lane.b32.xlu0 %v3124, 56
        %v3146 = vpop.permute.xlu0 %3145
        %3147 = vrot.lane.b32.xlu0 %v3125, 56
        %v3148 = vpop.permute.xlu0 %3147
        %3149 = vrot.lane.b32.xlu0 %v3126, 56
        %v3150 = vpop.permute.xlu0 %3149
        %3159 = vst.msk [vmem:[#allocation4] sm:$0xff] %vm1928, %v3136
        %3160 = vst.msk [vmem:[#allocation4 + $0x8] sm:$0xff] %vm1928, %v3138
        %3161 = vst.msk [vmem:[#allocation4 + $0x10] sm:$0xff] %vm1928, %v3140
        %3162 = vst.msk [vmem:[#allocation4 + $0x18] sm:$0xff] %vm1928, %v3142
        %3163 = vst.msk [vmem:[#allocation4 + $0x20] sm:$0xff] %vm1928, %v3144
        %3164 = vst.msk [vmem:[#allocation4 + $0x28] sm:$0xff] %vm1928, %v3146
        %3165 = vst.msk [vmem:[#allocation4 + $0x30] sm:$0xff] %vm1928, %v3148
        %3166 = vst.msk [vmem:[#allocation4 + $0x38] sm:$0xff] %vm1928, %v3150
        %v3167 = vld [vmem:[%s1838 + $0x2] sm:$0xff]
        %v3168 = vld [vmem:[%s1838 + $0x12] sm:$0xff]
        %v3169 = vld [vmem:[%s1838 + $0x22] sm:$0xff]
        %v3170 = vld [vmem:[%s1838 + $0x32] sm:$0xff]
        %v3171 = vld [vmem:[%s1838 + $0x42] sm:$0xff]
        %v3172 = vld [vmem:[%s1838 + $0x52] sm:$0xff]
        %v3173 = vld [vmem:[%s1838 + $0x62] sm:$0xff]
        %v3174 = vld [vmem:[%s1838 + $0x72] sm:$0xff]
        %3183 = vrot.lane.b32.xlu0 %v3167, 64
        %v3184 = vpop.permute.xlu0 %3183
        %3185 = vrot.lane.b32.xlu0 %v3168, 64
        %v3186 = vpop.permute.xlu0 %3185
        %3187 = vrot.lane.b32.xlu0 %v3169, 64
        %v3188 = vpop.permute.xlu0 %3187
        %3189 = vrot.lane.b32.xlu0 %v3170, 64
        %v3190 = vpop.permute.xlu0 %3189
        %3191 = vrot.lane.b32.xlu0 %v3171, 64
        %v3192 = vpop.permute.xlu0 %3191
        %3193 = vrot.lane.b32.xlu0 %v3172, 64
        %v3194 = vpop.permute.xlu0 %3193
        %3195 = vrot.lane.b32.xlu0 %v3173, 64
        %v3196 = vpop.permute.xlu0 %3195
        %3197 = vrot.lane.b32.xlu0 %v3174, 64
        %v3198 = vpop.permute.xlu0 %3197
        %3207 = vst.msk [vmem:[#allocation4] sm:$0xff] %vm1977, %v3184
        %3208 = vst.msk [vmem:[#allocation4 + $0x8] sm:$0xff] %vm1977, %v3186
        %3209 = vst.msk [vmem:[#allocation4 + $0x10] sm:$0xff] %vm1977, %v3188
        %3210 = vst.msk [vmem:[#allocation4 + $0x18] sm:$0xff] %vm1977, %v3190
        %3211 = vst.msk [vmem:[#allocation4 + $0x20] sm:$0xff] %vm1977, %v3192
        %3212 = vst.msk [vmem:[#allocation4 + $0x28] sm:$0xff] %vm1977, %v3194
        %3213 = vst.msk [vmem:[#allocation4 + $0x30] sm:$0xff] %vm1977, %v3196
        %3214 = vst.msk [vmem:[#allocation4 + $0x38] sm:$0xff] %vm1977, %v3198
        %v3215 = vld [vmem:[#allocation4] sm:$0xff]
        %v3216 = vld [vmem:[#allocation4 + $0x8] sm:$0xff]
        %v3217 = vld [vmem:[#allocation4 + $0x10] sm:$0xff]
        %v3218 = vld [vmem:[#allocation4 + $0x18] sm:$0xff]
        %v3219 = vld [vmem:[#allocation4 + $0x20] sm:$0xff]
        %v3220 = vld [vmem:[#allocation4 + $0x28] sm:$0xff]
        %v3221 = vld [vmem:[#allocation4 + $0x30] sm:$0xff]
        %v3222 = vld [vmem:[#allocation4 + $0x38] sm:$0xff]
        %v3223 = vpack.c.bf16 %v3216, %v3215
        %v3224 = vpack.c.bf16 %v3218, %v3217
        %v3225 = vpack.c.bf16 %v3220, %v3219
        %v3226 = vpack.c.bf16 %v3222, %v3221
        %v3227 = vld [vmem:[%s13] sm:$0xf]
        %v3228 = vld [vmem:[%s13 + $0x4] sm:$0xf]
        %v3229 = vld [vmem:[%s13 + $0x8] sm:$0xf]
        %v3230 = vld [vmem:[%s13 + $0xc] sm:$0xf]
        %v3231 = vld [vmem:[%s13 + $0x10] sm:$0xf]
        %v3232 = vld [vmem:[%s13 + $0x14] sm:$0xf]
        %v3233 = vld [vmem:[%s13 + $0x18] sm:$0xf]
        %v3234 = vld [vmem:[%s13 + $0x1c] sm:$0xf]
        %v3235 = vld [vmem:[%s13 + $0x20] sm:$0xf]
        %v3245 = vunpack.c.l.b16 %v3227
        %v3246 = vunpack.c.l.b16 %v3228
        %v3247 = vunpack.c.l.b16 %v3229
        %v3248 = vunpack.c.l.b16 %v3230
        %v3249 = vunpack.c.l.b16 %v3231
        %v3250 = vunpack.c.l.b16 %v3232
        %v3251 = vunpack.c.l.b16 %v3233
        %v3252 = vunpack.c.l.b16 %v3234
        %v3253 = vunpack.c.l.b16 %v3235
        %v3254 = vpack.c.b16 %v3246, %v3245
        %v3255 = vpack.c.b16 %v3248, %v3247
        %v3256 = vpack.c.b16 %v3250, %v3249
        %v3257 = vpack.c.b16 %v3252, %v3251
        %v3258 = vpack.c.b16 %v3253, %v3253
        %v3264 = vsel %vm2034, %v3223, 0
        %v3267 = vsel %vm2034, %v3224, 0
        %v3270 = vsel %vm2034, %v3225, 0
        %v3273 = vsel %vm2034, %v3226, 0
        %v3276 = vsel %vm1377, %v3258, 0
        %3278 = vmatprep.subr.bf16.mxu0 0
        %3279 = vmatpush1.bf16.msra.mxu0 %v3254
        %3280 = vmatprep.subr.bf16.mxu0 0
        %3281 = vmatpush1.bf16.msra.mxu0 %v3255
        %3282 = vmatprep.subr.bf16.mxu0 0
        %3283 = vmatpush1.bf16.msra.mxu0 %v3256
        %3284 = vmatprep.subr.bf16.mxu0 0
        %3285 = vmatpush1.bf16.msra.mxu0 %v3257
        %3286 = vmatprep.subr.bf16.mxu0 0
        %3287 = vmatpush1.bf16.msra.mxu0 %v3276
        %3288 = vmatprep.subr.bf16.mxu0 0
        %3289 = vmatpush1.bf16.msra.mxu0 0
        %3290 = vmatprep.subr.bf16.mxu0 0
        %3291 = vmatpush1.bf16.msra.mxu0 0
        %3292 = vmatprep.subr.bf16.mxu0 0
        %3293 = vmatpush1.bf16.msra.mxu0 0
        %3294 = vmatprep.subr.bf16.mxu0 0
        %3295 = vmatpush1.bf16.msra.mxu0 0
        %3296 = vmatprep.subr.bf16.mxu0 0
        %3297 = vmatpush1.bf16.msra.mxu0 0
        %3298 = vmatprep.subr.bf16.mxu0 0
        %3299 = vmatpush1.bf16.msra.mxu0 0
        %3300 = vmatprep.subr.bf16.mxu0 0
        %3301 = vmatpush1.bf16.msra.mxu0 0
        %3302 = vmatprep.subr.bf16.mxu0 0
        %3303 = vmatpush1.bf16.msra.mxu0 0
        %3304 = vmatprep.subr.bf16.mxu0 0
        %3305 = vmatpush1.bf16.msra.mxu0 0
        %3306 = vmatprep.subr.bf16.mxu0 0
        %3307 = vmatpush1.bf16.msra.mxu0 0
        %3308 = vmatprep.subr.bf16.mxu0 0
        %3309 = vmatpush1.bf16.msra.mxu0 0
        %3310 = vmatprep.mubr.bf16.mxu0 0
        %3311 = vmatmul.mubr.bf16.gmra.mrb[0].mxu0 %v3264
        %v3312 = vpop.f32.mrb[0].mxu0
        %v3313 = vadd.f32 %v2085, %v3312
        %v3314 = vpop.f32.mrb[0].mxu0
        %v3315 = vpop.f32.mrb[0].mxu0
        %v3316 = vadd.f32 %v2088, %v3315
        %v3317 = vpop.f32.mrb[0].mxu0
        %3318 = vmatprep.mubr.bf16.mxu0 0
        %3319 = vmatmul.mubr.bf16.gmra.mrb[0].mxu0 %v3267
        %v3320 = vpop.f32.mrb[0].mxu0
        %v3321 = vadd.f32 %v2093, %v3320
        %v3322 = vpop.f32.mrb[0].mxu0
        %v3323 = vpop.f32.mrb[0].mxu0
        %v3324 = vadd.f32 %v2096, %v3323
        %v3325 = vpop.f32.mrb[0].mxu0
        %3326 = vmatprep.mubr.bf16.mxu0 0
        %3327 = vmatmul.mubr.bf16.gmra.mrb[0].mxu0 %v3270
        %v3328 = vpop.f32.mrb[0].mxu0
        %v3329 = vadd.f32 %v2101, %v3328
        %v3330 = vpop.f32.mrb[0].mxu0
        %v3331 = vpop.f32.mrb[0].mxu0
        %v3332 = vadd.f32 %v2104, %v3331
        %v3333 = vpop.f32.mrb[0].mxu0
        %3334 = vmatprep.mubr.bf16.mxu0 0
        %3335 = vmatmul.mubr.bf16.gmra.mrb[0].mxu0 %v3273
        %v3336 = vpop.f32.mrb[0].mxu0
        %v3337 = vadd.f32 %v2109, %v3336
        %v3338 = vpop.f32.mrb[0].mxu0
        %v3339 = vpop.f32.mrb[0].mxu0
        %v3340 = vadd.f32 %v2112, %v3339
        %v3341 = vpop.f32.mrb[0].mxu0
        %3342 = vdwg.mxu0
        %3343 = vst.msk [vmem:[%s460] sm:$0xff] %vm1541, %v3313
        %3344 = vst.msk [vmem:[%s460 + $0x8] sm:$0xff] %vm1541, %v3316
        %3345 = vst.msk [vmem:[%s460 + $0x10] sm:$0xff] %vm1541, %v3321
        %3346 = vst.msk [vmem:[%s460 + $0x18] sm:$0xff] %vm1541, %v3324
        %3347 = vst.msk [vmem:[%s460 + $0x20] sm:$0xff] %vm1541, %v3329
        %3348 = vst.msk [vmem:[%s460 + $0x28] sm:$0xff] %vm1541, %v3332
        %3349 = vst.msk [vmem:[%s460 + $0x30] sm:$0xff] %vm1541, %v3337
        %3350 = vst.msk [vmem:[%s460 + $0x38] sm:$0xff] %vm1541, %v3340
        %s3351 = sand.u32 %s335, 1
        %s3352 = scalar_lea.sflag [#allocation6], %s3351
        %s3353 = sand.u32 %s335, 1
        %s3354 = smul.addr %s3353, 64
        %s3355 = scalar_lea.vmem [#allocation5], %s3354
        // Predicated region
        $region77: #{network_block_forward.1} parent=75 // pred_check
          %p3356 = pneg %p345
        $region78: #{network_block_forward.1} parent=75 // pred_check_branch
          %3358 = sbr.rel (%p3356) target = $region80
        $region79: #{network_block_forward.1} parent=75 // pred_region
          %s3360 = ssub.s32 1024, 1024
          %3361 = vsyncadd %s3352, %s3360
          %s3362 = smul.addr %s28, 8
          %s3363 = smul.addr %s3362, 128
          %s3364 = scalar_lea.hbm %s14, %s3363
          %s3365 = sshll.u32 %s3355, 4
          %s3366 = int_to_ptr.vmem [resolvable:$true] %s3365
          %3371 = dma.vmem_to_hbm [thread:$0]  %s3366, 1024, %s3364, %s3352, 128, 128, 8
        $region80: #{network_block_forward.1} parent=75 // pred_fallthru
          _
      $region76: #{network_block_forward.1} parent=5 // pred_fallthru
        _
      %p3372 = scmp.le.s32.totalorder 2, %s23
      // Predicated region
      $region81: #{network_block_forward.1} parent=5 // pred_check
        %p3373 = pneg %p3372
      $region82: #{network_block_forward.1} parent=5 // pred_check_branch
        %3375 = sbr.rel (%p3373) target = $region84
      $region83: #{network_block_forward.1} parent=5 // pred_region
        %s3376 = ssub.s32 %s23, 2
        // Predicated region
        $region85: #{network_block_forward.1} parent=83 // pred_check
          %p3377 = pneg %p351
        $region86: #{network_block_forward.1} parent=83 // pred_check_branch
          %3379 = sbr.rel (%p3377) target = $region88
        $region87: #{network_block_forward.1} parent=83 // pred_region
          %s3380 = sand.u32 %s336, 1
          %s3381 = scalar_lea.sflag [#allocation6], %s3380
          %s3382 = sand.u32 %s336, 1
          %s3383 = smul.addr %s3382, 64
          %s3384 = scalar_lea.vmem [#allocation5], %s3383
          %3385 = dma.done %s3381, 1024
        $region88: #{network_block_forward.1} parent=83 // pred_fallthru
          _
      $region84: #{network_block_forward.1} parent=5 // pred_fallthru
        _
    $region6: #{network_block_forward.1} parent=1 // loop_footer
      %s27 = sadd.s32 1, %s23
    $region7: #{network_block_forward.1} parent=1 // loop_footer_branch
      %22 = sbr.rel target = $region3
    $region8: #{network_block_forward.1} parent=1 // loop_exit
      _
    %3386 = vsyncpa [#allocation6], 1
    %s3387 = scalar_lea.sflag [#allocation6], 1
    %3388 = vsyncpa %s3387, 1

</llo_original>
